<compile_context>
chip_gen: v7x
topology: tpu7x:2x2x1
jax: 0.10.0
libtpu: 0.0.40
codegen_flags: <defaults>
</compile_context>

<pallas_src>
import math
import jax
import jax.numpy as jnp
from jax.experimental import pallas as pl
from jax.experimental.pallas import tpu as pltpu

# ----------------------------- config (small) -----------------------------
VOCAB_SIZE = 128
BLOCK_SIZE = 16
N_LAYER = 2
N_HEAD = 4
N_EMBD = 32
BATCH = 2
SEQ = 8
HEAD_DIM = N_EMBD // N_HEAD


# ------------------------------ in-kernel math -----------------------------
def _ln(x, g, b):
    # LayerNorm over last axis, eps matches nn.LayerNorm default (1e-5).
    mean = jnp.mean(x, axis=-1, keepdims=True)
    var = jnp.mean(jnp.square(x - mean), axis=-1, keepdims=True)
    return (x - mean) * jax.lax.rsqrt(var + 1e-5) * g + b


def _gelu_tanh(x):
    # nn.GELU(approximate='tanh')
    c = math.sqrt(2.0 / math.pi)
    return 0.5 * x * (1.0 + jnp.tanh(c * (x + 0.044715 * x * x * x)))


# --------------------------- fused whole-model kernel -----------------------
def _gpt_kernel(idx_ref, wte_ref, wpe_ref,
                ln1g_ref, ln1b_ref, wqkv_ref, bqkv_ref,
                wproj_ref, bproj_ref, ln2g_ref, ln2b_ref,
                wfc_ref, bfc_ref, wmp_ref, bmp_ref,
                lnfg_ref, lnfb_ref, whead_ref,
                o_ref, x_vmem):
    layer = pl.program_id(0)
    BT = BATCH * SEQ
    T = SEQ
    C = N_EMBD
    hd = HEAD_DIM
    scale = 1.0 / math.sqrt(hd)

    # ---- step 0: fused token + position embedding into the VMEM activation ----
    @pl.when(layer == 0)
    def _embed():
        lane = jax.lax.broadcasted_iota(jnp.int32, (BT, VOCAB_SIZE), 1)
        onehot = (lane == idx_ref[...]).astype(jnp.float32)          # (BT, V)
        tok = jnp.dot(onehot, wte_ref[...],
                      preferred_element_type=jnp.float32)            # (BT, C)
        pos = jnp.concatenate([wpe_ref[...]] * BATCH, axis=0)        # (BT, C)
        x_vmem[...] = tok + pos

    x = x_vmem[...]                                                  # (BT, C)

    # ---------------- attention sub-block ----------------
    h = _ln(x, ln1g_ref[...], ln1b_ref[...])
    qkv = jnp.dot(h, wqkv_ref[...],
                  preferred_element_type=jnp.float32) + bqkv_ref[...]  # (BT, 3C)

    # Additive causal bias computed once (large finite negative: no -inf/NaN risk).
    row = jax.lax.broadcasted_iota(jnp.int32, (T, T), 0)
    col = jax.lax.broadcasted_iota(jnp.int32, (T, T), 1)
    causal_bias = jnp.where(col <= row, 0.0, -1e30).astype(jnp.float32)

    y_parts = []
    for b in range(BATCH):                     # B small & static: unrolled
        qkv_b = qkv[b * T:(b + 1) * T, :]      # (T, 3C) static sublane slice
        heads = []
        for hh in range(N_HEAD):               # unrolled head loop
            lo = hh * hd
            q = qkv_b[:, lo:lo + hd]                       # (T, hd)
            k = qkv_b[:, C + lo:C + lo + hd]               # (T, hd)
            v = qkv_b[:, 2 * C + lo:2 * C + lo + hd]       # (T, hd)
            att = jax.lax.dot_general(q, k, (((1,), (1,)), ((), ())),
                                      preferred_element_type=jnp.float32)
            att = att * scale + causal_bias
            m = jnp.max(att, axis=-1, keepdims=True)
            e = jnp.exp(att - m)
            inv = pl.reciprocal(jnp.sum(e, axis=-1, keepdims=True), approx=True)
            p = e * inv
            heads.append(jnp.dot(p, v, preferred_element_type=jnp.float32))
        y_parts.append(jnp.concatenate(heads, axis=1))     # (T, C)
    y = jnp.concatenate(y_parts, axis=0)                   # (BT, C)

    # Single merged c_proj matmul (one MXU push) + residual.
    x = x + jnp.dot(y, wproj_ref[...],
                    preferred_element_type=jnp.float32) + bproj_ref[...]

    # ---------------- MLP sub-block ----------------
    h2 = _ln(x, ln2g_ref[...], ln2b_ref[...])
    mlp = jnp.dot(h2, wfc_ref[...],
                  preferred_element_type=jnp.float32) + bfc_ref[...]   # (BT, 4C)
    mlp = _gelu_tanh(mlp)
    x = x + jnp.dot(mlp, wmp_ref[...],
                    preferred_element_type=jnp.float32) + bmp_ref[...]

    x_vmem[...] = x

    # ---- last step: final LayerNorm + lm_head (lane-dense V=128 output) ----
    @pl.when(layer == N_LAYER - 1)
    def _head():
        hf = _ln(x, lnfg_ref[...], lnfb_ref[...])
        o_ref[...] = jnp.dot(hf, whead_ref[...],
                             preferred_element_type=jnp.float32)


# ------------------------------ wrapper ------------------------------------
def gpt_forward(params, idx):
    B, T = idx.shape
    assert B == BATCH and T == SEQ
    BT = B * T
    C = N_EMBD

    idx2d = idx.reshape(BT, 1).astype(jnp.int32)
    wpe_t = params["wpe"][:T]                       # (T, C) weight prep

    def const2d(shape):
        return pl.BlockSpec(shape, lambda l: (0, 0))

    def per_layer(r, c):
        # Layer-stacked weight: stream one layer per grid step, squeeze L dim.
        return pl.BlockSpec((pl.Squeezed(), r, c), lambda l: (l, 0, 0))

    logits = pl.pallas_call(
        _gpt_kernel,
        out_shape=jax.ShapeDtypeStruct((BT, VOCAB_SIZE), jnp.float32),
        grid=(N_LAYER,),
        in_specs=[
            const2d((BT, 1)),                              # idx
            const2d((VOCAB_SIZE, C)),                      # wte
            const2d((T, C)),                               # wpe[:T]
            per_layer(1, C), per_layer(1, C),              # ln1 gamma/beta
            per_layer(C, 3 * C), per_layer(1, 3 * C),      # c_attn W, b
            per_layer(C, C), per_layer(1, C),              # attn c_proj W, b
            per_layer(1, C), per_layer(1, C),              # ln2 gamma/beta
            per_layer(C, 4 * C), per_layer(1, 4 * C),      # c_fc W, b
            per_layer(4 * C, C), per_layer(1, C),          # mlp c_proj W, b
            const2d((1, C)), const2d((1, C)),              # ln_f gamma/beta
            const2d((C, VOCAB_SIZE)),                      # lm_head W (no bias)
        ],
        out_specs=pl.BlockSpec((BT, VOCAB_SIZE), lambda l: (0, 0)),
        scratch_shapes=[pltpu.VMEM((BT, C), jnp.float32)],  # resident activation
        compiler_params=pltpu.CompilerParams(
            dimension_semantics=("arbitrary",)),             # layers are sequential
    )(
        idx2d, params["wte"], wpe_t,
        params["ln1_g"], params["ln1_b"],
        params["attn_w"], params["attn_b"],
        params["proj_w"], params["proj_b"],
        params["ln2_g"], params["ln2_b"],
        params["fc_w"], params["fc_b"],
        params["mlp_proj_w"], params["mlp_proj_b"],
        params["ln_f_g"], params["ln_f_b"],
        params["lm_head_w"],
    )
    return logits.reshape(B, T, VOCAB_SIZE)


# ------------------------------ params -------------------------------------
def init_params(key):
    # Weights stored as (in_features, out_features): y = x @ W + b, matching the
    # HF "transposed" convention.  Per-layer tensors are layer-stacked (L, ...).
    def nrm(k, shape, std=0.02):
        return jax.random.normal(k, shape, dtype=jnp.float32) * std

    C, L = N_EMBD, N_LAYER
    keys = jax.random.split(key, 11)
    return {
        "wte": nrm(keys[0], (VOCAB_SIZE, C)),
        "wpe": nrm(keys[1], (BLOCK_SIZE, C)),
        "ln_f_g": jnp.ones((1, C), jnp.float32),
        "ln_f_b": jnp.zeros((1, C), jnp.float32),
        "lm_head_w": nrm(keys[2], (C, VOCAB_SIZE)),
        "ln1_g": jnp.ones((L, 1, C), jnp.float32),
        "ln1_b": jnp.zeros((L, 1, C), jnp.float32),
        "attn_w": nrm(keys[3], (L, C, 3 * C)),
        "attn_b": nrm(keys[4], (L, 1, 3 * C)),
        "proj_w": nrm(keys[5], (L, C, C)),
        "proj_b": nrm(keys[6], (L, 1, C)),
        "ln2_g": jnp.ones((L, 1, C), jnp.float32),
        "ln2_b": jnp.zeros((L, 1, C), jnp.float32),
        "fc_w": nrm(keys[7], (L, C, 4 * C)),
        "fc_b": nrm(keys[8], (L, 1, 4 * C)),
        "mlp_proj_w": nrm(keys[9], (L, 4 * C, C)),
        "mlp_proj_b": nrm(keys[10], (L, 1, C)),
    }


# TODO(synk): GPT.from_pretrained (HF checkpoint load) and the torch sampling
# scaffolding (num_return_sequences / tokens.repeat) are intentionally not
# reproduced; weights are synthetic deterministic initializations.

if __name__ == "__main__":
    key = jax.random.PRNGKey(0)
    pkey, ikey = jax.random.split(key)
    params = init_params(pkey)
    idx = jax.random.randint(ikey, (BATCH, SEQ), 0, VOCAB_SIZE, dtype=jnp.int32)
    logits = jax.jit(gpt_forward)(params, idx)
    jax.block_until_ready(logits)
    assert logits.shape == (BATCH, SEQ, VOCAB_SIZE)
    assert bool(jnp.all(jnp.isfinite(logits)))
    print("KERNEL_OK")
</pallas_src>

<mosaic_0001>
module attributes {stable_mosaic.version = 11 : i64} {
  func.func @_gpt_kernel(%arg0: i32, %arg1: memref<16x1xi32, #tpu.memory_space<vmem>>, %arg2: memref<128x32xf32, #tpu.memory_space<vmem>>, %arg3: memref<8x32xf32, #tpu.memory_space<vmem>>, %arg4: memref<1x1x32xf32, #tpu.memory_space<vmem>>, %arg5: memref<1x1x32xf32, #tpu.memory_space<vmem>>, %arg6: memref<1x32x96xf32, #tpu.memory_space<vmem>>, %arg7: memref<1x1x96xf32, #tpu.memory_space<vmem>>, %arg8: memref<1x32x32xf32, #tpu.memory_space<vmem>>, %arg9: memref<1x1x32xf32, #tpu.memory_space<vmem>>, %arg10: memref<1x1x32xf32, #tpu.memory_space<vmem>>, %arg11: memref<1x1x32xf32, #tpu.memory_space<vmem>>, %arg12: memref<1x32x128xf32, #tpu.memory_space<vmem>>, %arg13: memref<1x1x128xf32, #tpu.memory_space<vmem>>, %arg14: memref<1x128x32xf32, #tpu.memory_space<vmem>>, %arg15: memref<1x1x32xf32, #tpu.memory_space<vmem>>, %arg16: memref<1x32xf32, #tpu.memory_space<vmem>>, %arg17: memref<1x32xf32, #tpu.memory_space<vmem>>, %arg18: memref<32x128xf32, #tpu.memory_space<vmem>>, %arg19: memref<16x128xf32, #tpu.memory_space<vmem>>, %arg20: memref<16x32xf32, #tpu.memory_space<vmem>>) attributes {dimension_semantics = [#tpu.dimension_semantics<arbitrary>], iteration_bounds = array<i64: 2>, scalar_prefetch = 0 : i64, scratch_operands = 1 : i64, tpu.core_type = #tpu.core_type<tc>, window_params = [{pipeline_mode = #tpu.pipeline_mode<synchronous>, transform_indices = @transform_0, window_bounds = array<i64: 16, 1>}, {pipeline_mode = #tpu.pipeline_mode<synchronous>, transform_indices = @transform_1, window_bounds = array<i64: 128, 32>}, {pipeline_mode = #tpu.pipeline_mode<synchronous>, transform_indices = @transform_2, window_bounds = array<i64: 8, 32>}, {transform_indices = @transform_3, window_bounds = array<i64: 1, 1, 32>}, {transform_indices = @transform_4, window_bounds = array<i64: 1, 1, 32>}, {transform_indices = @transform_5, window_bounds = array<i64: 1, 32, 96>}, {transform_indices = @transform_6, window_bounds = array<i64: 1, 1, 96>}, {transform_indices = @transform_7, window_bounds = array<i64: 1, 32, 32>}, {transform_indices = @transform_8, window_bounds = array<i64: 1, 1, 32>}, {transform_indices = @transform_9, window_bounds = array<i64: 1, 1, 32>}, {transform_indices = @transform_10, window_bounds = array<i64: 1, 1, 32>}, {transform_indices = @transform_11, window_bounds = array<i64: 1, 32, 128>}, {transform_indices = @transform_12, window_bounds = array<i64: 1, 1, 128>}, {transform_indices = @transform_13, window_bounds = array<i64: 1, 128, 32>}, {transform_indices = @transform_14, window_bounds = array<i64: 1, 1, 32>}, {pipeline_mode = #tpu.pipeline_mode<synchronous>, transform_indices = @transform_15, window_bounds = array<i64: 1, 32>}, {pipeline_mode = #tpu.pipeline_mode<synchronous>, transform_indices = @transform_16, window_bounds = array<i64: 1, 32>}, {pipeline_mode = #tpu.pipeline_mode<synchronous>, transform_indices = @transform_17, window_bounds = array<i64: 32, 128>}, {pipeline_mode = #tpu.pipeline_mode<synchronous>, transform_indices = @transform_18, window_bounds = array<i64: 16, 128>}]} {
    %c0_i32 = arith.constant 0 : i32
    %0 = arith.cmpi eq, %arg0, %c0_i32 : i32
    %1 = arith.extui %0 : i1 to i32
    %c0_i32_0 = arith.constant 0 : i32
    %2 = arith.cmpi ne, %1, %c0_i32_0 : i32
    scf.if %2 {
      %258 = tpu.iota {dimensions = array<i32: 1>} : vector<16x128xi32>
      %c0_100 = arith.constant 0 : index
      %c0_101 = arith.constant 0 : index
      %259 = vector.load %arg1[%c0_100, %c0_101] : memref<16x1xi32, #tpu.memory_space<vmem>>, vector<16x1xi32>
      %260 = vector.broadcast %259 : vector<16x1xi32> to vector<16x128xi32>
      %261 = arith.cmpi eq, %258, %260 : vector<16x128xi32>
      %262 = arith.extui %261 : vector<16x128xi1> to vector<16x128xi32>
      %263 = arith.sitofp %262 : vector<16x128xi32> to vector<16x128xf32>
      %c0_102 = arith.constant 0 : index
      %c0_103 = arith.constant 0 : index
      %264 = vector.load %arg2[%c0_102, %c0_103] : memref<128x32xf32, #tpu.memory_space<vmem>>, vector<128x32xf32>
      %cst_104 = arith.constant dense<0.000000e+00> : vector<16x32xf32>
      %265 = tpu.matmul %263, %264, %cst_104 {dimension_numbers = #tpu.dot_dimension_numbers<[1], [0], [0], [1], [0, 0, 1, 1], [], []>} : vector<16x128xf32>, vector<128x32xf32>, vector<16x32xf32> -> vector<16x32xf32>
      %c0_105 = arith.constant 0 : index
      %c0_106 = arith.constant 0 : index
      %266 = vector.load %arg3[%c0_105, %c0_106] : memref<8x32xf32, #tpu.memory_space<vmem>>, vector<8x32xf32>
      %267 = tpu.concatenate %266, %266 in 0 : vector<8x32xf32>, vector<8x32xf32> -> vector<16x32xf32>
      %268 = arith.addf %265, %267 : vector<16x32xf32>
      %c0_107 = arith.constant 0 : index
      %c0_108 = arith.constant 0 : index
      %269 = vector.load %arg20[%c0_107, %c0_108] : memref<16x32xf32, #tpu.memory_space<vmem>>, vector<16x32xf32>
      tpu.vector_store %arg20[%c0_107, %c0_108], %268 {strides = array<i32>} : memref<16x32xf32, #tpu.memory_space<vmem>>, vector<16x32xf32>,
    } else {
    }
    %c0 = arith.constant 0 : index
    %c0_1 = arith.constant 0 : index
    %3 = vector.load %arg20[%c0, %c0_1] : memref<16x32xf32, #tpu.memory_space<vmem>>, vector<16x32xf32>
    %c0_2 = arith.constant 0 : index
    %c0_3 = arith.constant 0 : index
    %c0_4 = arith.constant 0 : index
    %4 = vector.load %arg4[%c0_2, %c0_3, %c0_4] : memref<1x1x32xf32, #tpu.memory_space<vmem>>, vector<1x1x32xf32>
    %5 = vector.shape_cast %4 : vector<1x1x32xf32> to vector<1x32xf32>
    %c0_5 = arith.constant 0 : index
    %c0_6 = arith.constant 0 : index
    %c0_7 = arith.constant 0 : index
    %6 = vector.load %arg5[%c0_5, %c0_6, %c0_7] : memref<1x1x32xf32, #tpu.memory_space<vmem>>, vector<1x1x32xf32>
    %7 = vector.shape_cast %6 : vector<1x1x32xf32> to vector<1x32xf32>
    %cst = arith.constant dense<0.000000e+00> : vector<16xf32>
    %8 = vector.multi_reduction <add>, %3, %cst [1] : vector<16x32xf32> to vector<16xf32>
    %9 = vector.shape_cast %8 : vector<16xf32> to vector<16x1xf32>
    %cst_8 = arith.constant 3.200000e+01 : f32
    %10 = vector.broadcast %cst_8 : f32 to vector<16x1xf32>
    %11 = arith.divf %9, %10 : vector<16x1xf32>
    %12 = vector.broadcast %11 : vector<16x1xf32> to vector<16x32xf32>
    %13 = arith.subf %3, %12 : vector<16x32xf32>
    %14 = arith.mulf %13, %13 : vector<16x32xf32>
    %cst_9 = arith.constant dense<0.000000e+00> : vector<16xf32>
    %15 = vector.multi_reduction <add>, %14, %cst_9 [1] : vector<16x32xf32> to vector<16xf32>
    %16 = vector.shape_cast %15 : vector<16xf32> to vector<16x1xf32>
    %cst_10 = arith.constant 3.200000e+01 : f32
    %17 = vector.broadcast %cst_10 : f32 to vector<16x1xf32>
    %18 = arith.divf %16, %17 : vector<16x1xf32>
    %19 = vector.broadcast %11 : vector<16x1xf32> to vector<16x32xf32>
    %20 = arith.subf %3, %19 : vector<16x32xf32>
    %cst_11 = arith.constant 9.99999974E-6 : f32
    %21 = vector.broadcast %cst_11 : f32 to vector<16x1xf32>
    %22 = arith.addf %18, %21 : vector<16x1xf32>
    %23 = math.rsqrt %22 : vector<16x1xf32>
    %24 = vector.broadcast %23 : vector<16x1xf32> to vector<16x32xf32>
    %25 = arith.mulf %20, %24 : vector<16x32xf32>
    %26 = vector.broadcast %5 : vector<1x32xf32> to vector<16x32xf32>
    %27 = arith.mulf %25, %26 : vector<16x32xf32>
    %28 = vector.broadcast %7 : vector<1x32xf32> to vector<16x32xf32>
    %29 = arith.addf %27, %28 : vector<16x32xf32>
    %c0_12 = arith.constant 0 : index
    %c0_13 = arith.constant 0 : index
    %c0_14 = arith.constant 0 : index
    %30 = vector.load %arg6[%c0_12, %c0_13, %c0_14] : memref<1x32x96xf32, #tpu.memory_space<vmem>>, vector<1x32x96xf32>
    %31 = vector.shape_cast %30 : vector<1x32x96xf32> to vector<32x96xf32>
    %cst_15 = arith.constant dense<0.000000e+00> : vector<16x96xf32>
    %32 = tpu.matmul %29, %31, %cst_15 {dimension_numbers = #tpu.dot_dimension_numbers<[1], [0], [0], [1], [0, 0, 1, 1], [], []>} : vector<16x32xf32>, vector<32x96xf32>, vector<16x96xf32> -> vector<16x96xf32>
    %c0_16 = arith.constant 0 : index
    %c0_17 = arith.constant 0 : index
    %c0_18 = arith.constant 0 : index
    %33 = vector.load %arg7[%c0_16, %c0_17, %c0_18] : memref<1x1x96xf32, #tpu.memory_space<vmem>>, vector<1x1x96xf32>
    %34 = vector.shape_cast %33 : vector<1x1x96xf32> to vector<1x96xf32>
    %35 = vector.broadcast %34 : vector<1x96xf32> to vector<16x96xf32>
    %36 = arith.addf %32, %35 : vector<16x96xf32>
    %37 = tpu.iota {dimensions = array<i32: 0>} : vector<8x8xi32>
    %38 = tpu.iota {dimensions = array<i32: 1>} : vector<8x8xi32>
    %39 = arith.cmpi sle, %38, %37 : vector<8x8xi32>
    %cst_19 = arith.constant 0.000000e+00 : f32
    %cst_20 = arith.constant -1.000000e+30 : f32
    %40 = vector.broadcast %cst_19 : f32 to vector<8x8xf32>
    %41 = vector.broadcast %cst_20 : f32 to vector<8x8xf32>
    %42 = arith.select %39, %40, %41 : vector<8x8xi1>, vector<8x8xf32>
    %43 = vector.extract_strided_slice %36 {offsets = [0, 0], sizes = [8, 96], strides = [1, 1]} : vector<16x96xf32> to vector<8x96xf32>
    %44 = vector.extract_strided_slice %43 {offsets = [0, 0], sizes = [8, 8], strides = [1, 1]} : vector<8x96xf32> to vector<8x8xf32>
    %45 = vector.extract_strided_slice %43 {offsets = [0, 32], sizes = [8, 8], strides = [1, 1]} : vector<8x96xf32> to vector<8x8xf32>
    %46 = vector.extract_strided_slice %43 {offsets = [0, 64], sizes = [8, 8], strides = [1, 1]} : vector<8x96xf32> to vector<8x8xf32>
    %cst_21 = arith.constant dense<0.000000e+00> : vector<8x8xf32>
    %47 = tpu.matmul %44, %45, %cst_21 {dimension_numbers = #tpu.dot_dimension_numbers<[1], [1], [0], [0], [0, 0, 1, 0], [], []>} : vector<8x8xf32>, vector<8x8xf32>, vector<8x8xf32> -> vector<8x8xf32>
    %cst_22 = arith.constant 0.353553385 : f32
    %48 = vector.broadcast %cst_22 : f32 to vector<8x8xf32>
    %49 = arith.mulf %47, %48 : vector<8x8xf32>
    %50 = arith.addf %49, %42 : vector<8x8xf32>
    %cst_23 = arith.constant dense<0xFF800000> : vector<8xf32>
    %51 = vector.multi_reduction <maximumf>, %50, %cst_23 [1] : vector<8x8xf32> to vector<8xf32>
    %52 = vector.shape_cast %51 : vector<8xf32> to vector<8x1xf32>
    %53 = vector.broadcast %52 : vector<8x1xf32> to vector<8x8xf32>
    %54 = arith.subf %50, %53 : vector<8x8xf32>
    %55 = math.exp %54 : vector<8x8xf32>
    %cst_24 = arith.constant dense<0.000000e+00> : vector<8xf32>
    %56 = vector.multi_reduction <add>, %55, %cst_24 [1] : vector<8x8xf32> to vector<8xf32>
    %57 = vector.shape_cast %56 : vector<8xf32> to vector<8x1xf32>
    %58 = tpu.reciprocal %57 {approx = true} : vector<8x1xf32> -> vector<8x1xf32>
    %59 = vector.broadcast %58 : vector<8x1xf32> to vector<8x8xf32>
    %60 = arith.mulf %55, %59 : vector<8x8xf32>
    %cst_25 = arith.constant dense<0.000000e+00> : vector<8x8xf32>
    %61 = tpu.matmul %60, %46, %cst_25 {dimension_numbers = #tpu.dot_dimension_numbers<[1], [0], [0], [1], [0, 0, 1, 1], [], []>} : vector<8x8xf32>, vector<8x8xf32>, vector<8x8xf32> -> vector<8x8xf32>
    %62 = vector.extract_strided_slice %43 {offsets = [0, 8], sizes = [8, 8], strides = [1, 1]} : vector<8x96xf32> to vector<8x8xf32>
    %63 = vector.extract_strided_slice %43 {offsets = [0, 40], sizes = [8, 8], strides = [1, 1]} : vector<8x96xf32> to vector<8x8xf32>
    %64 = vector.extract_strided_slice %43 {offsets = [0, 72], sizes = [8, 8], strides = [1, 1]} : vector<8x96xf32> to vector<8x8xf32>
    %cst_26 = arith.constant dense<0.000000e+00> : vector<8x8xf32>
    %65 = tpu.matmul %62, %63, %cst_26 {dimension_numbers = #tpu.dot_dimension_numbers<[1], [1], [0], [0], [0, 0, 1, 0], [], []>} : vector<8x8xf32>, vector<8x8xf32>, vector<8x8xf32> -> vector<8x8xf32>
    %cst_27 = arith.constant 0.353553385 : f32
    %66 = vector.broadcast %cst_27 : f32 to vector<8x8xf32>
    %67 = arith.mulf %65, %66 : vector<8x8xf32>
    %68 = arith.addf %67, %42 : vector<8x8xf32>
    %cst_28 = arith.constant dense<0xFF800000> : vector<8xf32>
    %69 = vector.multi_reduction <maximumf>, %68, %cst_28 [1] : vector<8x8xf32> to vector<8xf32>
    %70 = vector.shape_cast %69 : vector<8xf32> to vector<8x1xf32>
    %71 = vector.broadcast %70 : vector<8x1xf32> to vector<8x8xf32>
    %72 = arith.subf %68, %71 : vector<8x8xf32>
    %73 = math.exp %72 : vector<8x8xf32>
    %cst_29 = arith.constant dense<0.000000e+00> : vector<8xf32>
    %74 = vector.multi_reduction <add>, %73, %cst_29 [1] : vector<8x8xf32> to vector<8xf32>
    %75 = vector.shape_cast %74 : vector<8xf32> to vector<8x1xf32>
    %76 = tpu.reciprocal %75 {approx = true} : vector<8x1xf32> -> vector<8x1xf32>
    %77 = vector.broadcast %76 : vector<8x1xf32> to vector<8x8xf32>
    %78 = arith.mulf %73, %77 : vector<8x8xf32>
    %cst_30 = arith.constant dense<0.000000e+00> : vector<8x8xf32>
    %79 = tpu.matmul %78, %64, %cst_30 {dimension_numbers = #tpu.dot_dimension_numbers<[1], [0], [0], [1], [0, 0, 1, 1], [], []>} : vector<8x8xf32>, vector<8x8xf32>, vector<8x8xf32> -> vector<8x8xf32>
    %80 = vector.extract_strided_slice %43 {offsets = [0, 16], sizes = [8, 8], strides = [1, 1]} : vector<8x96xf32> to vector<8x8xf32>
    %81 = vector.extract_strided_slice %43 {offsets = [0, 48], sizes = [8, 8], strides = [1, 1]} : vector<8x96xf32> to vector<8x8xf32>
    %82 = vector.extract_strided_slice %43 {offsets = [0, 80], sizes = [8, 8], strides = [1, 1]} : vector<8x96xf32> to vector<8x8xf32>
    %cst_31 = arith.constant dense<0.000000e+00> : vector<8x8xf32>
    %83 = tpu.matmul %80, %81, %cst_31 {dimension_numbers = #tpu.dot_dimension_numbers<[1], [1], [0], [0], [0, 0, 1, 0], [], []>} : vector<8x8xf32>, vector<8x8xf32>, vector<8x8xf32> -> vector<8x8xf32>
    %cst_32 = arith.constant 0.353553385 : f32
    %84 = vector.broadcast %cst_32 : f32 to vector<8x8xf32>
    %85 = arith.mulf %83, %84 : vector<8x8xf32>
    %86 = arith.addf %85, %42 : vector<8x8xf32>
    %cst_33 = arith.constant dense<0xFF800000> : vector<8xf32>
    %87 = vector.multi_reduction <maximumf>, %86, %cst_33 [1] : vector<8x8xf32> to vector<8xf32>
    %88 = vector.shape_cast %87 : vector<8xf32> to vector<8x1xf32>
    %89 = vector.broadcast %88 : vector<8x1xf32> to vector<8x8xf32>
    %90 = arith.subf %86, %89 : vector<8x8xf32>
    %91 = math.exp %90 : vector<8x8xf32>
    %cst_34 = arith.constant dense<0.000000e+00> : vector<8xf32>
    %92 = vector.multi_reduction <add>, %91, %cst_34 [1] : vector<8x8xf32> to vector<8xf32>
    %93 = vector.shape_cast %92 : vector<8xf32> to vector<8x1xf32>
    %94 = tpu.reciprocal %93 {approx = true} : vector<8x1xf32> -> vector<8x1xf32>
    %95 = vector.broadcast %94 : vector<8x1xf32> to vector<8x8xf32>
    %96 = arith.mulf %91, %95 : vector<8x8xf32>
    %cst_35 = arith.constant dense<0.000000e+00> : vector<8x8xf32>
    %97 = tpu.matmul %96, %82, %cst_35 {dimension_numbers = #tpu.dot_dimension_numbers<[1], [0], [0], [1], [0, 0, 1, 1], [], []>} : vector<8x8xf32>, vector<8x8xf32>, vector<8x8xf32> -> vector<8x8xf32>
    %98 = vector.extract_strided_slice %43 {offsets = [0, 24], sizes = [8, 8], strides = [1, 1]} : vector<8x96xf32> to vector<8x8xf32>
    %99 = vector.extract_strided_slice %43 {offsets = [0, 56], sizes = [8, 8], strides = [1, 1]} : vector<8x96xf32> to vector<8x8xf32>
    %100 = vector.extract_strided_slice %43 {offsets = [0, 88], sizes = [8, 8], strides = [1, 1]} : vector<8x96xf32> to vector<8x8xf32>
    %cst_36 = arith.constant dense<0.000000e+00> : vector<8x8xf32>
    %101 = tpu.matmul %98, %99, %cst_36 {dimension_numbers = #tpu.dot_dimension_numbers<[1], [1], [0], [0], [0, 0, 1, 0], [], []>} : vector<8x8xf32>, vector<8x8xf32>, vector<8x8xf32> -> vector<8x8xf32>
    %cst_37 = arith.constant 0.353553385 : f32
    %102 = vector.broadcast %cst_37 : f32 to vector<8x8xf32>
    %103 = arith.mulf %101, %102 : vector<8x8xf32>
    %104 = arith.addf %103, %42 : vector<8x8xf32>
    %cst_38 = arith.constant dense<0xFF800000> : vector<8xf32>
    %105 = vector.multi_reduction <maximumf>, %104, %cst_38 [1] : vector<8x8xf32> to vector<8xf32>
    %106 = vector.shape_cast %105 : vector<8xf32> to vector<8x1xf32>
    %107 = vector.broadcast %106 : vector<8x1xf32> to vector<8x8xf32>
    %108 = arith.subf %104, %107 : vector<8x8xf32>
    %109 = math.exp %108 : vector<8x8xf32>
    %cst_39 = arith.constant dense<0.000000e+00> : vector<8xf32>
    %110 = vector.multi_reduction <add>, %109, %cst_39 [1] : vector<8x8xf32> to vector<8xf32>
    %111 = vector.shape_cast %110 : vector<8xf32> to vector<8x1xf32>
    %112 = tpu.reciprocal %111 {approx = true} : vector<8x1xf32> -> vector<8x1xf32>
    %113 = vector.broadcast %112 : vector<8x1xf32> to vector<8x8xf32>
    %114 = arith.mulf %109, %113 : vector<8x8xf32>
    %cst_40 = arith.constant dense<0.000000e+00> : vector<8x8xf32>
    %115 = tpu.matmul %114, %100, %cst_40 {dimension_numbers = #tpu.dot_dimension_numbers<[1], [0], [0], [1], [0, 0, 1, 1], [], []>} : vector<8x8xf32>, vector<8x8xf32>, vector<8x8xf32> -> vector<8x8xf32>
    %116 = tpu.concatenate %61, %79, %97, %115 in 1 : vector<8x8xf32>, vector<8x8xf32>, vector<8x8xf32>, vector<8x8xf32> -> vector<8x32xf32>
    %117 = vector.extract_strided_slice %36 {offsets = [8, 0], sizes = [8, 96], strides = [1, 1]} : vector<16x96xf32> to vector<8x96xf32>
    %118 = vector.extract_strided_slice %117 {offsets = [0, 0], sizes = [8, 8], strides = [1, 1]} : vector<8x96xf32> to vector<8x8xf32>
    %119 = vector.extract_strided_slice %117 {offsets = [0, 32], sizes = [8, 8], strides = [1, 1]} : vector<8x96xf32> to vector<8x8xf32>
    %120 = vector.extract_strided_slice %117 {offsets = [0, 64], sizes = [8, 8], strides = [1, 1]} : vector<8x96xf32> to vector<8x8xf32>
    %cst_41 = arith.constant dense<0.000000e+00> : vector<8x8xf32>
    %121 = tpu.matmul %118, %119, %cst_41 {dimension_numbers = #tpu.dot_dimension_numbers<[1], [1], [0], [0], [0, 0, 1, 0], [], []>} : vector<8x8xf32>, vector<8x8xf32>, vector<8x8xf32> -> vector<8x8xf32>
    %cst_42 = arith.constant 0.353553385 : f32
    %122 = vector.broadcast %cst_42 : f32 to vector<8x8xf32>
    %123 = arith.mulf %121, %122 : vector<8x8xf32>
    %124 = arith.addf %123, %42 : vector<8x8xf32>
    %cst_43 = arith.constant dense<0xFF800000> : vector<8xf32>
    %125 = vector.multi_reduction <maximumf>, %124, %cst_43 [1] : vector<8x8xf32> to vector<8xf32>
    %126 = vector.shape_cast %125 : vector<8xf32> to vector<8x1xf32>
    %127 = vector.broadcast %126 : vector<8x1xf32> to vector<8x8xf32>
    %128 = arith.subf %124, %127 : vector<8x8xf32>
    %129 = math.exp %128 : vector<8x8xf32>
    %cst_44 = arith.constant dense<0.000000e+00> : vector<8xf32>
    %130 = vector.multi_reduction <add>, %129, %cst_44 [1] : vector<8x8xf32> to vector<8xf32>
    %131 = vector.shape_cast %130 : vector<8xf32> to vector<8x1xf32>
    %132 = tpu.reciprocal %131 {approx = true} : vector<8x1xf32> -> vector<8x1xf32>
    %133 = vector.broadcast %132 : vector<8x1xf32> to vector<8x8xf32>
    %134 = arith.mulf %129, %133 : vector<8x8xf32>
    %cst_45 = arith.constant dense<0.000000e+00> : vector<8x8xf32>
    %135 = tpu.matmul %134, %120, %cst_45 {dimension_numbers = #tpu.dot_dimension_numbers<[1], [0], [0], [1], [0, 0, 1, 1], [], []>} : vector<8x8xf32>, vector<8x8xf32>, vector<8x8xf32> -> vector<8x8xf32>
    %136 = vector.extract_strided_slice %117 {offsets = [0, 8], sizes = [8, 8], strides = [1, 1]} : vector<8x96xf32> to vector<8x8xf32>
    %137 = vector.extract_strided_slice %117 {offsets = [0, 40], sizes = [8, 8], strides = [1, 1]} : vector<8x96xf32> to vector<8x8xf32>
    %138 = vector.extract_strided_slice %117 {offsets = [0, 72], sizes = [8, 8], strides = [1, 1]} : vector<8x96xf32> to vector<8x8xf32>
    %cst_46 = arith.constant dense<0.000000e+00> : vector<8x8xf32>
    %139 = tpu.matmul %136, %137, %cst_46 {dimension_numbers = #tpu.dot_dimension_numbers<[1], [1], [0], [0], [0, 0, 1, 0], [], []>} : vector<8x8xf32>, vector<8x8xf32>, vector<8x8xf32> -> vector<8x8xf32>
    %cst_47 = arith.constant 0.353553385 : f32
    %140 = vector.broadcast %cst_47 : f32 to vector<8x8xf32>
    %141 = arith.mulf %139, %140 : vector<8x8xf32>
    %142 = arith.addf %141, %42 : vector<8x8xf32>
    %cst_48 = arith.constant dense<0xFF800000> : vector<8xf32>
    %143 = vector.multi_reduction <maximumf>, %142, %cst_48 [1] : vector<8x8xf32> to vector<8xf32>
    %144 = vector.shape_cast %143 : vector<8xf32> to vector<8x1xf32>
    %145 = vector.broadcast %144 : vector<8x1xf32> to vector<8x8xf32>
    %146 = arith.subf %142, %145 : vector<8x8xf32>
    %147 = math.exp %146 : vector<8x8xf32>
    %cst_49 = arith.constant dense<0.000000e+00> : vector<8xf32>
    %148 = vector.multi_reduction <add>, %147, %cst_49 [1] : vector<8x8xf32> to vector<8xf32>
    %149 = vector.shape_cast %148 : vector<8xf32> to vector<8x1xf32>
    %150 = tpu.reciprocal %149 {approx = true} : vector<8x1xf32> -> vector<8x1xf32>
    %151 = vector.broadcast %150 : vector<8x1xf32> to vector<8x8xf32>
    %152 = arith.mulf %147, %151 : vector<8x8xf32>
    %cst_50 = arith.constant dense<0.000000e+00> : vector<8x8xf32>
    %153 = tpu.matmul %152, %138, %cst_50 {dimension_numbers = #tpu.dot_dimension_numbers<[1], [0], [0], [1], [0, 0, 1, 1], [], []>} : vector<8x8xf32>, vector<8x8xf32>, vector<8x8xf32> -> vector<8x8xf32>
    %154 = vector.extract_strided_slice %117 {offsets = [0, 16], sizes = [8, 8], strides = [1, 1]} : vector<8x96xf32> to vector<8x8xf32>
    %155 = vector.extract_strided_slice %117 {offsets = [0, 48], sizes = [8, 8], strides = [1, 1]} : vector<8x96xf32> to vector<8x8xf32>
    %156 = vector.extract_strided_slice %117 {offsets = [0, 80], sizes = [8, 8], strides = [1, 1]} : vector<8x96xf32> to vector<8x8xf32>
    %cst_51 = arith.constant dense<0.000000e+00> : vector<8x8xf32>
    %157 = tpu.matmul %154, %155, %cst_51 {dimension_numbers = #tpu.dot_dimension_numbers<[1], [1], [0], [0], [0, 0, 1, 0], [], []>} : vector<8x8xf32>, vector<8x8xf32>, vector<8x8xf32> -> vector<8x8xf32>
    %cst_52 = arith.constant 0.353553385 : f32
    %158 = vector.broadcast %cst_52 : f32 to vector<8x8xf32>
    %159 = arith.mulf %157, %158 : vector<8x8xf32>
    %160 = arith.addf %159, %42 : vector<8x8xf32>
    %cst_53 = arith.constant dense<0xFF800000> : vector<8xf32>
    %161 = vector.multi_reduction <maximumf>, %160, %cst_53 [1] : vector<8x8xf32> to vector<8xf32>
    %162 = vector.shape_cast %161 : vector<8xf32> to vector<8x1xf32>
    %163 = vector.broadcast %162 : vector<8x1xf32> to vector<8x8xf32>
    %164 = arith.subf %160, %163 : vector<8x8xf32>
    %165 = math.exp %164 : vector<8x8xf32>
    %cst_54 = arith.constant dense<0.000000e+00> : vector<8xf32>
    %166 = vector.multi_reduction <add>, %165, %cst_54 [1] : vector<8x8xf32> to vector<8xf32>
    %167 = vector.shape_cast %166 : vector<8xf32> to vector<8x1xf32>
    %168 = tpu.reciprocal %167 {approx = true} : vector<8x1xf32> -> vector<8x1xf32>
    %169 = vector.broadcast %168 : vector<8x1xf32> to vector<8x8xf32>
    %170 = arith.mulf %165, %169 : vector<8x8xf32>
    %cst_55 = arith.constant dense<0.000000e+00> : vector<8x8xf32>
    %171 = tpu.matmul %170, %156, %cst_55 {dimension_numbers = #tpu.dot_dimension_numbers<[1], [0], [0], [1], [0, 0, 1, 1], [], []>} : vector<8x8xf32>, vector<8x8xf32>, vector<8x8xf32> -> vector<8x8xf32>
    %172 = vector.extract_strided_slice %117 {offsets = [0, 24], sizes = [8, 8], strides = [1, 1]} : vector<8x96xf32> to vector<8x8xf32>
    %173 = vector.extract_strided_slice %117 {offsets = [0, 56], sizes = [8, 8], strides = [1, 1]} : vector<8x96xf32> to vector<8x8xf32>
    %174 = vector.extract_strided_slice %117 {offsets = [0, 88], sizes = [8, 8], strides = [1, 1]} : vector<8x96xf32> to vector<8x8xf32>
    %cst_56 = arith.constant dense<0.000000e+00> : vector<8x8xf32>
    %175 = tpu.matmul %172, %173, %cst_56 {dimension_numbers = #tpu.dot_dimension_numbers<[1], [1], [0], [0], [0, 0, 1, 0], [], []>} : vector<8x8xf32>, vector<8x8xf32>, vector<8x8xf32> -> vector<8x8xf32>
    %cst_57 = arith.constant 0.353553385 : f32
    %176 = vector.broadcast %cst_57 : f32 to vector<8x8xf32>
    %177 = arith.mulf %175, %176 : vector<8x8xf32>
    %178 = arith.addf %177, %42 : vector<8x8xf32>
    %cst_58 = arith.constant dense<0xFF800000> : vector<8xf32>
    %179 = vector.multi_reduction <maximumf>, %178, %cst_58 [1] : vector<8x8xf32> to vector<8xf32>
    %180 = vector.shape_cast %179 : vector<8xf32> to vector<8x1xf32>
    %181 = vector.broadcast %180 : vector<8x1xf32> to vector<8x8xf32>
    %182 = arith.subf %178, %181 : vector<8x8xf32>
    %183 = math.exp %182 : vector<8x8xf32>
    %cst_59 = arith.constant dense<0.000000e+00> : vector<8xf32>
    %184 = vector.multi_reduction <add>, %183, %cst_59 [1] : vector<8x8xf32> to vector<8xf32>
    %185 = vector.shape_cast %184 : vector<8xf32> to vector<8x1xf32>
    %186 = tpu.reciprocal %185 {approx = true} : vector<8x1xf32> -> vector<8x1xf32>
    %187 = vector.broadcast %186 : vector<8x1xf32> to vector<8x8xf32>
    %188 = arith.mulf %183, %187 : vector<8x8xf32>
    %cst_60 = arith.constant dense<0.000000e+00> : vector<8x8xf32>
    %189 = tpu.matmul %188, %174, %cst_60 {dimension_numbers = #tpu.dot_dimension_numbers<[1], [0], [0], [1], [0, 0, 1, 1], [], []>} : vector<8x8xf32>, vector<8x8xf32>, vector<8x8xf32> -> vector<8x8xf32>
    %190 = tpu.concatenate %135, %153, %171, %189 in 1 : vector<8x8xf32>, vector<8x8xf32>, vector<8x8xf32>, vector<8x8xf32> -> vector<8x32xf32>
    %191 = tpu.concatenate %116, %190 in 0 : vector<8x32xf32>, vector<8x32xf32> -> vector<16x32xf32>
    %c0_61 = arith.constant 0 : index
    %c0_62 = arith.constant 0 : index
    %c0_63 = arith.constant 0 : index
    %192 = vector.load %arg8[%c0_61, %c0_62, %c0_63] : memref<1x32x32xf32, #tpu.memory_space<vmem>>, vector<1x32x32xf32>
    %193 = vector.shape_cast %192 : vector<1x32x32xf32> to vector<32x32xf32>
    %cst_64 = arith.constant dense<0.000000e+00> : vector<16x32xf32>
    %194 = tpu.matmul %191, %193, %cst_64 {dimension_numbers = #tpu.dot_dimension_numbers<[1], [0], [0], [1], [0, 0, 1, 1], [], []>} : vector<16x32xf32>, vector<32x32xf32>, vector<16x32xf32> -> vector<16x32xf32>
    %195 = arith.addf %3, %194 : vector<16x32xf32>
    %c0_65 = arith.constant 0 : index
    %c0_66 = arith.constant 0 : index
    %c0_67 = arith.constant 0 : index
    %196 = vector.load %arg9[%c0_65, %c0_66, %c0_67] : memref<1x1x32xf32, #tpu.memory_space<vmem>>, vector<1x1x32xf32>
    %197 = vector.shape_cast %196 : vector<1x1x32xf32> to vector<1x32xf32>
    %198 = vector.broadcast %197 : vector<1x32xf32> to vector<16x32xf32>
    %199 = arith.addf %195, %198 : vector<16x32xf32>
    %c0_68 = arith.constant 0 : index
    %c0_69 = arith.constant 0 : index
    %c0_70 = arith.constant 0 : index
    %200 = vector.load %arg10[%c0_68, %c0_69, %c0_70] : memref<1x1x32xf32, #tpu.memory_space<vmem>>, vector<1x1x32xf32>
    %201 = vector.shape_cast %200 : vector<1x1x32xf32> to vector<1x32xf32>
    %c0_71 = arith.constant 0 : index
    %c0_72 = arith.constant 0 : index
    %c0_73 = arith.constant 0 : index
    %202 = vector.load %arg11[%c0_71, %c0_72, %c0_73] : memref<1x1x32xf32, #tpu.memory_space<vmem>>, vector<1x1x32xf32>
    %203 = vector.shape_cast %202 : vector<1x1x32xf32> to vector<1x32xf32>
    %cst_74 = arith.constant dense<0.000000e+00> : vector<16xf32>
    %204 = vector.multi_reduction <add>, %199, %cst_74 [1] : vector<16x32xf32> to vector<16xf32>
    %205 = vector.shape_cast %204 : vector<16xf32> to vector<16x1xf32>
    %cst_75 = arith.constant 3.200000e+01 : f32
    %206 = vector.broadcast %cst_75 : f32 to vector<16x1xf32>
    %207 = arith.divf %205, %206 : vector<16x1xf32>
    %208 = vector.broadcast %207 : vector<16x1xf32> to vector<16x32xf32>
    %209 = arith.subf %199, %208 : vector<16x32xf32>
    %210 = arith.mulf %209, %209 : vector<16x32xf32>
    %cst_76 = arith.constant dense<0.000000e+00> : vector<16xf32>
    %211 = vector.multi_reduction <add>, %210, %cst_76 [1] : vector<16x32xf32> to vector<16xf32>
    %212 = vector.shape_cast %211 : vector<16xf32> to vector<16x1xf32>
    %cst_77 = arith.constant 3.200000e+01 : f32
    %213 = vector.broadcast %cst_77 : f32 to vector<16x1xf32>
    %214 = arith.divf %212, %213 : vector<16x1xf32>
    %215 = vector.broadcast %207 : vector<16x1xf32> to vector<16x32xf32>
    %216 = arith.subf %199, %215 : vector<16x32xf32>
    %cst_78 = arith.constant 9.99999974E-6 : f32
    %217 = vector.broadcast %cst_78 : f32 to vector<16x1xf32>
    %218 = arith.addf %214, %217 : vector<16x1xf32>
    %219 = math.rsqrt %218 : vector<16x1xf32>
    %220 = vector.broadcast %219 : vector<16x1xf32> to vector<16x32xf32>
    %221 = arith.mulf %216, %220 : vector<16x32xf32>
    %222 = vector.broadcast %201 : vector<1x32xf32> to vector<16x32xf32>
    %223 = arith.mulf %221, %222 : vector<16x32xf32>
    %224 = vector.broadcast %203 : vector<1x32xf32> to vector<16x32xf32>
    %225 = arith.addf %223, %224 : vector<16x32xf32>
    %c0_79 = arith.constant 0 : index
    %c0_80 = arith.constant 0 : index
    %c0_81 = arith.constant 0 : index
    %226 = vector.load %arg12[%c0_79, %c0_80, %c0_81] : memref<1x32x128xf32, #tpu.memory_space<vmem>>, vector<1x32x128xf32>
    %227 = vector.shape_cast %226 : vector<1x32x128xf32> to vector<32x128xf32>
    %cst_82 = arith.constant dense<0.000000e+00> : vector<16x128xf32>
    %228 = tpu.matmul %225, %227, %cst_82 {dimension_numbers = #tpu.dot_dimension_numbers<[1], [0], [0], [1], [0, 0, 1, 1], [], []>} : vector<16x32xf32>, vector<32x128xf32>, vector<16x128xf32> -> vector<16x128xf32>
    %c0_83 = arith.constant 0 : index
    %c0_84 = arith.constant 0 : index
    %c0_85 = arith.constant 0 : index
    %229 = vector.load %arg13[%c0_83, %c0_84, %c0_85] : memref<1x1x128xf32, #tpu.memory_space<vmem>>, vector<1x1x128xf32>
    %230 = vector.shape_cast %229 : vector<1x1x128xf32> to vector<1x128xf32>
    %231 = vector.broadcast %230 : vector<1x128xf32> to vector<16x128xf32>
    %232 = arith.addf %228, %231 : vector<16x128xf32>
    %cst_86 = arith.constant 5.000000e-01 : f32
    %233 = vector.broadcast %cst_86 : f32 to vector<16x128xf32>
    %234 = arith.mulf %233, %232 : vector<16x128xf32>
    %cst_87 = arith.constant 4.471500e-02 : f32
    %235 = vector.broadcast %cst_87 : f32 to vector<16x128xf32>
    %236 = arith.mulf %235, %232 : vector<16x128xf32>
    %237 = arith.mulf %236, %232 : vector<16x128xf32>
    %238 = arith.mulf %237, %232 : vector<16x128xf32>
    %239 = arith.addf %232, %238 : vector<16x128xf32>
    %cst_88 = arith.constant 0.797884583 : f32
    %240 = vector.broadcast %cst_88 : f32 to vector<16x128xf32>
    %241 = arith.mulf %240, %239 : vector<16x128xf32>
    %242 = math.tanh %241 : vector<16x128xf32>
    %cst_89 = arith.constant 1.000000e+00 : f32
    %243 = vector.broadcast %cst_89 : f32 to vector<16x128xf32>
    %244 = arith.addf %243, %242 : vector<16x128xf32>
    %245 = arith.mulf %234, %244 : vector<16x128xf32>
    %c0_90 = arith.constant 0 : index
    %c0_91 = arith.constant 0 : index
    %c0_92 = arith.constant 0 : index
    %246 = vector.load %arg14[%c0_90, %c0_91, %c0_92] : memref<1x128x32xf32, #tpu.memory_space<vmem>>, vector<1x128x32xf32>
    %247 = vector.shape_cast %246 : vector<1x128x32xf32> to vector<128x32xf32>
    %cst_93 = arith.constant dense<0.000000e+00> : vector<16x32xf32>
    %248 = tpu.matmul %245, %247, %cst_93 {dimension_numbers = #tpu.dot_dimension_numbers<[1], [0], [0], [1], [0, 0, 1, 1], [], []>} : vector<16x128xf32>, vector<128x32xf32>, vector<16x32xf32> -> vector<16x32xf32>
    %249 = arith.addf %199, %248 : vector<16x32xf32>
    %c0_94 = arith.constant 0 : index
    %c0_95 = arith.constant 0 : index
    %c0_96 = arith.constant 0 : index
    %250 = vector.load %arg15[%c0_94, %c0_95, %c0_96] : memref<1x1x32xf32, #tpu.memory_space<vmem>>, vector<1x1x32xf32>
    %251 = vector.shape_cast %250 : vector<1x1x32xf32> to vector<1x32xf32>
    %252 = vector.broadcast %251 : vector<1x32xf32> to vector<16x32xf32>
    %253 = arith.addf %249, %252 : vector<16x32xf32>
    %c0_97 = arith.constant 0 : index
    %c0_98 = arith.constant 0 : index
    %254 = vector.load %arg20[%c0_97, %c0_98] : memref<16x32xf32, #tpu.memory_space<vmem>>, vector<16x32xf32>
    tpu.vector_store %arg20[%c0_97, %c0_98], %253 {strides = array<i32>} : memref<16x32xf32, #tpu.memory_space<vmem>>, vector<16x32xf32>,
    %c1_i32 = arith.constant 1 : i32
    %255 = arith.cmpi eq, %arg0, %c1_i32 : i32
    %256 = arith.extui %255 : i1 to i32
    %c0_i32_99 = arith.constant 0 : i32
    %257 = arith.cmpi ne, %256, %c0_i32_99 : i32
    scf.if %257 {
      %c0_100 = arith.constant 0 : index
      %c0_101 = arith.constant 0 : index
      %258 = vector.load %arg16[%c0_100, %c0_101] : memref<1x32xf32, #tpu.memory_space<vmem>>, vector<1x32xf32>
      %c0_102 = arith.constant 0 : index
      %c0_103 = arith.constant 0 : index
      %259 = vector.load %arg17[%c0_102, %c0_103] : memref<1x32xf32, #tpu.memory_space<vmem>>, vector<1x32xf32>
      %cst_104 = arith.constant dense<0.000000e+00> : vector<16xf32>
      %260 = vector.multi_reduction <add>, %253, %cst_104 [1] : vector<16x32xf32> to vector<16xf32>
      %261 = vector.shape_cast %260 : vector<16xf32> to vector<16x1xf32>
      %cst_105 = arith.constant 3.200000e+01 : f32
      %262 = vector.broadcast %cst_105 : f32 to vector<16x1xf32>
      %263 = arith.divf %261, %262 : vector<16x1xf32>
      %264 = vector.broadcast %263 : vector<16x1xf32> to vector<16x32xf32>
      %265 = arith.subf %253, %264 : vector<16x32xf32>
      %266 = arith.mulf %265, %265 : vector<16x32xf32>
      %cst_106 = arith.constant dense<0.000000e+00> : vector<16xf32>
      %267 = vector.multi_reduction <add>, %266, %cst_106 [1] : vector<16x32xf32> to vector<16xf32>
      %268 = vector.shape_cast %267 : vector<16xf32> to vector<16x1xf32>
      %cst_107 = arith.constant 3.200000e+01 : f32
      %269 = vector.broadcast %cst_107 : f32 to vector<16x1xf32>
      %270 = arith.divf %268, %269 : vector<16x1xf32>
      %271 = vector.broadcast %263 : vector<16x1xf32> to vector<16x32xf32>
      %272 = arith.subf %253, %271 : vector<16x32xf32>
      %cst_108 = arith.constant 9.99999974E-6 : f32
      %273 = vector.broadcast %cst_108 : f32 to vector<16x1xf32>
      %274 = arith.addf %270, %273 : vector<16x1xf32>
      %275 = math.rsqrt %274 : vector<16x1xf32>
      %276 = vector.broadcast %275 : vector<16x1xf32> to vector<16x32xf32>
      %277 = arith.mulf %272, %276 : vector<16x32xf32>
      %278 = vector.broadcast %258 : vector<1x32xf32> to vector<16x32xf32>
      %279 = arith.mulf %277, %278 : vector<16x32xf32>
      %280 = vector.broadcast %259 : vector<1x32xf32> to vector<16x32xf32>
      %281 = arith.addf %279, %280 : vector<16x32xf32>
      %c0_109 = arith.constant 0 : index
      %c0_110 = arith.constant 0 : index
      %282 = vector.load %arg18[%c0_109, %c0_110] : memref<32x128xf32, #tpu.memory_space<vmem>>, vector<32x128xf32>
      %cst_111 = arith.constant dense<0.000000e+00> : vector<16x128xf32>
      %283 = tpu.matmul %281, %282, %cst_111 {dimension_numbers = #tpu.dot_dimension_numbers<[1], [0], [0], [1], [0, 0, 1, 1], [], []>} : vector<16x32xf32>, vector<32x128xf32>, vector<16x128xf32> -> vector<16x128xf32>
      %c0_112 = arith.constant 0 : index
      %c0_113 = arith.constant 0 : index
      %284 = vector.load %arg19[%c0_112, %c0_113] : memref<16x128xf32, #tpu.memory_space<vmem>>, vector<16x128xf32>
      tpu.vector_store %arg19[%c0_112, %c0_113], %283 {strides = array<i32>} : memref<16x128xf32, #tpu.memory_space<vmem>>, vector<16x128xf32>,
    } else {
    }
    return
  }
  func.func @transform_0(%arg0: i32) -> (i32, i32) {
    %c0_i32 = arith.constant 0 : i32
    %c0_i32_0 = arith.constant 0 : i32
    %c0_i32_1 = arith.constant 0 : i32
    return %c0_i32, %c0_i32_0 : i32, i32
  }
  func.func @transform_1(%arg0: i32) -> (i32, i32) {
    %c0_i32 = arith.constant 0 : i32
    %c0_i32_0 = arith.constant 0 : i32
    %c0_i32_1 = arith.constant 0 : i32
    return %c0_i32, %c0_i32_0 : i32, i32
  }
  func.func @transform_2(%arg0: i32) -> (i32, i32) {
    %c0_i32 = arith.constant 0 : i32
    %c0_i32_0 = arith.constant 0 : i32
    %c0_i32_1 = arith.constant 0 : i32
    return %c0_i32, %c0_i32_0 : i32, i32
  }
  func.func @transform_3(%arg0: i32) -> (i32, i32, i32) {
    %c0_i32 = arith.constant 0 : i32
    %c0_i32_0 = arith.constant 0 : i32
    %c0_i32_1 = arith.constant 0 : i32
    return %arg0, %c0_i32, %c0_i32_0 : i32, i32, i32
  }
  func.func @transform_4(%arg0: i32) -> (i32, i32, i32) {
    %c0_i32 = arith.constant 0 : i32
    %c0_i32_0 = arith.constant 0 : i32
    %c0_i32_1 = arith.constant 0 : i32
    return %arg0, %c0_i32, %c0_i32_0 : i32, i32, i32
  }
  func.func @transform_5(%arg0: i32) -> (i32, i32, i32) {
    %c0_i32 = arith.constant 0 : i32
    %c0_i32_0 = arith.constant 0 : i32
    %c0_i32_1 = arith.constant 0 : i32
    return %arg0, %c0_i32, %c0_i32_0 : i32, i32, i32
  }
  func.func @transform_6(%arg0: i32) -> (i32, i32, i32) {
    %c0_i32 = arith.constant 0 : i32
    %c0_i32_0 = arith.constant 0 : i32
    %c0_i32_1 = arith.constant 0 : i32
    return %arg0, %c0_i32, %c0_i32_0 : i32, i32, i32
  }
  func.func @transform_7(%arg0: i32) -> (i32, i32, i32) {
    %c0_i32 = arith.constant 0 : i32
    %c0_i32_0 = arith.constant 0 : i32
    %c0_i32_1 = arith.constant 0 : i32
    return %arg0, %c0_i32, %c0_i32_0 : i32, i32, i32
  }
  func.func @transform_8(%arg0: i32) -> (i32, i32, i32) {
    %c0_i32 = arith.constant 0 : i32
    %c0_i32_0 = arith.constant 0 : i32
    %c0_i32_1 = arith.constant 0 : i32
    return %arg0, %c0_i32, %c0_i32_0 : i32, i32, i32
  }
  func.func @transform_9(%arg0: i32) -> (i32, i32, i32) {
    %c0_i32 = arith.constant 0 : i32
    %c0_i32_0 = arith.constant 0 : i32
    %c0_i32_1 = arith.constant 0 : i32
    return %arg0, %c0_i32, %c0_i32_0 : i32, i32, i32
  }
  func.func @transform_10(%arg0: i32) -> (i32, i32, i32) {
    %c0_i32 = arith.constant 0 : i32
    %c0_i32_0 = arith.constant 0 : i32
    %c0_i32_1 = arith.constant 0 : i32
    return %arg0, %c0_i32, %c0_i32_0 : i32, i32, i32
  }
  func.func @transform_11(%arg0: i32) -> (i32, i32, i32) {
    %c0_i32 = arith.constant 0 : i32
    %c0_i32_0 = arith.constant 0 : i32
    %c0_i32_1 = arith.constant 0 : i32
    return %arg0, %c0_i32, %c0_i32_0 : i32, i32, i32
  }
  func.func @transform_12(%arg0: i32) -> (i32, i32, i32) {
    %c0_i32 = arith.constant 0 : i32
    %c0_i32_0 = arith.constant 0 : i32
    %c0_i32_1 = arith.constant 0 : i32
    return %arg0, %c0_i32, %c0_i32_0 : i32, i32, i32
  }
  func.func @transform_13(%arg0: i32) -> (i32, i32, i32) {
    %c0_i32 = arith.constant 0 : i32
    %c0_i32_0 = arith.constant 0 : i32
    %c0_i32_1 = arith.constant 0 : i32
    return %arg0, %c0_i32, %c0_i32_0 : i32, i32, i32
  }
  func.func @transform_14(%arg0: i32) -> (i32, i32, i32) {
    %c0_i32 = arith.constant 0 : i32
    %c0_i32_0 = arith.constant 0 : i32
    %c0_i32_1 = arith.constant 0 : i32
    return %arg0, %c0_i32, %c0_i32_0 : i32, i32, i32
  }
  func.func @transform_15(%arg0: i32) -> (i32, i32) {
    %c0_i32 = arith.constant 0 : i32
    %c0_i32_0 = arith.constant 0 : i32
    %c0_i32_1 = arith.constant 0 : i32
    return %c0_i32, %c0_i32_0 : i32, i32
  }
  func.func @transform_16(%arg0: i32) -> (i32, i32) {
    %c0_i32 = arith.constant 0 : i32
    %c0_i32_0 = arith.constant 0 : i32
    %c0_i32_1 = arith.constant 0 : i32
    return %c0_i32, %c0_i32_0 : i32, i32
  }
  func.func @transform_17(%arg0: i32) -> (i32, i32) {
    %c0_i32 = arith.constant 0 : i32
    %c0_i32_0 = arith.constant 0 : i32
    %c0_i32_1 = arith.constant 0 : i32
    return %c0_i32, %c0_i32_0 : i32, i32
  }
  func.func @transform_18(%arg0: i32) -> (i32, i32) {
    %c0_i32 = arith.constant 0 : i32
    %c0_i32_0 = arith.constant 0 : i32
    %c0_i32_1 = arith.constant 0 : i32
    return %c0_i32, %c0_i32_0 : i32, i32
  }
}

</mosaic_0001>

<llo_original>
// kernel: gpt_forward.1
$region0: #{gpt_forward.1}
  #allocation0 [shape = 'u32[]', space=smem, size = 0x4, offset = 0x4, fixed_abs, tag = 'smem constant byte address 0x4 - core index']
  #allocation1 [shape = 'u32[144,128]{1,0:T(1,128)}', space=vmem, size = 0x12000, scoped, tag = 'internal scratch']
  #allocation2 [shape = 'f32[16,32]{1,0:T(8,128)}', space=vmem, size = 0x2000, scoped, tag = 'scratch operand']
  %s0 = inlined_call_operand.vmem [shape: s32[16,1], index: 0, kind: input, shape index: {}]
  %s1 = inlined_call_operand.vmem [shape: f32[128,32], index: 1, kind: input, shape index: {}]
  %s2 = inlined_call_operand.vmem [shape: f32[8,32], index: 2, kind: input, shape index: {}]
  %s3 = inlined_call_operand.vmem [shape: f32[2,1,32], index: 3, kind: input, shape index: {}]
  %s4 = inlined_call_operand.vmem [shape: f32[2,1,32], index: 4, kind: input, shape index: {}]
  %s5 = inlined_call_operand.vmem [shape: f32[2,32,96], index: 5, kind: input, shape index: {}]
  %s6 = inlined_call_operand.vmem [shape: f32[2,1,96], index: 6, kind: input, shape index: {}]
  %s7 = inlined_call_operand.vmem [shape: f32[2,32,32], index: 7, kind: input, shape index: {}]
  %s8 = inlined_call_operand.vmem [shape: f32[2,1,32], index: 8, kind: input, shape index: {}]
  %s9 = inlined_call_operand.vmem [shape: f32[2,1,32], index: 9, kind: input, shape index: {}]
  %s10 = inlined_call_operand.vmem [shape: f32[2,1,32], index: 10, kind: input, shape index: {}]
  %s11 = inlined_call_operand.vmem [shape: f32[2,32,128], index: 11, kind: input, shape index: {}]
  %s12 = inlined_call_operand.vmem [shape: f32[2,1,128], index: 12, kind: input, shape index: {}]
  %s13 = inlined_call_operand.vmem [shape: f32[2,128,32], index: 13, kind: input, shape index: {}]
  %s14 = inlined_call_operand.vmem [shape: f32[2,1,32], index: 14, kind: input, shape index: {}]
  %s15 = inlined_call_operand.vmem [shape: f32[1,32], index: 15, kind: input, shape index: {}]
  %s16 = inlined_call_operand.vmem [shape: f32[1,32], index: 16, kind: input, shape index: {}]
  %s17 = inlined_call_operand.vmem [shape: f32[32,128], index: 17, kind: input, shape index: {}]
  %s18 = inlined_call_operand.hbm [shape: f32[16,128], index: 18, kind: output, shape index: {}]
  %s19 = sld [smem:[#allocation0]]
  $region113: #{gpt_forward.1} parent=0
    _
  %s21 = ssub.s32 1, %s19
  %s22 = scalar_select 0, %s21, %s19
  $region1: #{gpt_forward.1} parent=0
    #allocation3 [shape = 'u8[8192]{0}', space=vmem, size = 0x2000, scoped, tag = 'output window, operand 0, single buffered']
    #allocation4 [shape = 's32[2]{0}', space=sflag, size = 0x8, scoped, tag = 'scoped memory for gpt_forward.1']
    %23 = vsyncpa [#allocation4], 0
    loop: start=0, step=1, limit=4
    $region2: #{gpt_forward.1} parent=1 // loop_pre_header
      _
    $region3: #{gpt_forward.1} parent=1 // loop_header
      %s25 = sphi 0, %s29
      %p26 = scmp.ge.s32.totalorder %s25, 4
      %s33 = sphi 0, %s33
      %s35 = sphi 0, %s33
      %s36 = sphi 0, %s35
      %s50 = sphi 0, %s36
      %s54 = sphi 0, %s54
      %s56 = sphi 0, %s54
      %s57 = sphi 0, %s56
      %s71 = sphi 0, %s57
      %s75 = sphi 0, %s75
      %s77 = sphi 0, %s75
      %s78 = sphi 0, %s77
      %s92 = sphi 0, %s78
      %s98 = sphi 0, %s100
      %s101 = sphi 0, %s98
      %s102 = sphi 0, %s101
      %s118 = sphi 0, %s102
      %s124 = sphi 0, %s126
      %s127 = sphi 0, %s124
      %s128 = sphi 0, %s127
      %s144 = sphi 0, %s128
      %s150 = sphi 0, %s152
      %s153 = sphi 0, %s150
      %s154 = sphi 0, %s153
      %s170 = sphi 0, %s154
      %s176 = sphi 0, %s178
      %s179 = sphi 0, %s176
      %s180 = sphi 0, %s179
      %s196 = sphi 0, %s180
      %s202 = sphi 0, %s204
      %s205 = sphi 0, %s202
      %s206 = sphi 0, %s205
      %s222 = sphi 0, %s206
      %s228 = sphi 0, %s230
      %s231 = sphi 0, %s228
      %s232 = sphi 0, %s231
      %s248 = sphi 0, %s232
      %s254 = sphi 0, %s256
      %s257 = sphi 0, %s254
      %s258 = sphi 0, %s257
      %s274 = sphi 0, %s258
      %s280 = sphi 0, %s282
      %s283 = sphi 0, %s280
      %s284 = sphi 0, %s283
      %s300 = sphi 0, %s284
      %s306 = sphi 0, %s308
      %s309 = sphi 0, %s306
      %s310 = sphi 0, %s309
      %s326 = sphi 0, %s310
      %s332 = sphi 0, %s334
      %s335 = sphi 0, %s332
      %s336 = sphi 0, %s335
      %s352 = sphi 0, %s336
      %s358 = sphi 0, %s360
      %s361 = sphi 0, %s358
      %s362 = sphi 0, %s361
      %s378 = sphi 0, %s362
      %s384 = sphi 0, %s386
      %s387 = sphi 0, %s384
      %s388 = sphi 0, %s387
      %s404 = sphi 0, %s388
      %s408 = sphi 0, %s408
      %s410 = sphi 0, %s408
      %s411 = sphi 0, %s410
      %s425 = sphi 0, %s411
      %s429 = sphi 0, %s429
      %s431 = sphi 0, %s429
      %s432 = sphi 0, %s431
      %s446 = sphi 0, %s432
      %s450 = sphi 0, %s450
      %s452 = sphi 0, %s450
      %s453 = sphi 0, %s452
      %s467 = sphi 0, %s453
      %s471 = sphi 0, %s471
      %s473 = sphi 0, %s471
      %s474 = sphi 0, %s473
      %s488 = sphi 0, %s474
    $region4: #{gpt_forward.1} parent=1 // loop_header_branch
      %28 = sbr.rel (%p26) target = $region8
    $region5: #{gpt_forward.1} parent=1 // loop_body
      %s30 = ssub.s32 %s25, 1
      %s31 = ssub.s32 %s25, 2
      %s32 = sadd.s32 %s25, 1
      %s34 = sadd.s32 %s33, 1
      %p37 = scmp.eq.s32.totalorder %s25, 1
      %p38 = scmp.ne.s32.totalorder %s33, %s35
      %p39 = scmp.eq.s32.totalorder %s25, 0
      %p40 = por %p38, %p39
      %p41 = scmp.ne.s32.totalorder %s33, %s35
      %p42 = scmp.eq.s32.totalorder %s30, 1
      %p43 = por %p41, %p42
      %p44 = scmp.ne.s32.totalorder %s35, %s36
      %p45 = scmp.eq.s32.totalorder %s30, 0
      %p46 = por %p44, %p45
      %p47 = scmp.ne.s32.totalorder %s35, %s36
      %p48 = scmp.eq.s32.totalorder %s31, 1
      %p49 = por %p47, %p48
      %p51 = scmp.ne.s32.totalorder %s36, %s50
      %p52 = scmp.eq.s32.totalorder %s31, 0
      %p53 = por %p51, %p52
      %s55 = sadd.s32 %s54, 1
      %p58 = scmp.eq.s32.totalorder %s25, 1
      %p59 = scmp.ne.s32.totalorder %s54, %s56
      %p60 = scmp.eq.s32.totalorder %s25, 0
      %p61 = por %p59, %p60
      %p62 = scmp.ne.s32.totalorder %s54, %s56
      %p63 = scmp.eq.s32.totalorder %s30, 1
      %p64 = por %p62, %p63
      %p65 = scmp.ne.s32.totalorder %s56, %s57
      %p66 = scmp.eq.s32.totalorder %s30, 0
      %p67 = por %p65, %p66
      %p68 = scmp.ne.s32.totalorder %s56, %s57
      %p69 = scmp.eq.s32.totalorder %s31, 1
      %p70 = por %p68, %p69
      %p72 = scmp.ne.s32.totalorder %s57, %s71
      %p73 = scmp.eq.s32.totalorder %s31, 0
      %p74 = por %p72, %p73
      %s76 = sadd.s32 %s75, 1
      %p79 = scmp.eq.s32.totalorder %s25, 1
      %p80 = scmp.ne.s32.totalorder %s75, %s77
      %p81 = scmp.eq.s32.totalorder %s25, 0
      %p82 = por %p80, %p81
      %p83 = scmp.ne.s32.totalorder %s75, %s77
      %p84 = scmp.eq.s32.totalorder %s30, 1
      %p85 = por %p83, %p84
      %p86 = scmp.ne.s32.totalorder %s77, %s78
      %p87 = scmp.eq.s32.totalorder %s30, 0
      %p88 = por %p86, %p87
      %p89 = scmp.ne.s32.totalorder %s77, %s78
      %p90 = scmp.eq.s32.totalorder %s31, 1
      %p91 = por %p89, %p90
      %p93 = scmp.ne.s32.totalorder %s78, %s92
      %p94 = scmp.eq.s32.totalorder %s31, 0
      %p95 = por %p93, %p94
      %s96 = ssub.s32 %s25, %s32
      %p97 = scmp.eq.s32.totalorder %s96, 0
      %s99 = sadd.s32 %s98, 1
      %s100 = scalar_select %p97, %s98, %s99
      %p103 = pneg %p97
      %p104 = scmp.eq.s32.totalorder %s25, 1
      %p105 = por %p103, %p104
      %p106 = scmp.ne.s32.totalorder %s98, %s101
      %p107 = scmp.eq.s32.totalorder %s25, 0
      %p108 = por %p106, %p107
      %p109 = scmp.ne.s32.totalorder %s98, %s101
      %p110 = scmp.eq.s32.totalorder %s30, 1
      %p111 = por %p109, %p110
      %p112 = scmp.ne.s32.totalorder %s101, %s102
      %p113 = scmp.eq.s32.totalorder %s30, 0
      %p114 = por %p112, %p113
      %p115 = scmp.ne.s32.totalorder %s101, %s102
      %p116 = scmp.eq.s32.totalorder %s31, 1
      %p117 = por %p115, %p116
      %p119 = scmp.ne.s32.totalorder %s102, %s118
      %p120 = scmp.eq.s32.totalorder %s31, 0
      %p121 = por %p119, %p120
      %s122 = ssub.s32 %s25, %s32
      %p123 = scmp.eq.s32.totalorder %s122, 0
      %s125 = sadd.s32 %s124, 1
      %s126 = scalar_select %p123, %s124, %s125
      %p129 = pneg %p123
      %p130 = scmp.eq.s32.totalorder %s25, 1
      %p131 = por %p129, %p130
      %p132 = scmp.ne.s32.totalorder %s124, %s127
      %p133 = scmp.eq.s32.totalorder %s25, 0
      %p134 = por %p132, %p133
      %p135 = scmp.ne.s32.totalorder %s124, %s127
      %p136 = scmp.eq.s32.totalorder %s30, 1
      %p137 = por %p135, %p136
      %p138 = scmp.ne.s32.totalorder %s127, %s128
      %p139 = scmp.eq.s32.totalorder %s30, 0
      %p140 = por %p138, %p139
      %p141 = scmp.ne.s32.totalorder %s127, %s128
      %p142 = scmp.eq.s32.totalorder %s31, 1
      %p143 = por %p141, %p142
      %p145 = scmp.ne.s32.totalorder %s128, %s144
      %p146 = scmp.eq.s32.totalorder %s31, 0
      %p147 = por %p145, %p146
      %s148 = ssub.s32 %s25, %s32
      %p149 = scmp.eq.s32.totalorder %s148, 0
      %s151 = sadd.s32 %s150, 1
      %s152 = scalar_select %p149, %s150, %s151
      %p155 = pneg %p149
      %p156 = scmp.eq.s32.totalorder %s25, 1
      %p157 = por %p155, %p156
      %p158 = scmp.ne.s32.totalorder %s150, %s153
      %p159 = scmp.eq.s32.totalorder %s25, 0
      %p160 = por %p158, %p159
      %p161 = scmp.ne.s32.totalorder %s150, %s153
      %p162 = scmp.eq.s32.totalorder %s30, 1
      %p163 = por %p161, %p162
      %p164 = scmp.ne.s32.totalorder %s153, %s154
      %p165 = scmp.eq.s32.totalorder %s30, 0
      %p166 = por %p164, %p165
      %p167 = scmp.ne.s32.totalorder %s153, %s154
      %p168 = scmp.eq.s32.totalorder %s31, 1
      %p169 = por %p167, %p168
      %p171 = scmp.ne.s32.totalorder %s154, %s170
      %p172 = scmp.eq.s32.totalorder %s31, 0
      %p173 = por %p171, %p172
      %s174 = ssub.s32 %s25, %s32
      %p175 = scmp.eq.s32.totalorder %s174, 0
      %s177 = sadd.s32 %s176, 1
      %s178 = scalar_select %p175, %s176, %s177
      %p181 = pneg %p175
      %p182 = scmp.eq.s32.totalorder %s25, 1
      %p183 = por %p181, %p182
      %p184 = scmp.ne.s32.totalorder %s176, %s179
      %p185 = scmp.eq.s32.totalorder %s25, 0
      %p186 = por %p184, %p185
      %p187 = scmp.ne.s32.totalorder %s176, %s179
      %p188 = scmp.eq.s32.totalorder %s30, 1
      %p189 = por %p187, %p188
      %p190 = scmp.ne.s32.totalorder %s179, %s180
      %p191 = scmp.eq.s32.totalorder %s30, 0
      %p192 = por %p190, %p191
      %p193 = scmp.ne.s32.totalorder %s179, %s180
      %p194 = scmp.eq.s32.totalorder %s31, 1
      %p195 = por %p193, %p194
      %p197 = scmp.ne.s32.totalorder %s180, %s196
      %p198 = scmp.eq.s32.totalorder %s31, 0
      %p199 = por %p197, %p198
      %s200 = ssub.s32 %s25, %s32
      %p201 = scmp.eq.s32.totalorder %s200, 0
      %s203 = sadd.s32 %s202, 1
      %s204 = scalar_select %p201, %s202, %s203
      %p207 = pneg %p201
      %p208 = scmp.eq.s32.totalorder %s25, 1
      %p209 = por %p207, %p208
      %p210 = scmp.ne.s32.totalorder %s202, %s205
      %p211 = scmp.eq.s32.totalorder %s25, 0
      %p212 = por %p210, %p211
      %p213 = scmp.ne.s32.totalorder %s202, %s205
      %p214 = scmp.eq.s32.totalorder %s30, 1
      %p215 = por %p213, %p214
      %p216 = scmp.ne.s32.totalorder %s205, %s206
      %p217 = scmp.eq.s32.totalorder %s30, 0
      %p218 = por %p216, %p217
      %p219 = scmp.ne.s32.totalorder %s205, %s206
      %p220 = scmp.eq.s32.totalorder %s31, 1
      %p221 = por %p219, %p220
      %p223 = scmp.ne.s32.totalorder %s206, %s222
      %p224 = scmp.eq.s32.totalorder %s31, 0
      %p225 = por %p223, %p224
      %s226 = ssub.s32 %s25, %s32
      %p227 = scmp.eq.s32.totalorder %s226, 0
      %s229 = sadd.s32 %s228, 1
      %s230 = scalar_select %p227, %s228, %s229
      %p233 = pneg %p227
      %p234 = scmp.eq.s32.totalorder %s25, 1
      %p235 = por %p233, %p234
      %p236 = scmp.ne.s32.totalorder %s228, %s231
      %p237 = scmp.eq.s32.totalorder %s25, 0
      %p238 = por %p236, %p237
      %p239 = scmp.ne.s32.totalorder %s228, %s231
      %p240 = scmp.eq.s32.totalorder %s30, 1
      %p241 = por %p239, %p240
      %p242 = scmp.ne.s32.totalorder %s231, %s232
      %p243 = scmp.eq.s32.totalorder %s30, 0
      %p244 = por %p242, %p243
      %p245 = scmp.ne.s32.totalorder %s231, %s232
      %p246 = scmp.eq.s32.totalorder %s31, 1
      %p247 = por %p245, %p246
      %p249 = scmp.ne.s32.totalorder %s232, %s248
      %p250 = scmp.eq.s32.totalorder %s31, 0
      %p251 = por %p249, %p250
      %s252 = ssub.s32 %s25, %s32
      %p253 = scmp.eq.s32.totalorder %s252, 0
      %s255 = sadd.s32 %s254, 1
      %s256 = scalar_select %p253, %s254, %s255
      %p259 = pneg %p253
      %p260 = scmp.eq.s32.totalorder %s25, 1
      %p261 = por %p259, %p260
      %p262 = scmp.ne.s32.totalorder %s254, %s257
      %p263 = scmp.eq.s32.totalorder %s25, 0
      %p264 = por %p262, %p263
      %p265 = scmp.ne.s32.totalorder %s254, %s257
      %p266 = scmp.eq.s32.totalorder %s30, 1
      %p267 = por %p265, %p266
      %p268 = scmp.ne.s32.totalorder %s257, %s258
      %p269 = scmp.eq.s32.totalorder %s30, 0
      %p270 = por %p268, %p269
      %p271 = scmp.ne.s32.totalorder %s257, %s258
      %p272 = scmp.eq.s32.totalorder %s31, 1
      %p273 = por %p271, %p272
      %p275 = scmp.ne.s32.totalorder %s258, %s274
      %p276 = scmp.eq.s32.totalorder %s31, 0
      %p277 = por %p275, %p276
      %s278 = ssub.s32 %s25, %s32
      %p279 = scmp.eq.s32.totalorder %s278, 0
      %s281 = sadd.s32 %s280, 1
      %s282 = scalar_select %p279, %s280, %s281
      %p285 = pneg %p279
      %p286 = scmp.eq.s32.totalorder %s25, 1
      %p287 = por %p285, %p286
      %p288 = scmp.ne.s32.totalorder %s280, %s283
      %p289 = scmp.eq.s32.totalorder %s25, 0
      %p290 = por %p288, %p289
      %p291 = scmp.ne.s32.totalorder %s280, %s283
      %p292 = scmp.eq.s32.totalorder %s30, 1
      %p293 = por %p291, %p292
      %p294 = scmp.ne.s32.totalorder %s283, %s284
      %p295 = scmp.eq.s32.totalorder %s30, 0
      %p296 = por %p294, %p295
      %p297 = scmp.ne.s32.totalorder %s283, %s284
      %p298 = scmp.eq.s32.totalorder %s31, 1
      %p299 = por %p297, %p298
      %p301 = scmp.ne.s32.totalorder %s284, %s300
      %p302 = scmp.eq.s32.totalorder %s31, 0
      %p303 = por %p301, %p302
      %s304 = ssub.s32 %s25, %s32
      %p305 = scmp.eq.s32.totalorder %s304, 0
      %s307 = sadd.s32 %s306, 1
      %s308 = scalar_select %p305, %s306, %s307
      %p311 = pneg %p305
      %p312 = scmp.eq.s32.totalorder %s25, 1
      %p313 = por %p311, %p312
      %p314 = scmp.ne.s32.totalorder %s306, %s309
      %p315 = scmp.eq.s32.totalorder %s25, 0
      %p316 = por %p314, %p315
      %p317 = scmp.ne.s32.totalorder %s306, %s309
      %p318 = scmp.eq.s32.totalorder %s30, 1
      %p319 = por %p317, %p318
      %p320 = scmp.ne.s32.totalorder %s309, %s310
      %p321 = scmp.eq.s32.totalorder %s30, 0
      %p322 = por %p320, %p321
      %p323 = scmp.ne.s32.totalorder %s309, %s310
      %p324 = scmp.eq.s32.totalorder %s31, 1
      %p325 = por %p323, %p324
      %p327 = scmp.ne.s32.totalorder %s310, %s326
      %p328 = scmp.eq.s32.totalorder %s31, 0
      %p329 = por %p327, %p328
      %s330 = ssub.s32 %s25, %s32
      %p331 = scmp.eq.s32.totalorder %s330, 0
      %s333 = sadd.s32 %s332, 1
      %s334 = scalar_select %p331, %s332, %s333
      %p337 = pneg %p331
      %p338 = scmp.eq.s32.totalorder %s25, 1
      %p339 = por %p337, %p338
      %p340 = scmp.ne.s32.totalorder %s332, %s335
      %p341 = scmp.eq.s32.totalorder %s25, 0
      %p342 = por %p340, %p341
      %p343 = scmp.ne.s32.totalorder %s332, %s335
      %p344 = scmp.eq.s32.totalorder %s30, 1
      %p345 = por %p343, %p344
      %p346 = scmp.ne.s32.totalorder %s335, %s336
      %p347 = scmp.eq.s32.totalorder %s30, 0
      %p348 = por %p346, %p347
      %p349 = scmp.ne.s32.totalorder %s335, %s336
      %p350 = scmp.eq.s32.totalorder %s31, 1
      %p351 = por %p349, %p350
      %p353 = scmp.ne.s32.totalorder %s336, %s352
      %p354 = scmp.eq.s32.totalorder %s31, 0
      %p355 = por %p353, %p354
      %s356 = ssub.s32 %s25, %s32
      %p357 = scmp.eq.s32.totalorder %s356, 0
      %s359 = sadd.s32 %s358, 1
      %s360 = scalar_select %p357, %s358, %s359
      %p363 = pneg %p357
      %p364 = scmp.eq.s32.totalorder %s25, 1
      %p365 = por %p363, %p364
      %p366 = scmp.ne.s32.totalorder %s358, %s361
      %p367 = scmp.eq.s32.totalorder %s25, 0
      %p368 = por %p366, %p367
      %p369 = scmp.ne.s32.totalorder %s358, %s361
      %p370 = scmp.eq.s32.totalorder %s30, 1
      %p371 = por %p369, %p370
      %p372 = scmp.ne.s32.totalorder %s361, %s362
      %p373 = scmp.eq.s32.totalorder %s30, 0
      %p374 = por %p372, %p373
      %p375 = scmp.ne.s32.totalorder %s361, %s362
      %p376 = scmp.eq.s32.totalorder %s31, 1
      %p377 = por %p375, %p376
      %p379 = scmp.ne.s32.totalorder %s362, %s378
      %p380 = scmp.eq.s32.totalorder %s31, 0
      %p381 = por %p379, %p380
      %s382 = ssub.s32 %s25, %s32
      %p383 = scmp.eq.s32.totalorder %s382, 0
      %s385 = sadd.s32 %s384, 1
      %s386 = scalar_select %p383, %s384, %s385
      %p389 = pneg %p383
      %p390 = scmp.eq.s32.totalorder %s25, 1
      %p391 = por %p389, %p390
      %p392 = scmp.ne.s32.totalorder %s384, %s387
      %p393 = scmp.eq.s32.totalorder %s25, 0
      %p394 = por %p392, %p393
      %p395 = scmp.ne.s32.totalorder %s384, %s387
      %p396 = scmp.eq.s32.totalorder %s30, 1
      %p397 = por %p395, %p396
      %p398 = scmp.ne.s32.totalorder %s387, %s388
      %p399 = scmp.eq.s32.totalorder %s30, 0
      %p400 = por %p398, %p399
      %p401 = scmp.ne.s32.totalorder %s387, %s388
      %p402 = scmp.eq.s32.totalorder %s31, 1
      %p403 = por %p401, %p402
      %p405 = scmp.ne.s32.totalorder %s388, %s404
      %p406 = scmp.eq.s32.totalorder %s31, 0
      %p407 = por %p405, %p406
      %s409 = sadd.s32 %s408, 1
      %p412 = scmp.eq.s32.totalorder %s25, 1
      %p413 = scmp.ne.s32.totalorder %s408, %s410
      %p414 = scmp.eq.s32.totalorder %s25, 0
      %p415 = por %p413, %p414
      %p416 = scmp.ne.s32.totalorder %s408, %s410
      %p417 = scmp.eq.s32.totalorder %s30, 1
      %p418 = por %p416, %p417
      %p419 = scmp.ne.s32.totalorder %s410, %s411
      %p420 = scmp.eq.s32.totalorder %s30, 0
      %p421 = por %p419, %p420
      %p422 = scmp.ne.s32.totalorder %s410, %s411
      %p423 = scmp.eq.s32.totalorder %s31, 1
      %p424 = por %p422, %p423
      %p426 = scmp.ne.s32.totalorder %s411, %s425
      %p427 = scmp.eq.s32.totalorder %s31, 0
      %p428 = por %p426, %p427
      %s430 = sadd.s32 %s429, 1
      %p433 = scmp.eq.s32.totalorder %s25, 1
      %p434 = scmp.ne.s32.totalorder %s429, %s431
      %p435 = scmp.eq.s32.totalorder %s25, 0
      %p436 = por %p434, %p435
      %p437 = scmp.ne.s32.totalorder %s429, %s431
      %p438 = scmp.eq.s32.totalorder %s30, 1
      %p439 = por %p437, %p438
      %p440 = scmp.ne.s32.totalorder %s431, %s432
      %p441 = scmp.eq.s32.totalorder %s30, 0
      %p442 = por %p440, %p441
      %p443 = scmp.ne.s32.totalorder %s431, %s432
      %p444 = scmp.eq.s32.totalorder %s31, 1
      %p445 = por %p443, %p444
      %p447 = scmp.ne.s32.totalorder %s432, %s446
      %p448 = scmp.eq.s32.totalorder %s31, 0
      %p449 = por %p447, %p448
      %s451 = sadd.s32 %s450, 1
      %p454 = scmp.eq.s32.totalorder %s25, 1
      %p455 = scmp.ne.s32.totalorder %s450, %s452
      %p456 = scmp.eq.s32.totalorder %s25, 0
      %p457 = por %p455, %p456
      %p458 = scmp.ne.s32.totalorder %s450, %s452
      %p459 = scmp.eq.s32.totalorder %s30, 1
      %p460 = por %p458, %p459
      %p461 = scmp.ne.s32.totalorder %s452, %s453
      %p462 = scmp.eq.s32.totalorder %s30, 0
      %p463 = por %p461, %p462
      %p464 = scmp.ne.s32.totalorder %s452, %s453
      %p465 = scmp.eq.s32.totalorder %s31, 1
      %p466 = por %p464, %p465
      %p468 = scmp.ne.s32.totalorder %s453, %s467
      %p469 = scmp.eq.s32.totalorder %s31, 0
      %p470 = por %p468, %p469
      %s472 = sadd.s32 %s471, 1
      %p475 = scmp.eq.s32.totalorder %s25, 1
      %p476 = scmp.ne.s32.totalorder %s471, %s473
      %p477 = scmp.eq.s32.totalorder %s25, 0
      %p478 = por %p476, %p477
      %p479 = scmp.ne.s32.totalorder %s471, %s473
      %p480 = scmp.eq.s32.totalorder %s30, 1
      %p481 = por %p479, %p480
      %p482 = scmp.ne.s32.totalorder %s473, %s474
      %p483 = scmp.eq.s32.totalorder %s30, 0
      %p484 = por %p482, %p483
      %p485 = scmp.ne.s32.totalorder %s473, %s474
      %p486 = scmp.eq.s32.totalorder %s31, 1
      %p487 = por %p485, %p486
      %p489 = scmp.ne.s32.totalorder %s474, %s488
      %p490 = scmp.eq.s32.totalorder %s31, 0
      %p491 = por %p489, %p490
      %p492 = scmp.le.s32.totalorder 1, %s25
      %p493 = scmp.lt.s32.totalorder %s25, 3
      %p494 = pnand %p492, %p493
      %p495 = pneg %p494
      // Predicated region
      $region9: #{gpt_forward.1} parent=5 // pred_check
        _
      $region10: #{gpt_forward.1} parent=5 // pred_check_branch
        %497 = sbr.rel (%p494) target = $region12
      $region11: #{gpt_forward.1} parent=5 // pred_region
        %s498 = ssub.s32 %s25, 1
        // Predicated region
        $region13: #{gpt_forward.1} parent=11 // pred_check
          %p499 = pneg %p46
        $region14: #{gpt_forward.1} parent=11 // pred_check_branch
          %501 = sbr.rel (%p499) target = $region16
        $region15: #{gpt_forward.1} parent=11 // pred_region
          _
        $region16: #{gpt_forward.1} parent=11 // pred_fallthru
          _
        // Predicated region
        $region17: #{gpt_forward.1} parent=11 // pred_check
          %p502 = pneg %p67
        $region18: #{gpt_forward.1} parent=11 // pred_check_branch
          %504 = sbr.rel (%p502) target = $region20
        $region19: #{gpt_forward.1} parent=11 // pred_region
          _
        $region20: #{gpt_forward.1} parent=11 // pred_fallthru
          _
        // Predicated region
        $region21: #{gpt_forward.1} parent=11 // pred_check
          %p505 = pneg %p88
        $region22: #{gpt_forward.1} parent=11 // pred_check_branch
          %507 = sbr.rel (%p505) target = $region24
        $region23: #{gpt_forward.1} parent=11 // pred_region
          _
        $region24: #{gpt_forward.1} parent=11 // pred_fallthru
          _
        // Predicated region
        $region25: #{gpt_forward.1} parent=11 // pred_check
          %p508 = pneg %p421
        $region26: #{gpt_forward.1} parent=11 // pred_check_branch
          %510 = sbr.rel (%p508) target = $region28
        $region27: #{gpt_forward.1} parent=11 // pred_region
          _
        $region28: #{gpt_forward.1} parent=11 // pred_fallthru
          _
        // Predicated region
        $region29: #{gpt_forward.1} parent=11 // pred_check
          %p511 = pneg %p442
        $region30: #{gpt_forward.1} parent=11 // pred_check_branch
          %513 = sbr.rel (%p511) target = $region32
        $region31: #{gpt_forward.1} parent=11 // pred_region
          _
        $region32: #{gpt_forward.1} parent=11 // pred_fallthru
          _
        // Predicated region
        $region33: #{gpt_forward.1} parent=11 // pred_check
          %p514 = pneg %p463
        $region34: #{gpt_forward.1} parent=11 // pred_check_branch
          %516 = sbr.rel (%p514) target = $region36
        $region35: #{gpt_forward.1} parent=11 // pred_region
          _
        $region36: #{gpt_forward.1} parent=11 // pred_fallthru
          _
      $region12: #{gpt_forward.1} parent=5 // pred_fallthru
        _
      %p517 = scmp.lt.s32.totalorder %s25, 2
      // Predicated region
      $region37: #{gpt_forward.1} parent=5 // pred_check
        %p518 = pneg %p517
      $region38: #{gpt_forward.1} parent=5 // pred_check_branch
        %520 = sbr.rel (%p518) target = $region40
      $region39: #{gpt_forward.1} parent=5 // pred_region
        // Predicated region
        $region41: #{gpt_forward.1} parent=39 // pred_check
          %p521 = pneg %p108
        $region42: #{gpt_forward.1} parent=39 // pred_check_branch
          %523 = sbr.rel (%p521) target = $region44
        $region43: #{gpt_forward.1} parent=39 // pred_region
          %p524 = scmp.lt.s32.totalorder %s25, 1
          %s525 = scalar_select %p524, %s25, 1
          %s526 = scalar_lea.vmem %s3, %s525
        $region44: #{gpt_forward.1} parent=39 // pred_fallthru
          _
        // Predicated region
        $region45: #{gpt_forward.1} parent=39 // pred_check
          %p527 = pneg %p134
        $region46: #{gpt_forward.1} parent=39 // pred_check_branch
          %529 = sbr.rel (%p527) target = $region48
        $region47: #{gpt_forward.1} parent=39 // pred_region
          %p530 = scmp.lt.s32.totalorder %s25, 1
          %s531 = scalar_select %p530, %s25, 1
          %s532 = scalar_lea.vmem %s4, %s531
        $region48: #{gpt_forward.1} parent=39 // pred_fallthru
          _
        // Predicated region
        $region49: #{gpt_forward.1} parent=39 // pred_check
          %p533 = pneg %p160
        $region50: #{gpt_forward.1} parent=39 // pred_check_branch
          %535 = sbr.rel (%p533) target = $region52
        $region51: #{gpt_forward.1} parent=39 // pred_region
          %p536 = scmp.lt.s32.totalorder %s25, 1
          %s537 = scalar_select %p536, %s25, 1
          %s538 = smul.addr %s537, 4
          %s539 = smul.addr %s538, 8
          %s540 = scalar_lea.vmem %s5, %s539
        $region52: #{gpt_forward.1} parent=39 // pred_fallthru
          _
        // Predicated region
        $region53: #{gpt_forward.1} parent=39 // pred_check
          %p541 = pneg %p186
        $region54: #{gpt_forward.1} parent=39 // pred_check_branch
          %543 = sbr.rel (%p541) target = $region56
        $region55: #{gpt_forward.1} parent=39 // pred_region
          %p544 = scmp.lt.s32.totalorder %s25, 1
          %s545 = scalar_select %p544, %s25, 1
          %s546 = scalar_lea.vmem %s6, %s545
        $region56: #{gpt_forward.1} parent=39 // pred_fallthru
          _
        // Predicated region
        $region57: #{gpt_forward.1} parent=39 // pred_check
          %p547 = pneg %p212
        $region58: #{gpt_forward.1} parent=39 // pred_check_branch
          %549 = sbr.rel (%p547) target = $region60
        $region59: #{gpt_forward.1} parent=39 // pred_region
          %p550 = scmp.lt.s32.totalorder %s25, 1
          %s551 = scalar_select %p550, %s25, 1
          %s552 = smul.addr %s551, 4
          %s553 = smul.addr %s552, 8
          %s554 = scalar_lea.vmem %s7, %s553
        $region60: #{gpt_forward.1} parent=39 // pred_fallthru
          _
        // Predicated region
        $region61: #{gpt_forward.1} parent=39 // pred_check
          %p555 = pneg %p238
        $region62: #{gpt_forward.1} parent=39 // pred_check_branch
          %557 = sbr.rel (%p555) target = $region64
        $region63: #{gpt_forward.1} parent=39 // pred_region
          %p558 = scmp.lt.s32.totalorder %s25, 1
          %s559 = scalar_select %p558, %s25, 1
          %s560 = scalar_lea.vmem %s8, %s559
        $region64: #{gpt_forward.1} parent=39 // pred_fallthru
          _
        // Predicated region
        $region65: #{gpt_forward.1} parent=39 // pred_check
          %p561 = pneg %p264
        $region66: #{gpt_forward.1} parent=39 // pred_check_branch
          %563 = sbr.rel (%p561) target = $region68
        $region67: #{gpt_forward.1} parent=39 // pred_region
          %p564 = scmp.lt.s32.totalorder %s25, 1
          %s565 = scalar_select %p564, %s25, 1
          %s566 = scalar_lea.vmem %s9, %s565
        $region68: #{gpt_forward.1} parent=39 // pred_fallthru
          _
        // Predicated region
        $region69: #{gpt_forward.1} parent=39 // pred_check
          %p567 = pneg %p290
        $region70: #{gpt_forward.1} parent=39 // pred_check_branch
          %569 = sbr.rel (%p567) target = $region72
        $region71: #{gpt_forward.1} parent=39 // pred_region
          %p570 = scmp.lt.s32.totalorder %s25, 1
          %s571 = scalar_select %p570, %s25, 1
          %s572 = scalar_lea.vmem %s10, %s571
        $region72: #{gpt_forward.1} parent=39 // pred_fallthru
          _
        // Predicated region
        $region73: #{gpt_forward.1} parent=39 // pred_check
          %p573 = pneg %p316
        $region74: #{gpt_forward.1} parent=39 // pred_check_branch
          %575 = sbr.rel (%p573) target = $region76
        $region75: #{gpt_forward.1} parent=39 // pred_region
          %p576 = scmp.lt.s32.totalorder %s25, 1
          %s577 = scalar_select %p576, %s25, 1
          %s578 = smul.addr %s577, 4
          %s579 = smul.addr %s578, 8
          %s580 = scalar_lea.vmem %s11, %s579
        $region76: #{gpt_forward.1} parent=39 // pred_fallthru
          _
        // Predicated region
        $region77: #{gpt_forward.1} parent=39 // pred_check
          %p581 = pneg %p342
        $region78: #{gpt_forward.1} parent=39 // pred_check_branch
          %583 = sbr.rel (%p581) target = $region80
        $region79: #{gpt_forward.1} parent=39 // pred_region
          %p584 = scmp.lt.s32.totalorder %s25, 1
          %s585 = scalar_select %p584, %s25, 1
          %s586 = scalar_lea.vmem %s12, %s585
        $region80: #{gpt_forward.1} parent=39 // pred_fallthru
          _
        // Predicated region
        $region81: #{gpt_forward.1} parent=39 // pred_check
          %p587 = pneg %p368
        $region82: #{gpt_forward.1} parent=39 // pred_check_branch
          %589 = sbr.rel (%p587) target = $region84
        $region83: #{gpt_forward.1} parent=39 // pred_region
          %p590 = scmp.lt.s32.totalorder %s25, 1
          %s591 = scalar_select %p590, %s25, 1
          %s592 = smul.addr %s591, 16
          %s593 = smul.addr %s592, 8
          %s594 = scalar_lea.vmem %s13, %s593
        $region84: #{gpt_forward.1} parent=39 // pred_fallthru
          _
        // Predicated region
        $region85: #{gpt_forward.1} parent=39 // pred_check
          %p595 = pneg %p394
        $region86: #{gpt_forward.1} parent=39 // pred_check_branch
          %597 = sbr.rel (%p595) target = $region88
        $region87: #{gpt_forward.1} parent=39 // pred_region
          %p598 = scmp.lt.s32.totalorder %s25, 1
          %s599 = scalar_select %p598, %s25, 1
          %s600 = scalar_lea.vmem %s14, %s599
        $region88: #{gpt_forward.1} parent=39 // pred_fallthru
          _
      $region40: #{gpt_forward.1} parent=5 // pred_fallthru
        _
      %p601 = scmp.le.s32.totalorder 1, %s25
      %p602 = scmp.lt.s32.totalorder %s25, 3
      %p603 = pnand %p601, %p602
      %p604 = pneg %p603
      // Predicated region
      $region89: #{gpt_forward.1} parent=5 // pred_check
        _
      $region90: #{gpt_forward.1} parent=5 // pred_check_branch
        %606 = sbr.rel (%p603) target = $region92
      $region91: #{gpt_forward.1} parent=5 // pred_region
        %s607 = ssub.s32 %s25, 1
        %p608 = pneg %p46
        %p609 = pneg %p43
        %p610 = pneg %p67
        %p611 = pneg %p64
        %p612 = pneg %p88
        %p613 = pneg %p85
        %p614 = scmp.lt.s32.totalorder %s30, 1
        %s615 = scalar_select %p614, %s30, 1
        %s616 = scalar_lea.vmem %s3, %s615
        %p617 = pneg %p114
        %p618 = pneg %p111
        %p619 = scmp.lt.s32.totalorder %s30, 1
        %s620 = scalar_select %p619, %s30, 1
        %s621 = scalar_lea.vmem %s4, %s620
        %p622 = pneg %p140
        %p623 = pneg %p137
        %p624 = scmp.lt.s32.totalorder %s30, 1
        %s625 = scalar_select %p624, %s30, 1
        %s626 = smul.addr %s625, 4
        %s627 = smul.addr %s626, 8
        %s628 = scalar_lea.vmem %s5, %s627
        %p629 = pneg %p166
        %p630 = pneg %p163
        %p631 = scmp.lt.s32.totalorder %s30, 1
        %s632 = scalar_select %p631, %s30, 1
        %s633 = scalar_lea.vmem %s6, %s632
        %p634 = pneg %p192
        %p635 = pneg %p189
        %p636 = scmp.lt.s32.totalorder %s30, 1
        %s637 = scalar_select %p636, %s30, 1
        %s638 = smul.addr %s637, 4
        %s639 = smul.addr %s638, 8
        %s640 = scalar_lea.vmem %s7, %s639
        %p641 = pneg %p218
        %p642 = pneg %p215
        %p643 = scmp.lt.s32.totalorder %s30, 1
        %s644 = scalar_select %p643, %s30, 1
        %s645 = scalar_lea.vmem %s8, %s644
        %p646 = pneg %p244
        %p647 = pneg %p241
        %p648 = scmp.lt.s32.totalorder %s30, 1
        %s649 = scalar_select %p648, %s30, 1
        %s650 = scalar_lea.vmem %s9, %s649
        %p651 = pneg %p270
        %p652 = pneg %p267
        %p653 = scmp.lt.s32.totalorder %s30, 1
        %s654 = scalar_select %p653, %s30, 1
        %s655 = scalar_lea.vmem %s10, %s654
        %p656 = pneg %p296
        %p657 = pneg %p293
        %p658 = scmp.lt.s32.totalorder %s30, 1
        %s659 = scalar_select %p658, %s30, 1
        %s660 = smul.addr %s659, 4
        %s661 = smul.addr %s660, 8
        %s662 = scalar_lea.vmem %s11, %s661
        %p663 = pneg %p322
        %p664 = pneg %p319
        %p665 = scmp.lt.s32.totalorder %s30, 1
        %s666 = scalar_select %p665, %s30, 1
        %s667 = scalar_lea.vmem %s12, %s666
        %p668 = pneg %p348
        %p669 = pneg %p345
        %p670 = scmp.lt.s32.totalorder %s30, 1
        %s671 = scalar_select %p670, %s30, 1
        %s672 = smul.addr %s671, 16
        %s673 = smul.addr %s672, 8
        %s674 = scalar_lea.vmem %s13, %s673
        %p675 = pneg %p374
        %p676 = pneg %p371
        %p677 = scmp.lt.s32.totalorder %s30, 1
        %s678 = scalar_select %p677, %s30, 1
        %s679 = scalar_lea.vmem %s14, %s678
        %p680 = pneg %p400
        %p681 = pneg %p397
        %p682 = pneg %p421
        %p683 = pneg %p418
        %p684 = pneg %p442
        %p685 = pneg %p439
        %p686 = pneg %p463
        %p687 = pneg %p460
        %p688 = pneg %p484
        %p689 = pneg %p481
        %p690 = scmp.lt.s32.totalorder %s30, 1
        %s691 = scalar_select %p690, %s30, 1
        %s692 = scalar_lea.vmem %s3, %s691
        %p693 = scmp.lt.s32.totalorder %s30, 1
        %s694 = scalar_select %p693, %s30, 1
        %s695 = scalar_lea.vmem %s4, %s694
        %p696 = scmp.lt.s32.totalorder %s30, 1
        %s697 = scalar_select %p696, %s30, 1
        %s698 = smul.addr %s697, 4
        %s699 = smul.addr %s698, 8
        %s700 = scalar_lea.vmem %s5, %s699
        %p701 = scmp.lt.s32.totalorder %s30, 1
        %s702 = scalar_select %p701, %s30, 1
        %s703 = scalar_lea.vmem %s6, %s702
        %p704 = scmp.lt.s32.totalorder %s30, 1
        %s705 = scalar_select %p704, %s30, 1
        %s706 = smul.addr %s705, 4
        %s707 = smul.addr %s706, 8
        %s708 = scalar_lea.vmem %s7, %s707
        %p709 = scmp.lt.s32.totalorder %s30, 1
        %s710 = scalar_select %p709, %s30, 1
        %s711 = scalar_lea.vmem %s8, %s710
        %p712 = scmp.lt.s32.totalorder %s30, 1
        %s713 = scalar_select %p712, %s30, 1
        %s714 = scalar_lea.vmem %s9, %s713
        %p715 = scmp.lt.s32.totalorder %s30, 1
        %s716 = scalar_select %p715, %s30, 1
        %s717 = scalar_lea.vmem %s10, %s716
        %p718 = scmp.lt.s32.totalorder %s30, 1
        %s719 = scalar_select %p718, %s30, 1
        %s720 = smul.addr %s719, 4
        %s721 = smul.addr %s720, 8
        %s722 = scalar_lea.vmem %s11, %s721
        %p723 = scmp.lt.s32.totalorder %s30, 1
        %s724 = scalar_select %p723, %s30, 1
        %s725 = scalar_lea.vmem %s12, %s724
        %p726 = scmp.lt.s32.totalorder %s30, 1
        %s727 = scalar_select %p726, %s30, 1
        %s728 = smul.addr %s727, 16
        %s729 = smul.addr %s728, 8
        %s730 = scalar_lea.vmem %s13, %s729
        %p731 = scmp.lt.s32.totalorder %s30, 1
        %s732 = scalar_select %p731, %s30, 1
        %s733 = scalar_lea.vmem %s14, %s732
        %p734 = scmp.eq.s32.totalorder %s30, 0
        // Predicated region
        $region93: #{gpt_forward.1} parent=91 // pred_check
          %p735 = pneg %p734
        $region94: #{gpt_forward.1} parent=91 // pred_check_branch
          %737 = sbr.rel (%p735) target = $region96
        $region95: #{gpt_forward.1} parent=91 // pred_region
          %v738 = vlaneseq
          %v739 = vand.u32 %v738, 127
          %v740 = vld [vmem:[%s0] sm:$0xff]
          %v741 = vld [vmem:[%s0 + $0x8] sm:$0xff]
          %742 = vset.pattern.permute.xlu0 0
          %743 = vperm.xlu0 %742, %v740
          %v744 = vpop.permute.xlu0 %743
          %745 = vset.pattern.permute.xlu0 0
          %746 = vperm.xlu0 %745, %v741
          %v747 = vpop.permute.xlu0 %746
          %vm748 = vcmp.eq.s32.totalorder %v739, %v744
          %vm749 = vcmp.eq.s32.totalorder %v739, %v747
          %v750 = vsel %vm748, 1, 0
          %v751 = vsel %vm749, 1, 0
          %v752 = vcvt.s32.f32 %v750
          %v753 = vcvt.s32.f32 %v751
          %v754 = vld [vmem:[%s1] sm:$0xff]
          %v755 = vld [vmem:[%s1 + $0x8] sm:$0xff]
          %v756 = vld [vmem:[%s1 + $0x10] sm:$0xff]
          %v757 = vld [vmem:[%s1 + $0x18] sm:$0xff]
          %v758 = vld [vmem:[%s1 + $0x20] sm:$0xff]
          %v759 = vld [vmem:[%s1 + $0x28] sm:$0xff]
          %v760 = vld [vmem:[%s1 + $0x30] sm:$0xff]
          %v761 = vld [vmem:[%s1 + $0x38] sm:$0xff]
          %v762 = vld [vmem:[%s1 + $0x40] sm:$0xff]
          %v763 = vld [vmem:[%s1 + $0x48] sm:$0xff]
          %v764 = vld [vmem:[%s1 + $0x50] sm:$0xff]
          %v765 = vld [vmem:[%s1 + $0x58] sm:$0xff]
          %v766 = vld [vmem:[%s1 + $0x60] sm:$0xff]
          %v767 = vld [vmem:[%s1 + $0x68] sm:$0xff]
          %v768 = vld [vmem:[%s1 + $0x70] sm:$0xff]
          %v769 = vld [vmem:[%s1 + $0x78] sm:$0xff]
          %v770 = vld [vmem:[%s2] sm:$0xff]
          %771 = vmatprep.subr.mxu0 0.0
          %772 = vmatpush1.msra.mxu0 %v754
          %773 = vmatprep.subr.mxu0 0.0
          %774 = vmatpush1.msra.mxu0 %v755
          %775 = vmatprep.subr.mxu0 0.0
          %776 = vmatpush1.msra.mxu0 %v756
          %777 = vmatprep.subr.mxu0 0.0
          %778 = vmatpush1.msra.mxu0 %v757
          %779 = vmatprep.subr.mxu0 0.0
          %780 = vmatpush1.msra.mxu0 %v758
          %781 = vmatprep.subr.mxu0 0.0
          %782 = vmatpush1.msra.mxu0 %v759
          %783 = vmatprep.subr.mxu0 0.0
          %784 = vmatpush1.msra.mxu0 %v760
          %785 = vmatprep.subr.mxu0 0.0
          %786 = vmatpush1.msra.mxu0 %v761
          %787 = vmatprep.subr.mxu0 0.0
          %788 = vmatpush1.msra.mxu0 %v762
          %789 = vmatprep.subr.mxu0 0.0
          %790 = vmatpush1.msra.mxu0 %v763
          %791 = vmatprep.subr.mxu0 0.0
          %792 = vmatpush1.msra.mxu0 %v764
          %793 = vmatprep.subr.mxu0 0.0
          %794 = vmatpush1.msra.mxu0 %v765
          %795 = vmatprep.subr.mxu0 0.0
          %796 = vmatpush1.msra.mxu0 %v766
          %797 = vmatprep.subr.mxu0 0.0
          %798 = vmatpush1.msra.mxu0 %v767
          %799 = vmatprep.subr.mxu0 0.0
          %800 = vmatpush1.msra.mxu0 %v768
          %801 = vmatprep.subr.mxu0 0.0
          %802 = vmatpush1.msra.mxu0 %v769
          %803 = vmatprep.subr.mxu0 0.0
          %804 = vmatpush1.msra.mxu0 0.0
          %805 = vmatprep.subr.mxu0 0.0
          %806 = vmatpush1.msra.mxu0 0.0
          %807 = vmatprep.subr.mxu0 0.0
          %808 = vmatpush1.msra.mxu0 0.0
          %809 = vmatprep.subr.mxu0 0.0
          %810 = vmatpush1.msra.mxu0 0.0
          %811 = vmatprep.subr.mxu0 0.0
          %812 = vmatpush1.msra.mxu0 0.0
          %813 = vmatprep.subr.mxu0 0.0
          %814 = vmatpush1.msra.mxu0 0.0
          %815 = vmatprep.subr.mxu0 0.0
          %816 = vmatpush1.msra.mxu0 0.0
          %817 = vmatprep.subr.mxu0 0.0
          %818 = vmatpush1.msra.mxu0 0.0
          %819 = vmatprep.subr.mxu0 0.0
          %820 = vmatpush1.msra.mxu0 0.0
          %821 = vmatprep.subr.mxu0 0.0
          %822 = vmatpush1.msra.mxu0 0.0
          %823 = vmatprep.subr.mxu0 0.0
          %824 = vmatpush1.msra.mxu0 0.0
          %825 = vmatprep.subr.mxu0 0.0
          %826 = vmatpush1.msra.mxu0 0.0
          %827 = vmatprep.subr.mxu0 0.0
          %828 = vmatpush1.msra.mxu0 0.0
          %829 = vmatprep.subr.mxu0 0.0
          %830 = vmatpush1.msra.mxu0 0.0
          %831 = vmatprep.subr.mxu0 0.0
          %832 = vmatpush1.msra.mxu0 0.0
          %833 = vmatprep.subr.mxu0 0.0
          %834 = vmatpush1.msra.mxu0 0.0
          %835 = vmatprep.mubr.f32.mxu0 0.0
          %836 = vmatmul.mubr.f32.gmra.mrb[0].mxu0 %v752
          %v837 = vpop.f32.mrb[0].mxu0
          %v838 = vadd.f32 %v770, %v837
          %v839 = vpop.f32.mrb[0].mxu0
          %840 = vmatprep.mubr.f32.mxu0 0.0
          %841 = vmatmul.mubr.f32.gmra.mrb[0].mxu0 %v753
          %v842 = vpop.f32.mrb[0].mxu0
          %v843 = vadd.f32 %v770, %v842
          %v844 = vpop.f32.mrb[0].mxu0
          %845 = vdwg.mxu0
          %vm846 = vcmask 261120
          %847 = vst.msk [vmem:[#allocation2] sm:$0xff] %vm846, %v838
          %848 = vst.msk [vmem:[#allocation2 + $0x8] sm:$0xff] %vm846, %v843
        $region96: #{gpt_forward.1} parent=91 // pred_fallthru
          _
        %v849 = vld [vmem:[#allocation2] sm:$0xff]
        %v850 = vld [vmem:[#allocation2 + $0x8] sm:$0xff]
        %v851 = vld [vmem:[%s692] sm:$0x1]
        %v852 = vld [vmem:[%s695] sm:$0x1]
        %vm853 = vcmask 261120
        %v854 = vsel %vm853, %v849, 0.0
        %855 = vadd.xlane.f32.xlu0 %v854
        %v856 = vpop.xlane.xlu0 %855
        %v857 = vsel %vm853, %v850, 0.0
        %858 = vadd.xlane.f32.xlu0 %v857
        %v859 = vpop.xlane.xlu0 %858
        %v860 = vrcp.pop 32.0
        %v861 = vmul.f32 %v856, %v860
        %v862 = vmul.f32 %v859, %v860
        %v863 = vsub.f32 %v849, %v861
        %v864 = vsub.f32 %v850, %v862
        %v865 = vmul.f32 %v863, %v863
        %v866 = vmul.f32 %v864, %v864
        %v867 = vsel %vm853, %v865, 0.0
        %868 = vadd.xlane.f32.xlu0 %v867
        %v869 = vpop.xlane.xlu0 %868
        %v870 = vsel %vm853, %v866, 0.0
        %871 = vadd.xlane.f32.xlu0 %v870
        %v872 = vpop.xlane.xlu0 %871
        %v873 = vmul.f32 %v869, %v860
        %v874 = vmul.f32 %v872, %v860
        %v875 = vadd.f32 %v873, 1e-05
        %v876 = vadd.f32 %v874, 1e-05
        %v877 = vrsqrt.pop %v875
        %v878 = vrsqrt.pop %v876
        %v879 = vmul.f32 %v863, %v877
        %v880 = vmul.f32 %v864, %v878
        %v882 = vlaneseq
        %v883 = vshrl.u32 %v882, 7
        %v884 = vsub.s32 0, %v883
        %v885 = vrot.slane %v851, %v884
        %v887 = vmul.f32 %v879, %v885
        %v888 = vmul.f32 %v880, %v885
        %v890 = vlaneseq
        %v891 = vshrl.u32 %v890, 7
        %v892 = vsub.s32 0, %v891
        %v893 = vrot.slane %v852, %v892
        %v895 = vadd.f32 %v887, %v893
        %v896 = vadd.f32 %v888, %v893
        %v897 = vld [vmem:[%s700] sm:$0xff]
        %v898 = vld [vmem:[%s700 + $0x8] sm:$0xff]
        %v899 = vld [vmem:[%s700 + $0x10] sm:$0xff]
        %v900 = vld [vmem:[%s700 + $0x18] sm:$0xff]
        %v901 = vld [vmem:[%s703] sm:$0x1]
        %v903 = vlaneseq
        %v904 = vshrl.u32 %v903, 7
        %v905 = vsub.s32 0, %v904
        %v906 = vrot.slane %v901, %v905
        %v909 = vsel %vm853, %v895, 0
        %v912 = vsel %vm853, %v896, 0
        %914 = vmatprep.subr.mxu0 0.0
        %915 = vmatpush1.msra.mxu0 %v897
        %916 = vmatprep.subr.mxu0 0.0
        %917 = vmatpush1.msra.mxu0 %v898
        %918 = vmatprep.subr.mxu0 0.0
        %919 = vmatpush1.msra.mxu0 %v899
        %920 = vmatprep.subr.mxu0 0.0
        %921 = vmatpush1.msra.mxu0 %v900
        %922 = vmatprep.subr.mxu0 0.0
        %923 = vmatpush1.msra.mxu0 0.0
        %924 = vmatprep.subr.mxu0 0.0
        %925 = vmatpush1.msra.mxu0 0.0
        %926 = vmatprep.subr.mxu0 0.0
        %927 = vmatpush1.msra.mxu0 0.0
        %928 = vmatprep.subr.mxu0 0.0
        %929 = vmatpush1.msra.mxu0 0.0
        %930 = vmatprep.subr.mxu0 0.0
        %931 = vmatpush1.msra.mxu0 0.0
        %932 = vmatprep.subr.mxu0 0.0
        %933 = vmatpush1.msra.mxu0 0.0
        %934 = vmatprep.subr.mxu0 0.0
        %935 = vmatpush1.msra.mxu0 0.0
        %936 = vmatprep.subr.mxu0 0.0
        %937 = vmatpush1.msra.mxu0 0.0
        %938 = vmatprep.subr.mxu0 0.0
        %939 = vmatpush1.msra.mxu0 0.0
        %940 = vmatprep.subr.mxu0 0.0
        %941 = vmatpush1.msra.mxu0 0.0
        %942 = vmatprep.subr.mxu0 0.0
        %943 = vmatpush1.msra.mxu0 0.0
        %944 = vmatprep.subr.mxu0 0.0
        %945 = vmatpush1.msra.mxu0 0.0
        %946 = vmatprep.subr.mxu0 0.0
        %947 = vmatpush1.msra.mxu0 0.0
        %948 = vmatprep.subr.mxu0 0.0
        %949 = vmatpush1.msra.mxu0 0.0
        %950 = vmatprep.subr.mxu0 0.0
        %951 = vmatpush1.msra.mxu0 0.0
        %952 = vmatprep.subr.mxu0 0.0
        %953 = vmatpush1.msra.mxu0 0.0
        %954 = vmatprep.subr.mxu0 0.0
        %955 = vmatpush1.msra.mxu0 0.0
        %956 = vmatprep.subr.mxu0 0.0
        %957 = vmatpush1.msra.mxu0 0.0
        %958 = vmatprep.subr.mxu0 0.0
        %959 = vmatpush1.msra.mxu0 0.0
        %960 = vmatprep.subr.mxu0 0.0
        %961 = vmatpush1.msra.mxu0 0.0
        %962 = vmatprep.subr.mxu0 0.0
        %963 = vmatpush1.msra.mxu0 0.0
        %964 = vmatprep.subr.mxu0 0.0
        %965 = vmatpush1.msra.mxu0 0.0
        %966 = vmatprep.subr.mxu0 0.0
        %967 = vmatpush1.msra.mxu0 0.0
        %968 = vmatprep.subr.mxu0 0.0
        %969 = vmatpush1.msra.mxu0 0.0
        %970 = vmatprep.subr.mxu0 0.0
        %971 = vmatpush1.msra.mxu0 0.0
        %972 = vmatprep.subr.mxu0 0.0
        %973 = vmatpush1.msra.mxu0 0.0
        %974 = vmatprep.subr.mxu0 0.0
        %975 = vmatpush1.msra.mxu0 0.0
        %976 = vmatprep.subr.mxu0 0.0
        %977 = vmatpush1.msra.mxu0 0.0
        %978 = vmatprep.mubr.f32.mxu0 0.0
        %979 = vmatmul.mubr.f32.gmra.mrb[0].mxu0 %v909
        %v980 = vpop.f32.mrb[0].mxu0
        %v981 = vadd.f32 %v906, %v980
        %v982 = vpop.f32.mrb[0].mxu0
        %983 = vmatprep.mubr.f32.mxu0 0.0
        %984 = vmatmul.mubr.f32.gmra.mrb[0].mxu0 %v912
        %v985 = vpop.f32.mrb[0].mxu0
        %v986 = vadd.f32 %v906, %v985
        %v987 = vpop.f32.mrb[0].mxu0
        %988 = vdwg.mxu0
        %v989 = vlaneseq
        %v990 = vshrl.u32 %v989, 7
        %v991 = vlaneseq
        %v992 = vand.u32 %v991, 127
        %vm993 = vcmp.le.s32.totalorder %v992, %v990
        %v994 = vsel %vm993, 0.0, -1e+30
        %996 = vrot.lane.b32.xlu0 %v981, 96
        %v997 = vpop.permute.xlu0 %996
        %vm998 = vcmask 64512
        %v999 = vsel %vm998, %v981, 0
        %v1001 = vsel %vm998, %v997, 0
        %1003 = vmatprep.subr.mxu0 0.0
        %1004 = vmatpush1.xpose.msra.mxu0 %v1001
        %1005 = vmatprep.subr.mxu0 0.0
        %1006 = vmatpush1.xpose.msra.mxu0 0.0
        %1007 = vmatprep.subr.mxu0 0.0
        %1008 = vmatpush1.xpose.msra.mxu0 0.0
        %1009 = vmatprep.subr.mxu0 0.0
        %1010 = vmatpush1.xpose.msra.mxu0 0.0
        %1011 = vmatprep.subr.mxu0 0.0
        %1012 = vmatpush1.xpose.msra.mxu0 0.0
        %1013 = vmatprep.subr.mxu0 0.0
        %1014 = vmatpush1.xpose.msra.mxu0 0.0
        %1015 = vmatprep.subr.mxu0 0.0
        %1016 = vmatpush1.xpose.msra.mxu0 0.0
        %1017 = vmatprep.subr.mxu0 0.0
        %1018 = vmatpush1.xpose.msra.mxu0 0.0
        %1019 = vmatprep.subr.mxu0 0.0
        %1020 = vmatpush1.xpose.msra.mxu0 0.0
        %1021 = vmatprep.subr.mxu0 0.0
        %1022 = vmatpush1.xpose.msra.mxu0 0.0
        %1023 = vmatprep.subr.mxu0 0.0
        %1024 = vmatpush1.xpose.msra.mxu0 0.0
        %1025 = vmatprep.subr.mxu0 0.0
        %1026 = vmatpush1.xpose.msra.mxu0 0.0
        %1027 = vmatprep.subr.mxu0 0.0
        %1028 = vmatpush1.xpose.msra.mxu0 0.0
        %1029 = vmatprep.subr.mxu0 0.0
        %1030 = vmatpush1.xpose.msra.mxu0 0.0
        %1031 = vmatprep.subr.mxu0 0.0
        %1032 = vmatpush1.xpose.msra.mxu0 0.0
        %1033 = vmatprep.subr.mxu0 0.0
        %1034 = vmatpush1.xpose.msra.mxu0 0.0
        %1035 = vmatprep.subr.mxu0 0.0
        %1036 = vmatpush1.xpose.msra.mxu0 0.0
        %1037 = vmatprep.subr.mxu0 0.0
        %1038 = vmatpush1.xpose.msra.mxu0 0.0
        %1039 = vmatprep.subr.mxu0 0.0
        %1040 = vmatpush1.xpose.msra.mxu0 0.0
        %1041 = vmatprep.subr.mxu0 0.0
        %1042 = vmatpush1.xpose.msra.mxu0 0.0
        %1043 = vmatprep.subr.mxu0 0.0
        %1044 = vmatpush1.xpose.msra.mxu0 0.0
        %1045 = vmatprep.subr.mxu0 0.0
        %1046 = vmatpush1.xpose.msra.mxu0 0.0
        %1047 = vmatprep.subr.mxu0 0.0
        %1048 = vmatpush1.xpose.msra.mxu0 0.0
        %1049 = vmatprep.subr.mxu0 0.0
        %1050 = vmatpush1.xpose.msra.mxu0 0.0
        %1051 = vmatprep.subr.mxu0 0.0
        %1052 = vmatpush1.xpose.msra.mxu0 0.0
        %1053 = vmatprep.subr.mxu0 0.0
        %1054 = vmatpush1.xpose.msra.mxu0 0.0
        %1055 = vmatprep.subr.mxu0 0.0
        %1056 = vmatpush1.xpose.msra.mxu0 0.0
        %1057 = vmatprep.subr.mxu0 0.0
        %1058 = vmatpush1.xpose.msra.mxu0 0.0
        %1059 = vmatprep.subr.mxu0 0.0
        %1060 = vmatpush1.xpose.msra.mxu0 0.0
        %1061 = vmatprep.subr.mxu0 0.0
        %1062 = vmatpush1.xpose.msra.mxu0 0.0
        %1063 = vmatprep.subr.mxu0 0.0
        %1064 = vmatpush1.xpose.msra.mxu0 0.0
        %1065 = vmatprep.subr.mxu0 0.0
        %1066 = vmatpush1.xpose.msra.mxu0 0.0
        %1067 = vmatprep.mubr.f32.mxu0 0.0
        %1068 = vmatmul.mubr.f32.gmra.mrb[0].mxu0 %v999
        %v1069 = vpop.f32.mrb[0].mxu0
        %v1070 = vadd.f32 0.0, %v1069
        %v1071 = vpop.f32.mrb[0].mxu0
        %1072 = vdwg.mxu0
        %v1073 = vmul.f32 %v1070, 0.35355338
        %v1074 = vadd.f32 %v1073, %v994
        %v1075 = vsel %vm998, %v1074, -inf
        %1076 = vmax.xlane.f32.xlu0 %v1075
        %v1077 = vpop.xlane.xlu0 %1076
        %v1078 = vsub.f32 %v1074, %v1077
        %v1079 = vmul.f32 %v1078, 1.442695
        %v1080 = vpow.pop %v1079
        %v1081 = vsel %vm998, %v1080, 0.0
        %1082 = vadd.xlane.f32.xlu0 %v1081
        %v1083 = vpop.xlane.xlu0 %1082
        %v1084 = vrcp.pop %v1083
        %v1085 = vmul.f32 %v1080, %v1084
        %1086 = vrot.lane.b32.xlu0 %v981, 64
        %v1087 = vpop.permute.xlu0 %1086
        %v1090 = vsel %vm998, %v1085, 0
        %1092 = vmatprep.subr.mxu0 0.0
        %1093 = vmatpush1.msra.mxu0 %v1087
        %1094 = vmatprep.subr.mxu0 0.0
        %1095 = vmatpush1.msra.mxu0 0.0
        %1096 = vmatprep.subr.mxu0 0.0
        %1097 = vmatpush1.msra.mxu0 0.0
        %1098 = vmatprep.subr.mxu0 0.0
        %1099 = vmatpush1.msra.mxu0 0.0
        %1100 = vmatprep.subr.mxu0 0.0
        %1101 = vmatpush1.msra.mxu0 0.0
        %1102 = vmatprep.subr.mxu0 0.0
        %1103 = vmatpush1.msra.mxu0 0.0
        %1104 = vmatprep.subr.mxu0 0.0
        %1105 = vmatpush1.msra.mxu0 0.0
        %1106 = vmatprep.subr.mxu0 0.0
        %1107 = vmatpush1.msra.mxu0 0.0
        %1108 = vmatprep.subr.mxu0 0.0
        %1109 = vmatpush1.msra.mxu0 0.0
        %1110 = vmatprep.subr.mxu0 0.0
        %1111 = vmatpush1.msra.mxu0 0.0
        %1112 = vmatprep.subr.mxu0 0.0
        %1113 = vmatpush1.msra.mxu0 0.0
        %1114 = vmatprep.subr.mxu0 0.0
        %1115 = vmatpush1.msra.mxu0 0.0
        %1116 = vmatprep.subr.mxu0 0.0
        %1117 = vmatpush1.msra.mxu0 0.0
        %1118 = vmatprep.subr.mxu0 0.0
        %1119 = vmatpush1.msra.mxu0 0.0
        %1120 = vmatprep.subr.mxu0 0.0
        %1121 = vmatpush1.msra.mxu0 0.0
        %1122 = vmatprep.subr.mxu0 0.0
        %1123 = vmatpush1.msra.mxu0 0.0
        %1124 = vmatprep.subr.mxu0 0.0
        %1125 = vmatpush1.msra.mxu0 0.0
        %1126 = vmatprep.subr.mxu0 0.0
        %1127 = vmatpush1.msra.mxu0 0.0
        %1128 = vmatprep.subr.mxu0 0.0
        %1129 = vmatpush1.msra.mxu0 0.0
        %1130 = vmatprep.subr.mxu0 0.0
        %1131 = vmatpush1.msra.mxu0 0.0
        %1132 = vmatprep.subr.mxu0 0.0
        %1133 = vmatpush1.msra.mxu0 0.0
        %1134 = vmatprep.subr.mxu0 0.0
        %1135 = vmatpush1.msra.mxu0 0.0
        %1136 = vmatprep.subr.mxu0 0.0
        %1137 = vmatpush1.msra.mxu0 0.0
        %1138 = vmatprep.subr.mxu0 0.0
        %1139 = vmatpush1.msra.mxu0 0.0
        %1140 = vmatprep.subr.mxu0 0.0
        %1141 = vmatpush1.msra.mxu0 0.0
        %1142 = vmatprep.subr.mxu0 0.0
        %1143 = vmatpush1.msra.mxu0 0.0
        %1144 = vmatprep.subr.mxu0 0.0
        %1145 = vmatpush1.msra.mxu0 0.0
        %1146 = vmatprep.subr.mxu0 0.0
        %1147 = vmatpush1.msra.mxu0 0.0
        %1148 = vmatprep.subr.mxu0 0.0
        %1149 = vmatpush1.msra.mxu0 0.0
        %1150 = vmatprep.subr.mxu0 0.0
        %1151 = vmatpush1.msra.mxu0 0.0
        %1152 = vmatprep.subr.mxu0 0.0
        %1153 = vmatpush1.msra.mxu0 0.0
        %1154 = vmatprep.subr.mxu0 0.0
        %1155 = vmatpush1.msra.mxu0 0.0
        %1156 = vmatprep.mubr.f32.mxu0 0.0
        %1157 = vmatmul.mubr.f32.gmra.mrb[0].mxu0 %v1090
        %v1158 = vpop.f32.mrb[0].mxu0
        %v1159 = vadd.f32 0.0, %v1158
        %v1160 = vpop.f32.mrb[0].mxu0
        %1161 = vdwg.mxu0
        %1162 = vrot.lane.b32.xlu0 %v981, 120
        %v1163 = vpop.permute.xlu0 %1162
        %1164 = vrot.lane.b32.xlu0 %v981, 88
        %v1165 = vpop.permute.xlu0 %1164
        %v1166 = vsel %vm998, %v1163, 0
        %v1168 = vsel %vm998, %v1165, 0
        %1170 = vmatprep.subr.mxu0 0.0
        %1171 = vmatpush1.xpose.msra.mxu0 %v1168
        %1172 = vmatprep.subr.mxu0 0.0
        %1173 = vmatpush1.xpose.msra.mxu0 0.0
        %1174 = vmatprep.subr.mxu0 0.0
        %1175 = vmatpush1.xpose.msra.mxu0 0.0
        %1176 = vmatprep.subr.mxu0 0.0
        %1177 = vmatpush1.xpose.msra.mxu0 0.0
        %1178 = vmatprep.subr.mxu0 0.0
        %1179 = vmatpush1.xpose.msra.mxu0 0.0
        %1180 = vmatprep.subr.mxu0 0.0
        %1181 = vmatpush1.xpose.msra.mxu0 0.0
        %1182 = vmatprep.subr.mxu0 0.0
        %1183 = vmatpush1.xpose.msra.mxu0 0.0
        %1184 = vmatprep.subr.mxu0 0.0
        %1185 = vmatpush1.xpose.msra.mxu0 0.0
        %1186 = vmatprep.subr.mxu0 0.0
        %1187 = vmatpush1.xpose.msra.mxu0 0.0
        %1188 = vmatprep.subr.mxu0 0.0
        %1189 = vmatpush1.xpose.msra.mxu0 0.0
        %1190 = vmatprep.subr.mxu0 0.0
        %1191 = vmatpush1.xpose.msra.mxu0 0.0
        %1192 = vmatprep.subr.mxu0 0.0
        %1193 = vmatpush1.xpose.msra.mxu0 0.0
        %1194 = vmatprep.subr.mxu0 0.0
        %1195 = vmatpush1.xpose.msra.mxu0 0.0
        %1196 = vmatprep.subr.mxu0 0.0
        %1197 = vmatpush1.xpose.msra.mxu0 0.0
        %1198 = vmatprep.subr.mxu0 0.0
        %1199 = vmatpush1.xpose.msra.mxu0 0.0
        %1200 = vmatprep.subr.mxu0 0.0
        %1201 = vmatpush1.xpose.msra.mxu0 0.0
        %1202 = vmatprep.subr.mxu0 0.0
        %1203 = vmatpush1.xpose.msra.mxu0 0.0
        %1204 = vmatprep.subr.mxu0 0.0
        %1205 = vmatpush1.xpose.msra.mxu0 0.0
        %1206 = vmatprep.subr.mxu0 0.0
        %1207 = vmatpush1.xpose.msra.mxu0 0.0
        %1208 = vmatprep.subr.mxu0 0.0
        %1209 = vmatpush1.xpose.msra.mxu0 0.0
        %1210 = vmatprep.subr.mxu0 0.0
        %1211 = vmatpush1.xpose.msra.mxu0 0.0
        %1212 = vmatprep.subr.mxu0 0.0
        %1213 = vmatpush1.xpose.msra.mxu0 0.0
        %1214 = vmatprep.subr.mxu0 0.0
        %1215 = vmatpush1.xpose.msra.mxu0 0.0
        %1216 = vmatprep.subr.mxu0 0.0
        %1217 = vmatpush1.xpose.msra.mxu0 0.0
        %1218 = vmatprep.subr.mxu0 0.0
        %1219 = vmatpush1.xpose.msra.mxu0 0.0
        %1220 = vmatprep.subr.mxu0 0.0
        %1221 = vmatpush1.xpose.msra.mxu0 0.0
        %1222 = vmatprep.subr.mxu0 0.0
        %1223 = vmatpush1.xpose.msra.mxu0 0.0
        %1224 = vmatprep.subr.mxu0 0.0
        %1225 = vmatpush1.xpose.msra.mxu0 0.0
        %1226 = vmatprep.subr.mxu0 0.0
        %1227 = vmatpush1.xpose.msra.mxu0 0.0
        %1228 = vmatprep.subr.mxu0 0.0
        %1229 = vmatpush1.xpose.msra.mxu0 0.0
        %1230 = vmatprep.subr.mxu0 0.0
        %1231 = vmatpush1.xpose.msra.mxu0 0.0
        %1232 = vmatprep.subr.mxu0 0.0
        %1233 = vmatpush1.xpose.msra.mxu0 0.0
        %1234 = vmatprep.mubr.f32.mxu0 0.0
        %1235 = vmatmul.mubr.f32.gmra.mrb[0].mxu0 %v1166
        %v1236 = vpop.f32.mrb[0].mxu0
        %v1237 = vadd.f32 0.0, %v1236
        %v1238 = vpop.f32.mrb[0].mxu0
        %1239 = vdwg.mxu0
        %v1240 = vmul.f32 %v1237, 0.35355338
        %v1241 = vadd.f32 %v1240, %v994
        %v1242 = vsel %vm998, %v1241, -inf
        %1243 = vmax.xlane.f32.xlu0 %v1242
        %v1244 = vpop.xlane.xlu0 %1243
        %v1245 = vsub.f32 %v1241, %v1244
        %v1246 = vmul.f32 %v1245, 1.442695
        %v1247 = vpow.pop %v1246
        %v1248 = vsel %vm998, %v1247, 0.0
        %1249 = vadd.xlane.f32.xlu0 %v1248
        %v1250 = vpop.xlane.xlu0 %1249
        %v1251 = vrcp.pop %v1250
        %v1252 = vmul.f32 %v1247, %v1251
        %1253 = vrot.lane.b32.xlu0 %v981, 56
        %v1254 = vpop.permute.xlu0 %1253
        %v1257 = vsel %vm998, %v1252, 0
        %1259 = vmatprep.subr.mxu0 0.0
        %1260 = vmatpush1.msra.mxu0 %v1254
        %1261 = vmatprep.subr.mxu0 0.0
        %1262 = vmatpush1.msra.mxu0 0.0
        %1263 = vmatprep.subr.mxu0 0.0
        %1264 = vmatpush1.msra.mxu0 0.0
        %1265 = vmatprep.subr.mxu0 0.0
        %1266 = vmatpush1.msra.mxu0 0.0
        %1267 = vmatprep.subr.mxu0 0.0
        %1268 = vmatpush1.msra.mxu0 0.0
        %1269 = vmatprep.subr.mxu0 0.0
        %1270 = vmatpush1.msra.mxu0 0.0
        %1271 = vmatprep.subr.mxu0 0.0
        %1272 = vmatpush1.msra.mxu0 0.0
        %1273 = vmatprep.subr.mxu0 0.0
        %1274 = vmatpush1.msra.mxu0 0.0
        %1275 = vmatprep.subr.mxu0 0.0
        %1276 = vmatpush1.msra.mxu0 0.0
        %1277 = vmatprep.subr.mxu0 0.0
        %1278 = vmatpush1.msra.mxu0 0.0
        %1279 = vmatprep.subr.mxu0 0.0
        %1280 = vmatpush1.msra.mxu0 0.0
        %1281 = vmatprep.subr.mxu0 0.0
        %1282 = vmatpush1.msra.mxu0 0.0
        %1283 = vmatprep.subr.mxu0 0.0
        %1284 = vmatpush1.msra.mxu0 0.0
        %1285 = vmatprep.subr.mxu0 0.0
        %1286 = vmatpush1.msra.mxu0 0.0
        %1287 = vmatprep.subr.mxu0 0.0
        %1288 = vmatpush1.msra.mxu0 0.0
        %1289 = vmatprep.subr.mxu0 0.0
        %1290 = vmatpush1.msra.mxu0 0.0
        %1291 = vmatprep.subr.mxu0 0.0
        %1292 = vmatpush1.msra.mxu0 0.0
        %1293 = vmatprep.subr.mxu0 0.0
        %1294 = vmatpush1.msra.mxu0 0.0
        %1295 = vmatprep.subr.mxu0 0.0
        %1296 = vmatpush1.msra.mxu0 0.0
        %1297 = vmatprep.subr.mxu0 0.0
        %1298 = vmatpush1.msra.mxu0 0.0
        %1299 = vmatprep.subr.mxu0 0.0
        %1300 = vmatpush1.msra.mxu0 0.0
        %1301 = vmatprep.subr.mxu0 0.0
        %1302 = vmatpush1.msra.mxu0 0.0
        %1303 = vmatprep.subr.mxu0 0.0
        %1304 = vmatpush1.msra.mxu0 0.0
        %1305 = vmatprep.subr.mxu0 0.0
        %1306 = vmatpush1.msra.mxu0 0.0
        %1307 = vmatprep.subr.mxu0 0.0
        %1308 = vmatpush1.msra.mxu0 0.0
        %1309 = vmatprep.subr.mxu0 0.0
        %1310 = vmatpush1.msra.mxu0 0.0
        %1311 = vmatprep.subr.mxu0 0.0
        %1312 = vmatpush1.msra.mxu0 0.0
        %1313 = vmatprep.subr.mxu0 0.0
        %1314 = vmatpush1.msra.mxu0 0.0
        %1315 = vmatprep.subr.mxu0 0.0
        %1316 = vmatpush1.msra.mxu0 0.0
        %1317 = vmatprep.subr.mxu0 0.0
        %1318 = vmatpush1.msra.mxu0 0.0
        %1319 = vmatprep.subr.mxu0 0.0
        %1320 = vmatpush1.msra.mxu0 0.0
        %1321 = vmatprep.subr.mxu0 0.0
        %1322 = vmatpush1.msra.mxu0 0.0
        %1323 = vmatprep.mubr.f32.mxu0 0.0
        %1324 = vmatmul.mubr.f32.gmra.mrb[0].mxu0 %v1257
        %v1325 = vpop.f32.mrb[0].mxu0
        %v1326 = vadd.f32 0.0, %v1325
        %v1327 = vpop.f32.mrb[0].mxu0
        %1328 = vdwg.mxu0
        %1329 = vrot.lane.b32.xlu0 %v981, 112
        %v1330 = vpop.permute.xlu0 %1329
        %1331 = vrot.lane.b32.xlu0 %v981, 80
        %v1332 = vpop.permute.xlu0 %1331
        %v1333 = vsel %vm998, %v1330, 0
        %v1335 = vsel %vm998, %v1332, 0
        %1337 = vmatprep.subr.mxu0 0.0
        %1338 = vmatpush1.xpose.msra.mxu0 %v1335
        %1339 = vmatprep.subr.mxu0 0.0
        %1340 = vmatpush1.xpose.msra.mxu0 0.0
        %1341 = vmatprep.subr.mxu0 0.0
        %1342 = vmatpush1.xpose.msra.mxu0 0.0
        %1343 = vmatprep.subr.mxu0 0.0
        %1344 = vmatpush1.xpose.msra.mxu0 0.0
        %1345 = vmatprep.subr.mxu0 0.0
        %1346 = vmatpush1.xpose.msra.mxu0 0.0
        %1347 = vmatprep.subr.mxu0 0.0
        %1348 = vmatpush1.xpose.msra.mxu0 0.0
        %1349 = vmatprep.subr.mxu0 0.0
        %1350 = vmatpush1.xpose.msra.mxu0 0.0
        %1351 = vmatprep.subr.mxu0 0.0
        %1352 = vmatpush1.xpose.msra.mxu0 0.0
        %1353 = vmatprep.subr.mxu0 0.0
        %1354 = vmatpush1.xpose.msra.mxu0 0.0
        %1355 = vmatprep.subr.mxu0 0.0
        %1356 = vmatpush1.xpose.msra.mxu0 0.0
        %1357 = vmatprep.subr.mxu0 0.0
        %1358 = vmatpush1.xpose.msra.mxu0 0.0
        %1359 = vmatprep.subr.mxu0 0.0
        %1360 = vmatpush1.xpose.msra.mxu0 0.0
        %1361 = vmatprep.subr.mxu0 0.0
        %1362 = vmatpush1.xpose.msra.mxu0 0.0
        %1363 = vmatprep.subr.mxu0 0.0
        %1364 = vmatpush1.xpose.msra.mxu0 0.0
        %1365 = vmatprep.subr.mxu0 0.0
        %1366 = vmatpush1.xpose.msra.mxu0 0.0
        %1367 = vmatprep.subr.mxu0 0.0
        %1368 = vmatpush1.xpose.msra.mxu0 0.0
        %1369 = vmatprep.subr.mxu0 0.0
        %1370 = vmatpush1.xpose.msra.mxu0 0.0
        %1371 = vmatprep.subr.mxu0 0.0
        %1372 = vmatpush1.xpose.msra.mxu0 0.0
        %1373 = vmatprep.subr.mxu0 0.0
        %1374 = vmatpush1.xpose.msra.mxu0 0.0
        %1375 = vmatprep.subr.mxu0 0.0
        %1376 = vmatpush1.xpose.msra.mxu0 0.0
        %1377 = vmatprep.subr.mxu0 0.0
        %1378 = vmatpush1.xpose.msra.mxu0 0.0
        %1379 = vmatprep.subr.mxu0 0.0
        %1380 = vmatpush1.xpose.msra.mxu0 0.0
        %1381 = vmatprep.subr.mxu0 0.0
        %1382 = vmatpush1.xpose.msra.mxu0 0.0
        %1383 = vmatprep.subr.mxu0 0.0
        %1384 = vmatpush1.xpose.msra.mxu0 0.0
        %1385 = vmatprep.subr.mxu0 0.0
        %1386 = vmatpush1.xpose.msra.mxu0 0.0
        %1387 = vmatprep.subr.mxu0 0.0
        %1388 = vmatpush1.xpose.msra.mxu0 0.0
        %1389 = vmatprep.subr.mxu0 0.0
        %1390 = vmatpush1.xpose.msra.mxu0 0.0
        %1391 = vmatprep.subr.mxu0 0.0
        %1392 = vmatpush1.xpose.msra.mxu0 0.0
        %1393 = vmatprep.subr.mxu0 0.0
        %1394 = vmatpush1.xpose.msra.mxu0 0.0
        %1395 = vmatprep.subr.mxu0 0.0
        %1396 = vmatpush1.xpose.msra.mxu0 0.0
        %1397 = vmatprep.subr.mxu0 0.0
        %1398 = vmatpush1.xpose.msra.mxu0 0.0
        %1399 = vmatprep.subr.mxu0 0.0
        %1400 = vmatpush1.xpose.msra.mxu0 0.0
        %1401 = vmatprep.mubr.f32.mxu0 0.0
        %1402 = vmatmul.mubr.f32.gmra.mrb[0].mxu0 %v1333
        %v1403 = vpop.f32.mrb[0].mxu0
        %v1404 = vadd.f32 0.0, %v1403
        %v1405 = vpop.f32.mrb[0].mxu0
        %1406 = vdwg.mxu0
        %v1407 = vmul.f32 %v1404, 0.35355338
        %v1408 = vadd.f32 %v1407, %v994
        %v1409 = vsel %vm998, %v1408, -inf
        %1410 = vmax.xlane.f32.xlu0 %v1409
        %v1411 = vpop.xlane.xlu0 %1410
        %v1412 = vsub.f32 %v1408, %v1411
        %v1413 = vmul.f32 %v1412, 1.442695
        %v1414 = vpow.pop %v1413
        %v1415 = vsel %vm998, %v1414, 0.0
        %1416 = vadd.xlane.f32.xlu0 %v1415
        %v1417 = vpop.xlane.xlu0 %1416
        %v1418 = vrcp.pop %v1417
        %v1419 = vmul.f32 %v1414, %v1418
        %1420 = vrot.lane.b32.xlu0 %v981, 48
        %v1421 = vpop.permute.xlu0 %1420
        %v1424 = vsel %vm998, %v1419, 0
        %1426 = vmatprep.subr.mxu0 0.0
        %1427 = vmatpush1.msra.mxu0 %v1421
        %1428 = vmatprep.subr.mxu0 0.0
        %1429 = vmatpush1.msra.mxu0 0.0
        %1430 = vmatprep.subr.mxu0 0.0
        %1431 = vmatpush1.msra.mxu0 0.0
        %1432 = vmatprep.subr.mxu0 0.0
        %1433 = vmatpush1.msra.mxu0 0.0
        %1434 = vmatprep.subr.mxu0 0.0
        %1435 = vmatpush1.msra.mxu0 0.0
        %1436 = vmatprep.subr.mxu0 0.0
        %1437 = vmatpush1.msra.mxu0 0.0
        %1438 = vmatprep.subr.mxu0 0.0
        %1439 = vmatpush1.msra.mxu0 0.0
        %1440 = vmatprep.subr.mxu0 0.0
        %1441 = vmatpush1.msra.mxu0 0.0
        %1442 = vmatprep.subr.mxu0 0.0
        %1443 = vmatpush1.msra.mxu0 0.0
        %1444 = vmatprep.subr.mxu0 0.0
        %1445 = vmatpush1.msra.mxu0 0.0
        %1446 = vmatprep.subr.mxu0 0.0
        %1447 = vmatpush1.msra.mxu0 0.0
        %1448 = vmatprep.subr.mxu0 0.0
        %1449 = vmatpush1.msra.mxu0 0.0
        %1450 = vmatprep.subr.mxu0 0.0
        %1451 = vmatpush1.msra.mxu0 0.0
        %1452 = vmatprep.subr.mxu0 0.0
        %1453 = vmatpush1.msra.mxu0 0.0
        %1454 = vmatprep.subr.mxu0 0.0
        %1455 = vmatpush1.msra.mxu0 0.0
        %1456 = vmatprep.subr.mxu0 0.0
        %1457 = vmatpush1.msra.mxu0 0.0
        %1458 = vmatprep.subr.mxu0 0.0
        %1459 = vmatpush1.msra.mxu0 0.0
        %1460 = vmatprep.subr.mxu0 0.0
        %1461 = vmatpush1.msra.mxu0 0.0
        %1462 = vmatprep.subr.mxu0 0.0
        %1463 = vmatpush1.msra.mxu0 0.0
        %1464 = vmatprep.subr.mxu0 0.0
        %1465 = vmatpush1.msra.mxu0 0.0
        %1466 = vmatprep.subr.mxu0 0.0
        %1467 = vmatpush1.msra.mxu0 0.0
        %1468 = vmatprep.subr.mxu0 0.0
        %1469 = vmatpush1.msra.mxu0 0.0
        %1470 = vmatprep.subr.mxu0 0.0
        %1471 = vmatpush1.msra.mxu0 0.0
        %1472 = vmatprep.subr.mxu0 0.0
        %1473 = vmatpush1.msra.mxu0 0.0
        %1474 = vmatprep.subr.mxu0 0.0
        %1475 = vmatpush1.msra.mxu0 0.0
        %1476 = vmatprep.subr.mxu0 0.0
        %1477 = vmatpush1.msra.mxu0 0.0
        %1478 = vmatprep.subr.mxu0 0.0
        %1479 = vmatpush1.msra.mxu0 0.0
        %1480 = vmatprep.subr.mxu0 0.0
        %1481 = vmatpush1.msra.mxu0 0.0
        %1482 = vmatprep.subr.mxu0 0.0
        %1483 = vmatpush1.msra.mxu0 0.0
        %1484 = vmatprep.subr.mxu0 0.0
        %1485 = vmatpush1.msra.mxu0 0.0
        %1486 = vmatprep.subr.mxu0 0.0
        %1487 = vmatpush1.msra.mxu0 0.0
        %1488 = vmatprep.subr.mxu0 0.0
        %1489 = vmatpush1.msra.mxu0 0.0
        %1490 = vmatprep.mubr.f32.mxu0 0.0
        %1491 = vmatmul.mubr.f32.gmra.mrb[0].mxu0 %v1424
        %v1492 = vpop.f32.mrb[0].mxu0
        %v1493 = vadd.f32 0.0, %v1492
        %v1494 = vpop.f32.mrb[0].mxu0
        %1495 = vdwg.mxu0
        %1496 = vrot.lane.b32.xlu0 %v981, 104
        %v1497 = vpop.permute.xlu0 %1496
        %1498 = vrot.lane.b32.xlu0 %v981, 72
        %v1499 = vpop.permute.xlu0 %1498
        %v1500 = vsel %vm998, %v1497, 0
        %v1502 = vsel %vm998, %v1499, 0
        %1504 = vmatprep.subr.mxu0 0.0
        %1505 = vmatpush1.xpose.msra.mxu0 %v1502
        %1506 = vmatprep.subr.mxu0 0.0
        %1507 = vmatpush1.xpose.msra.mxu0 0.0
        %1508 = vmatprep.subr.mxu0 0.0
        %1509 = vmatpush1.xpose.msra.mxu0 0.0
        %1510 = vmatprep.subr.mxu0 0.0
        %1511 = vmatpush1.xpose.msra.mxu0 0.0
        %1512 = vmatprep.subr.mxu0 0.0
        %1513 = vmatpush1.xpose.msra.mxu0 0.0
        %1514 = vmatprep.subr.mxu0 0.0
        %1515 = vmatpush1.xpose.msra.mxu0 0.0
        %1516 = vmatprep.subr.mxu0 0.0
        %1517 = vmatpush1.xpose.msra.mxu0 0.0
        %1518 = vmatprep.subr.mxu0 0.0
        %1519 = vmatpush1.xpose.msra.mxu0 0.0
        %1520 = vmatprep.subr.mxu0 0.0
        %1521 = vmatpush1.xpose.msra.mxu0 0.0
        %1522 = vmatprep.subr.mxu0 0.0
        %1523 = vmatpush1.xpose.msra.mxu0 0.0
        %1524 = vmatprep.subr.mxu0 0.0
        %1525 = vmatpush1.xpose.msra.mxu0 0.0
        %1526 = vmatprep.subr.mxu0 0.0
        %1527 = vmatpush1.xpose.msra.mxu0 0.0
        %1528 = vmatprep.subr.mxu0 0.0
        %1529 = vmatpush1.xpose.msra.mxu0 0.0
        %1530 = vmatprep.subr.mxu0 0.0
        %1531 = vmatpush1.xpose.msra.mxu0 0.0
        %1532 = vmatprep.subr.mxu0 0.0
        %1533 = vmatpush1.xpose.msra.mxu0 0.0
        %1534 = vmatprep.subr.mxu0 0.0
        %1535 = vmatpush1.xpose.msra.mxu0 0.0
        %1536 = vmatprep.subr.mxu0 0.0
        %1537 = vmatpush1.xpose.msra.mxu0 0.0
        %1538 = vmatprep.subr.mxu0 0.0
        %1539 = vmatpush1.xpose.msra.mxu0 0.0
        %1540 = vmatprep.subr.mxu0 0.0
        %1541 = vmatpush1.xpose.msra.mxu0 0.0
        %1542 = vmatprep.subr.mxu0 0.0
        %1543 = vmatpush1.xpose.msra.mxu0 0.0
        %1544 = vmatprep.subr.mxu0 0.0
        %1545 = vmatpush1.xpose.msra.mxu0 0.0
        %1546 = vmatprep.subr.mxu0 0.0
        %1547 = vmatpush1.xpose.msra.mxu0 0.0
        %1548 = vmatprep.subr.mxu0 0.0
        %1549 = vmatpush1.xpose.msra.mxu0 0.0
        %1550 = vmatprep.subr.mxu0 0.0
        %1551 = vmatpush1.xpose.msra.mxu0 0.0
        %1552 = vmatprep.subr.mxu0 0.0
        %1553 = vmatpush1.xpose.msra.mxu0 0.0
        %1554 = vmatprep.subr.mxu0 0.0
        %1555 = vmatpush1.xpose.msra.mxu0 0.0
        %1556 = vmatprep.subr.mxu0 0.0
        %1557 = vmatpush1.xpose.msra.mxu0 0.0
        %1558 = vmatprep.subr.mxu0 0.0
        %1559 = vmatpush1.xpose.msra.mxu0 0.0
        %1560 = vmatprep.subr.mxu0 0.0
        %1561 = vmatpush1.xpose.msra.mxu0 0.0
        %1562 = vmatprep.subr.mxu0 0.0
        %1563 = vmatpush1.xpose.msra.mxu0 0.0
        %1564 = vmatprep.subr.mxu0 0.0
        %1565 = vmatpush1.xpose.msra.mxu0 0.0
        %1566 = vmatprep.subr.mxu0 0.0
        %1567 = vmatpush1.xpose.msra.mxu0 0.0
        %1568 = vmatprep.mubr.f32.mxu0 0.0
        %1569 = vmatmul.mubr.f32.gmra.mrb[0].mxu0 %v1500
        %v1570 = vpop.f32.mrb[0].mxu0
        %v1571 = vadd.f32 0.0, %v1570
        %v1572 = vpop.f32.mrb[0].mxu0
        %1573 = vdwg.mxu0
        %v1574 = vmul.f32 %v1571, 0.35355338
        %v1575 = vadd.f32 %v1574, %v994
        %v1576 = vsel %vm998, %v1575, -inf
        %1577 = vmax.xlane.f32.xlu0 %v1576
        %v1578 = vpop.xlane.xlu0 %1577
        %v1579 = vsub.f32 %v1575, %v1578
        %v1580 = vmul.f32 %v1579, 1.442695
        %v1581 = vpow.pop %v1580
        %v1582 = vsel %vm998, %v1581, 0.0
        %1583 = vadd.xlane.f32.xlu0 %v1582
        %v1584 = vpop.xlane.xlu0 %1583
        %v1585 = vrcp.pop %v1584
        %v1586 = vmul.f32 %v1581, %v1585
        %1587 = vrot.lane.b32.xlu0 %v981, 40
        %v1588 = vpop.permute.xlu0 %1587
        %v1591 = vsel %vm998, %v1586, 0
        %1593 = vmatprep.subr.mxu0 0.0
        %1594 = vmatpush1.msra.mxu0 %v1588
        %1595 = vmatprep.subr.mxu0 0.0
        %1596 = vmatpush1.msra.mxu0 0.0
        %1597 = vmatprep.subr.mxu0 0.0
        %1598 = vmatpush1.msra.mxu0 0.0
        %1599 = vmatprep.subr.mxu0 0.0
        %1600 = vmatpush1.msra.mxu0 0.0
        %1601 = vmatprep.subr.mxu0 0.0
        %1602 = vmatpush1.msra.mxu0 0.0
        %1603 = vmatprep.subr.mxu0 0.0
        %1604 = vmatpush1.msra.mxu0 0.0
        %1605 = vmatprep.subr.mxu0 0.0
        %1606 = vmatpush1.msra.mxu0 0.0
        %1607 = vmatprep.subr.mxu0 0.0
        %1608 = vmatpush1.msra.mxu0 0.0
        %1609 = vmatprep.subr.mxu0 0.0
        %1610 = vmatpush1.msra.mxu0 0.0
        %1611 = vmatprep.subr.mxu0 0.0
        %1612 = vmatpush1.msra.mxu0 0.0
        %1613 = vmatprep.subr.mxu0 0.0
        %1614 = vmatpush1.msra.mxu0 0.0
        %1615 = vmatprep.subr.mxu0 0.0
        %1616 = vmatpush1.msra.mxu0 0.0
        %1617 = vmatprep.subr.mxu0 0.0
        %1618 = vmatpush1.msra.mxu0 0.0
        %1619 = vmatprep.subr.mxu0 0.0
        %1620 = vmatpush1.msra.mxu0 0.0
        %1621 = vmatprep.subr.mxu0 0.0
        %1622 = vmatpush1.msra.mxu0 0.0
        %1623 = vmatprep.subr.mxu0 0.0
        %1624 = vmatpush1.msra.mxu0 0.0
        %1625 = vmatprep.subr.mxu0 0.0
        %1626 = vmatpush1.msra.mxu0 0.0
        %1627 = vmatprep.subr.mxu0 0.0
        %1628 = vmatpush1.msra.mxu0 0.0
        %1629 = vmatprep.subr.mxu0 0.0
        %1630 = vmatpush1.msra.mxu0 0.0
        %1631 = vmatprep.subr.mxu0 0.0
        %1632 = vmatpush1.msra.mxu0 0.0
        %1633 = vmatprep.subr.mxu0 0.0
        %1634 = vmatpush1.msra.mxu0 0.0
        %1635 = vmatprep.subr.mxu0 0.0
        %1636 = vmatpush1.msra.mxu0 0.0
        %1637 = vmatprep.subr.mxu0 0.0
        %1638 = vmatpush1.msra.mxu0 0.0
        %1639 = vmatprep.subr.mxu0 0.0
        %1640 = vmatpush1.msra.mxu0 0.0
        %1641 = vmatprep.subr.mxu0 0.0
        %1642 = vmatpush1.msra.mxu0 0.0
        %1643 = vmatprep.subr.mxu0 0.0
        %1644 = vmatpush1.msra.mxu0 0.0
        %1645 = vmatprep.subr.mxu0 0.0
        %1646 = vmatpush1.msra.mxu0 0.0
        %1647 = vmatprep.subr.mxu0 0.0
        %1648 = vmatpush1.msra.mxu0 0.0
        %1649 = vmatprep.subr.mxu0 0.0
        %1650 = vmatpush1.msra.mxu0 0.0
        %1651 = vmatprep.subr.mxu0 0.0
        %1652 = vmatpush1.msra.mxu0 0.0
        %1653 = vmatprep.subr.mxu0 0.0
        %1654 = vmatpush1.msra.mxu0 0.0
        %1655 = vmatprep.subr.mxu0 0.0
        %1656 = vmatpush1.msra.mxu0 0.0
        %1657 = vmatprep.mubr.f32.mxu0 0.0
        %1658 = vmatmul.mubr.f32.gmra.mrb[0].mxu0 %v1591
        %v1659 = vpop.f32.mrb[0].mxu0
        %v1660 = vadd.f32 0.0, %v1659
        %v1661 = vpop.f32.mrb[0].mxu0
        %1662 = vdwg.mxu0
        %1664 = vrot.lane.b32.xlu0 %v1326, 8
        %v1665 = vpop.permute.xlu0 %1664
        %1668 = vrot.lane.b32.xlu0 %v1493, 16
        %v1669 = vpop.permute.xlu0 %1668
        %1672 = vrot.lane.b32.xlu0 %v1660, 24
        %v1673 = vpop.permute.xlu0 %1672
        %v1675 = vsel %vm998, %v1159, %v1665
        %vm1676 = vcmask 130048
        %v1677 = vsel %vm1676, %v1675, %v1669
        %vm1678 = vcmask 195584
        %v1679 = vsel %vm1678, %v1677, %v1673
        %1681 = vrot.lane.b32.xlu0 %v986, 96
        %v1682 = vpop.permute.xlu0 %1681
        %v1683 = vsel %vm998, %v986, 0
        %v1685 = vsel %vm998, %v1682, 0
        %1687 = vmatprep.subr.mxu0 0.0
        %1688 = vmatpush1.xpose.msra.mxu0 %v1685
        %1689 = vmatprep.subr.mxu0 0.0
        %1690 = vmatpush1.xpose.msra.mxu0 0.0
        %1691 = vmatprep.subr.mxu0 0.0
        %1692 = vmatpush1.xpose.msra.mxu0 0.0
        %1693 = vmatprep.subr.mxu0 0.0
        %1694 = vmatpush1.xpose.msra.mxu0 0.0
        %1695 = vmatprep.subr.mxu0 0.0
        %1696 = vmatpush1.xpose.msra.mxu0 0.0
        %1697 = vmatprep.subr.mxu0 0.0
        %1698 = vmatpush1.xpose.msra.mxu0 0.0
        %1699 = vmatprep.subr.mxu0 0.0
        %1700 = vmatpush1.xpose.msra.mxu0 0.0
        %1701 = vmatprep.subr.mxu0 0.0
        %1702 = vmatpush1.xpose.msra.mxu0 0.0
        %1703 = vmatprep.subr.mxu0 0.0
        %1704 = vmatpush1.xpose.msra.mxu0 0.0
        %1705 = vmatprep.subr.mxu0 0.0
        %1706 = vmatpush1.xpose.msra.mxu0 0.0
        %1707 = vmatprep.subr.mxu0 0.0
        %1708 = vmatpush1.xpose.msra.mxu0 0.0
        %1709 = vmatprep.subr.mxu0 0.0
        %1710 = vmatpush1.xpose.msra.mxu0 0.0
        %1711 = vmatprep.subr.mxu0 0.0
        %1712 = vmatpush1.xpose.msra.mxu0 0.0
        %1713 = vmatprep.subr.mxu0 0.0
        %1714 = vmatpush1.xpose.msra.mxu0 0.0
        %1715 = vmatprep.subr.mxu0 0.0
        %1716 = vmatpush1.xpose.msra.mxu0 0.0
        %1717 = vmatprep.subr.mxu0 0.0
        %1718 = vmatpush1.xpose.msra.mxu0 0.0
        %1719 = vmatprep.subr.mxu0 0.0
        %1720 = vmatpush1.xpose.msra.mxu0 0.0
        %1721 = vmatprep.subr.mxu0 0.0
        %1722 = vmatpush1.xpose.msra.mxu0 0.0
        %1723 = vmatprep.subr.mxu0 0.0
        %1724 = vmatpush1.xpose.msra.mxu0 0.0
        %1725 = vmatprep.subr.mxu0 0.0
        %1726 = vmatpush1.xpose.msra.mxu0 0.0
        %1727 = vmatprep.subr.mxu0 0.0
        %1728 = vmatpush1.xpose.msra.mxu0 0.0
        %1729 = vmatprep.subr.mxu0 0.0
        %1730 = vmatpush1.xpose.msra.mxu0 0.0
        %1731 = vmatprep.subr.mxu0 0.0
        %1732 = vmatpush1.xpose.msra.mxu0 0.0
        %1733 = vmatprep.subr.mxu0 0.0
        %1734 = vmatpush1.xpose.msra.mxu0 0.0
        %1735 = vmatprep.subr.mxu0 0.0
        %1736 = vmatpush1.xpose.msra.mxu0 0.0
        %1737 = vmatprep.subr.mxu0 0.0
        %1738 = vmatpush1.xpose.msra.mxu0 0.0
        %1739 = vmatprep.subr.mxu0 0.0
        %1740 = vmatpush1.xpose.msra.mxu0 0.0
        %1741 = vmatprep.subr.mxu0 0.0
        %1742 = vmatpush1.xpose.msra.mxu0 0.0
        %1743 = vmatprep.subr.mxu0 0.0
        %1744 = vmatpush1.xpose.msra.mxu0 0.0
        %1745 = vmatprep.subr.mxu0 0.0
        %1746 = vmatpush1.xpose.msra.mxu0 0.0
        %1747 = vmatprep.subr.mxu0 0.0
        %1748 = vmatpush1.xpose.msra.mxu0 0.0
        %1749 = vmatprep.subr.mxu0 0.0
        %1750 = vmatpush1.xpose.msra.mxu0 0.0
        %1751 = vmatprep.mubr.f32.mxu0 0.0
        %1752 = vmatmul.mubr.f32.gmra.mrb[0].mxu0 %v1683
        %v1753 = vpop.f32.mrb[0].mxu0
        %v1754 = vadd.f32 0.0, %v1753
        %v1755 = vpop.f32.mrb[0].mxu0
        %1756 = vdwg.mxu0
        %v1757 = vmul.f32 %v1754, 0.35355338
        %v1758 = vadd.f32 %v1757, %v994
        %v1759 = vsel %vm998, %v1758, -inf
        %1760 = vmax.xlane.f32.xlu0 %v1759
        %v1761 = vpop.xlane.xlu0 %1760
        %v1762 = vsub.f32 %v1758, %v1761
        %v1763 = vmul.f32 %v1762, 1.442695
        %v1764 = vpow.pop %v1763
        %v1765 = vsel %vm998, %v1764, 0.0
        %1766 = vadd.xlane.f32.xlu0 %v1765
        %v1767 = vpop.xlane.xlu0 %1766
        %v1768 = vrcp.pop %v1767
        %v1769 = vmul.f32 %v1764, %v1768
        %1770 = vrot.lane.b32.xlu0 %v986, 64
        %v1771 = vpop.permute.xlu0 %1770
        %v1774 = vsel %vm998, %v1769, 0
        %1776 = vmatprep.subr.mxu0 0.0
        %1777 = vmatpush1.msra.mxu0 %v1771
        %1778 = vmatprep.subr.mxu0 0.0
        %1779 = vmatpush1.msra.mxu0 0.0
        %1780 = vmatprep.subr.mxu0 0.0
        %1781 = vmatpush1.msra.mxu0 0.0
        %1782 = vmatprep.subr.mxu0 0.0
        %1783 = vmatpush1.msra.mxu0 0.0
        %1784 = vmatprep.subr.mxu0 0.0
        %1785 = vmatpush1.msra.mxu0 0.0
        %1786 = vmatprep.subr.mxu0 0.0
        %1787 = vmatpush1.msra.mxu0 0.0
        %1788 = vmatprep.subr.mxu0 0.0
        %1789 = vmatpush1.msra.mxu0 0.0
        %1790 = vmatprep.subr.mxu0 0.0
        %1791 = vmatpush1.msra.mxu0 0.0
        %1792 = vmatprep.subr.mxu0 0.0
        %1793 = vmatpush1.msra.mxu0 0.0
        %1794 = vmatprep.subr.mxu0 0.0
        %1795 = vmatpush1.msra.mxu0 0.0
        %1796 = vmatprep.subr.mxu0 0.0
        %1797 = vmatpush1.msra.mxu0 0.0
        %1798 = vmatprep.subr.mxu0 0.0
        %1799 = vmatpush1.msra.mxu0 0.0
        %1800 = vmatprep.subr.mxu0 0.0
        %1801 = vmatpush1.msra.mxu0 0.0
        %1802 = vmatprep.subr.mxu0 0.0
        %1803 = vmatpush1.msra.mxu0 0.0
        %1804 = vmatprep.subr.mxu0 0.0
        %1805 = vmatpush1.msra.mxu0 0.0
        %1806 = vmatprep.subr.mxu0 0.0
        %1807 = vmatpush1.msra.mxu0 0.0
        %1808 = vmatprep.subr.mxu0 0.0
        %1809 = vmatpush1.msra.mxu0 0.0
        %1810 = vmatprep.subr.mxu0 0.0
        %1811 = vmatpush1.msra.mxu0 0.0
        %1812 = vmatprep.subr.mxu0 0.0
        %1813 = vmatpush1.msra.mxu0 0.0
        %1814 = vmatprep.subr.mxu0 0.0
        %1815 = vmatpush1.msra.mxu0 0.0
        %1816 = vmatprep.subr.mxu0 0.0
        %1817 = vmatpush1.msra.mxu0 0.0
        %1818 = vmatprep.subr.mxu0 0.0
        %1819 = vmatpush1.msra.mxu0 0.0
        %1820 = vmatprep.subr.mxu0 0.0
        %1821 = vmatpush1.msra.mxu0 0.0
        %1822 = vmatprep.subr.mxu0 0.0
        %1823 = vmatpush1.msra.mxu0 0.0
        %1824 = vmatprep.subr.mxu0 0.0
        %1825 = vmatpush1.msra.mxu0 0.0
        %1826 = vmatprep.subr.mxu0 0.0
        %1827 = vmatpush1.msra.mxu0 0.0
        %1828 = vmatprep.subr.mxu0 0.0
        %1829 = vmatpush1.msra.mxu0 0.0
        %1830 = vmatprep.subr.mxu0 0.0
        %1831 = vmatpush1.msra.mxu0 0.0
        %1832 = vmatprep.subr.mxu0 0.0
        %1833 = vmatpush1.msra.mxu0 0.0
        %1834 = vmatprep.subr.mxu0 0.0
        %1835 = vmatpush1.msra.mxu0 0.0
        %1836 = vmatprep.subr.mxu0 0.0
        %1837 = vmatpush1.msra.mxu0 0.0
        %1838 = vmatprep.subr.mxu0 0.0
        %1839 = vmatpush1.msra.mxu0 0.0
        %1840 = vmatprep.mubr.f32.mxu0 0.0
        %1841 = vmatmul.mubr.f32.gmra.mrb[0].mxu0 %v1774
        %v1842 = vpop.f32.mrb[0].mxu0
        %v1843 = vadd.f32 0.0, %v1842
        %v1844 = vpop.f32.mrb[0].mxu0
        %1845 = vdwg.mxu0
        %1846 = vrot.lane.b32.xlu0 %v986, 120
        %v1847 = vpop.permute.xlu0 %1846
        %1848 = vrot.lane.b32.xlu0 %v986, 88
        %v1849 = vpop.permute.xlu0 %1848
        %v1850 = vsel %vm998, %v1847, 0
        %v1852 = vsel %vm998, %v1849, 0
        %1854 = vmatprep.subr.mxu0 0.0
        %1855 = vmatpush1.xpose.msra.mxu0 %v1852
        %1856 = vmatprep.subr.mxu0 0.0
        %1857 = vmatpush1.xpose.msra.mxu0 0.0
        %1858 = vmatprep.subr.mxu0 0.0
        %1859 = vmatpush1.xpose.msra.mxu0 0.0
        %1860 = vmatprep.subr.mxu0 0.0
        %1861 = vmatpush1.xpose.msra.mxu0 0.0
        %1862 = vmatprep.subr.mxu0 0.0
        %1863 = vmatpush1.xpose.msra.mxu0 0.0
        %1864 = vmatprep.subr.mxu0 0.0
        %1865 = vmatpush1.xpose.msra.mxu0 0.0
        %1866 = vmatprep.subr.mxu0 0.0
        %1867 = vmatpush1.xpose.msra.mxu0 0.0
        %1868 = vmatprep.subr.mxu0 0.0
        %1869 = vmatpush1.xpose.msra.mxu0 0.0
        %1870 = vmatprep.subr.mxu0 0.0
        %1871 = vmatpush1.xpose.msra.mxu0 0.0
        %1872 = vmatprep.subr.mxu0 0.0
        %1873 = vmatpush1.xpose.msra.mxu0 0.0
        %1874 = vmatprep.subr.mxu0 0.0
        %1875 = vmatpush1.xpose.msra.mxu0 0.0
        %1876 = vmatprep.subr.mxu0 0.0
        %1877 = vmatpush1.xpose.msra.mxu0 0.0
        %1878 = vmatprep.subr.mxu0 0.0
        %1879 = vmatpush1.xpose.msra.mxu0 0.0
        %1880 = vmatprep.subr.mxu0 0.0
        %1881 = vmatpush1.xpose.msra.mxu0 0.0
        %1882 = vmatprep.subr.mxu0 0.0
        %1883 = vmatpush1.xpose.msra.mxu0 0.0
        %1884 = vmatprep.subr.mxu0 0.0
        %1885 = vmatpush1.xpose.msra.mxu0 0.0
        %1886 = vmatprep.subr.mxu0 0.0
        %1887 = vmatpush1.xpose.msra.mxu0 0.0
        %1888 = vmatprep.subr.mxu0 0.0
        %1889 = vmatpush1.xpose.msra.mxu0 0.0
        %1890 = vmatprep.subr.mxu0 0.0
        %1891 = vmatpush1.xpose.msra.mxu0 0.0
        %1892 = vmatprep.subr.mxu0 0.0
        %1893 = vmatpush1.xpose.msra.mxu0 0.0
        %1894 = vmatprep.subr.mxu0 0.0
        %1895 = vmatpush1.xpose.msra.mxu0 0.0
        %1896 = vmatprep.subr.mxu0 0.0
        %1897 = vmatpush1.xpose.msra.mxu0 0.0
        %1898 = vmatprep.subr.mxu0 0.0
        %1899 = vmatpush1.xpose.msra.mxu0 0.0
        %1900 = vmatprep.subr.mxu0 0.0
        %1901 = vmatpush1.xpose.msra.mxu0 0.0
        %1902 = vmatprep.subr.mxu0 0.0
        %1903 = vmatpush1.xpose.msra.mxu0 0.0
        %1904 = vmatprep.subr.mxu0 0.0
        %1905 = vmatpush1.xpose.msra.mxu0 0.0
        %1906 = vmatprep.subr.mxu0 0.0
        %1907 = vmatpush1.xpose.msra.mxu0 0.0
        %1908 = vmatprep.subr.mxu0 0.0
        %1909 = vmatpush1.xpose.msra.mxu0 0.0
        %1910 = vmatprep.subr.mxu0 0.0
        %1911 = vmatpush1.xpose.msra.mxu0 0.0
        %1912 = vmatprep.subr.mxu0 0.0
        %1913 = vmatpush1.xpose.msra.mxu0 0.0
        %1914 = vmatprep.subr.mxu0 0.0
        %1915 = vmatpush1.xpose.msra.mxu0 0.0
        %1916 = vmatprep.subr.mxu0 0.0
        %1917 = vmatpush1.xpose.msra.mxu0 0.0
        %1918 = vmatprep.mubr.f32.mxu0 0.0
        %1919 = vmatmul.mubr.f32.gmra.mrb[0].mxu0 %v1850
        %v1920 = vpop.f32.mrb[0].mxu0
        %v1921 = vadd.f32 0.0, %v1920
        %v1922 = vpop.f32.mrb[0].mxu0
        %1923 = vdwg.mxu0
        %v1924 = vmul.f32 %v1921, 0.35355338
        %v1925 = vadd.f32 %v1924, %v994
        %v1926 = vsel %vm998, %v1925, -inf
        %1927 = vmax.xlane.f32.xlu0 %v1926
        %v1928 = vpop.xlane.xlu0 %1927
        %v1929 = vsub.f32 %v1925, %v1928
        %v1930 = vmul.f32 %v1929, 1.442695
        %v1931 = vpow.pop %v1930
        %v1932 = vsel %vm998, %v1931, 0.0
        %1933 = vadd.xlane.f32.xlu0 %v1932
        %v1934 = vpop.xlane.xlu0 %1933
        %v1935 = vrcp.pop %v1934
        %v1936 = vmul.f32 %v1931, %v1935
        %1937 = vrot.lane.b32.xlu0 %v986, 56
        %v1938 = vpop.permute.xlu0 %1937
        %v1941 = vsel %vm998, %v1936, 0
        %1943 = vmatprep.subr.mxu0 0.0
        %1944 = vmatpush1.msra.mxu0 %v1938
        %1945 = vmatprep.subr.mxu0 0.0
        %1946 = vmatpush1.msra.mxu0 0.0
        %1947 = vmatprep.subr.mxu0 0.0
        %1948 = vmatpush1.msra.mxu0 0.0
        %1949 = vmatprep.subr.mxu0 0.0
        %1950 = vmatpush1.msra.mxu0 0.0
        %1951 = vmatprep.subr.mxu0 0.0
        %1952 = vmatpush1.msra.mxu0 0.0
        %1953 = vmatprep.subr.mxu0 0.0
        %1954 = vmatpush1.msra.mxu0 0.0
        %1955 = vmatprep.subr.mxu0 0.0
        %1956 = vmatpush1.msra.mxu0 0.0
        %1957 = vmatprep.subr.mxu0 0.0
        %1958 = vmatpush1.msra.mxu0 0.0
        %1959 = vmatprep.subr.mxu0 0.0
        %1960 = vmatpush1.msra.mxu0 0.0
        %1961 = vmatprep.subr.mxu0 0.0
        %1962 = vmatpush1.msra.mxu0 0.0
        %1963 = vmatprep.subr.mxu0 0.0
        %1964 = vmatpush1.msra.mxu0 0.0
        %1965 = vmatprep.subr.mxu0 0.0
        %1966 = vmatpush1.msra.mxu0 0.0
        %1967 = vmatprep.subr.mxu0 0.0
        %1968 = vmatpush1.msra.mxu0 0.0
        %1969 = vmatprep.subr.mxu0 0.0
        %1970 = vmatpush1.msra.mxu0 0.0
        %1971 = vmatprep.subr.mxu0 0.0
        %1972 = vmatpush1.msra.mxu0 0.0
        %1973 = vmatprep.subr.mxu0 0.0
        %1974 = vmatpush1.msra.mxu0 0.0
        %1975 = vmatprep.subr.mxu0 0.0
        %1976 = vmatpush1.msra.mxu0 0.0
        %1977 = vmatprep.subr.mxu0 0.0
        %1978 = vmatpush1.msra.mxu0 0.0
        %1979 = vmatprep.subr.mxu0 0.0
        %1980 = vmatpush1.msra.mxu0 0.0
        %1981 = vmatprep.subr.mxu0 0.0
        %1982 = vmatpush1.msra.mxu0 0.0
        %1983 = vmatprep.subr.mxu0 0.0
        %1984 = vmatpush1.msra.mxu0 0.0
        %1985 = vmatprep.subr.mxu0 0.0
        %1986 = vmatpush1.msra.mxu0 0.0
        %1987 = vmatprep.subr.mxu0 0.0
        %1988 = vmatpush1.msra.mxu0 0.0
        %1989 = vmatprep.subr.mxu0 0.0
        %1990 = vmatpush1.msra.mxu0 0.0
        %1991 = vmatprep.subr.mxu0 0.0
        %1992 = vmatpush1.msra.mxu0 0.0
        %1993 = vmatprep.subr.mxu0 0.0
        %1994 = vmatpush1.msra.mxu0 0.0
        %1995 = vmatprep.subr.mxu0 0.0
        %1996 = vmatpush1.msra.mxu0 0.0
        %1997 = vmatprep.subr.mxu0 0.0
        %1998 = vmatpush1.msra.mxu0 0.0
        %1999 = vmatprep.subr.mxu0 0.0
        %2000 = vmatpush1.msra.mxu0 0.0
        %2001 = vmatprep.subr.mxu0 0.0
        %2002 = vmatpush1.msra.mxu0 0.0
        %2003 = vmatprep.subr.mxu0 0.0
        %2004 = vmatpush1.msra.mxu0 0.0
        %2005 = vmatprep.subr.mxu0 0.0
        %2006 = vmatpush1.msra.mxu0 0.0
        %2007 = vmatprep.mubr.f32.mxu0 0.0
        %2008 = vmatmul.mubr.f32.gmra.mrb[0].mxu0 %v1941
        %v2009 = vpop.f32.mrb[0].mxu0
        %v2010 = vadd.f32 0.0, %v2009
        %v2011 = vpop.f32.mrb[0].mxu0
        %2012 = vdwg.mxu0
        %2013 = vrot.lane.b32.xlu0 %v986, 112
        %v2014 = vpop.permute.xlu0 %2013
        %2015 = vrot.lane.b32.xlu0 %v986, 80
        %v2016 = vpop.permute.xlu0 %2015
        %v2017 = vsel %vm998, %v2014, 0
        %v2019 = vsel %vm998, %v2016, 0
        %2021 = vmatprep.subr.mxu0 0.0
        %2022 = vmatpush1.xpose.msra.mxu0 %v2019
        %2023 = vmatprep.subr.mxu0 0.0
        %2024 = vmatpush1.xpose.msra.mxu0 0.0
        %2025 = vmatprep.subr.mxu0 0.0
        %2026 = vmatpush1.xpose.msra.mxu0 0.0
        %2027 = vmatprep.subr.mxu0 0.0
        %2028 = vmatpush1.xpose.msra.mxu0 0.0
        %2029 = vmatprep.subr.mxu0 0.0
        %2030 = vmatpush1.xpose.msra.mxu0 0.0
        %2031 = vmatprep.subr.mxu0 0.0
        %2032 = vmatpush1.xpose.msra.mxu0 0.0
        %2033 = vmatprep.subr.mxu0 0.0
        %2034 = vmatpush1.xpose.msra.mxu0 0.0
        %2035 = vmatprep.subr.mxu0 0.0
        %2036 = vmatpush1.xpose.msra.mxu0 0.0
        %2037 = vmatprep.subr.mxu0 0.0
        %2038 = vmatpush1.xpose.msra.mxu0 0.0
        %2039 = vmatprep.subr.mxu0 0.0
        %2040 = vmatpush1.xpose.msra.mxu0 0.0
        %2041 = vmatprep.subr.mxu0 0.0
        %2042 = vmatpush1.xpose.msra.mxu0 0.0
        %2043 = vmatprep.subr.mxu0 0.0
        %2044 = vmatpush1.xpose.msra.mxu0 0.0
        %2045 = vmatprep.subr.mxu0 0.0
        %2046 = vmatpush1.xpose.msra.mxu0 0.0
        %2047 = vmatprep.subr.mxu0 0.0
        %2048 = vmatpush1.xpose.msra.mxu0 0.0
        %2049 = vmatprep.subr.mxu0 0.0
        %2050 = vmatpush1.xpose.msra.mxu0 0.0
        %2051 = vmatprep.subr.mxu0 0.0
        %2052 = vmatpush1.xpose.msra.mxu0 0.0
        %2053 = vmatprep.subr.mxu0 0.0
        %2054 = vmatpush1.xpose.msra.mxu0 0.0
        %2055 = vmatprep.subr.mxu0 0.0
        %2056 = vmatpush1.xpose.msra.mxu0 0.0
        %2057 = vmatprep.subr.mxu0 0.0
        %2058 = vmatpush1.xpose.msra.mxu0 0.0
        %2059 = vmatprep.subr.mxu0 0.0
        %2060 = vmatpush1.xpose.msra.mxu0 0.0
        %2061 = vmatprep.subr.mxu0 0.0
        %2062 = vmatpush1.xpose.msra.mxu0 0.0
        %2063 = vmatprep.subr.mxu0 0.0
        %2064 = vmatpush1.xpose.msra.mxu0 0.0
        %2065 = vmatprep.subr.mxu0 0.0
        %2066 = vmatpush1.xpose.msra.mxu0 0.0
        %2067 = vmatprep.subr.mxu0 0.0
        %2068 = vmatpush1.xpose.msra.mxu0 0.0
        %2069 = vmatprep.subr.mxu0 0.0
        %2070 = vmatpush1.xpose.msra.mxu0 0.0
        %2071 = vmatprep.subr.mxu0 0.0
        %2072 = vmatpush1.xpose.msra.mxu0 0.0
        %2073 = vmatprep.subr.mxu0 0.0
        %2074 = vmatpush1.xpose.msra.mxu0 0.0
        %2075 = vmatprep.subr.mxu0 0.0
        %2076 = vmatpush1.xpose.msra.mxu0 0.0
        %2077 = vmatprep.subr.mxu0 0.0
        %2078 = vmatpush1.xpose.msra.mxu0 0.0
        %2079 = vmatprep.subr.mxu0 0.0
        %2080 = vmatpush1.xpose.msra.mxu0 0.0
        %2081 = vmatprep.subr.mxu0 0.0
        %2082 = vmatpush1.xpose.msra.mxu0 0.0
        %2083 = vmatprep.subr.mxu0 0.0
        %2084 = vmatpush1.xpose.msra.mxu0 0.0
        %2085 = vmatprep.mubr.f32.mxu0 0.0
        %2086 = vmatmul.mubr.f32.gmra.mrb[0].mxu0 %v2017
        %v2087 = vpop.f32.mrb[0].mxu0
        %v2088 = vadd.f32 0.0, %v2087
        %v2089 = vpop.f32.mrb[0].mxu0
        %2090 = vdwg.mxu0
        %v2091 = vmul.f32 %v2088, 0.35355338
        %v2092 = vadd.f32 %v2091, %v994
        %v2093 = vsel %vm998, %v2092, -inf
        %2094 = vmax.xlane.f32.xlu0 %v2093
        %v2095 = vpop.xlane.xlu0 %2094
        %v2096 = vsub.f32 %v2092, %v2095
        %v2097 = vmul.f32 %v2096, 1.442695
        %v2098 = vpow.pop %v2097
        %v2099 = vsel %vm998, %v2098, 0.0
        %2100 = vadd.xlane.f32.xlu0 %v2099
        %v2101 = vpop.xlane.xlu0 %2100
        %v2102 = vrcp.pop %v2101
        %v2103 = vmul.f32 %v2098, %v2102
        %2104 = vrot.lane.b32.xlu0 %v986, 48
        %v2105 = vpop.permute.xlu0 %2104
        %v2108 = vsel %vm998, %v2103, 0
        %2110 = vmatprep.subr.mxu0 0.0
        %2111 = vmatpush1.msra.mxu0 %v2105
        %2112 = vmatprep.subr.mxu0 0.0
        %2113 = vmatpush1.msra.mxu0 0.0
        %2114 = vmatprep.subr.mxu0 0.0
        %2115 = vmatpush1.msra.mxu0 0.0
        %2116 = vmatprep.subr.mxu0 0.0
        %2117 = vmatpush1.msra.mxu0 0.0
        %2118 = vmatprep.subr.mxu0 0.0
        %2119 = vmatpush1.msra.mxu0 0.0
        %2120 = vmatprep.subr.mxu0 0.0
        %2121 = vmatpush1.msra.mxu0 0.0
        %2122 = vmatprep.subr.mxu0 0.0
        %2123 = vmatpush1.msra.mxu0 0.0
        %2124 = vmatprep.subr.mxu0 0.0
        %2125 = vmatpush1.msra.mxu0 0.0
        %2126 = vmatprep.subr.mxu0 0.0
        %2127 = vmatpush1.msra.mxu0 0.0
        %2128 = vmatprep.subr.mxu0 0.0
        %2129 = vmatpush1.msra.mxu0 0.0
        %2130 = vmatprep.subr.mxu0 0.0
        %2131 = vmatpush1.msra.mxu0 0.0
        %2132 = vmatprep.subr.mxu0 0.0
        %2133 = vmatpush1.msra.mxu0 0.0
        %2134 = vmatprep.subr.mxu0 0.0
        %2135 = vmatpush1.msra.mxu0 0.0
        %2136 = vmatprep.subr.mxu0 0.0
        %2137 = vmatpush1.msra.mxu0 0.0
        %2138 = vmatprep.subr.mxu0 0.0
        %2139 = vmatpush1.msra.mxu0 0.0
        %2140 = vmatprep.subr.mxu0 0.0
        %2141 = vmatpush1.msra.mxu0 0.0
        %2142 = vmatprep.subr.mxu0 0.0
        %2143 = vmatpush1.msra.mxu0 0.0
        %2144 = vmatprep.subr.mxu0 0.0
        %2145 = vmatpush1.msra.mxu0 0.0
        %2146 = vmatprep.subr.mxu0 0.0
        %2147 = vmatpush1.msra.mxu0 0.0
        %2148 = vmatprep.subr.mxu0 0.0
        %2149 = vmatpush1.msra.mxu0 0.0
        %2150 = vmatprep.subr.mxu0 0.0
        %2151 = vmatpush1.msra.mxu0 0.0
        %2152 = vmatprep.subr.mxu0 0.0
        %2153 = vmatpush1.msra.mxu0 0.0
        %2154 = vmatprep.subr.mxu0 0.0
        %2155 = vmatpush1.msra.mxu0 0.0
        %2156 = vmatprep.subr.mxu0 0.0
        %2157 = vmatpush1.msra.mxu0 0.0
        %2158 = vmatprep.subr.mxu0 0.0
        %2159 = vmatpush1.msra.mxu0 0.0
        %2160 = vmatprep.subr.mxu0 0.0
        %2161 = vmatpush1.msra.mxu0 0.0
        %2162 = vmatprep.subr.mxu0 0.0
        %2163 = vmatpush1.msra.mxu0 0.0
        %2164 = vmatprep.subr.mxu0 0.0
        %2165 = vmatpush1.msra.mxu0 0.0
        %2166 = vmatprep.subr.mxu0 0.0
        %2167 = vmatpush1.msra.mxu0 0.0
        %2168 = vmatprep.subr.mxu0 0.0
        %2169 = vmatpush1.msra.mxu0 0.0
        %2170 = vmatprep.subr.mxu0 0.0
        %2171 = vmatpush1.msra.mxu0 0.0
        %2172 = vmatprep.subr.mxu0 0.0
        %2173 = vmatpush1.msra.mxu0 0.0
        %2174 = vmatprep.mubr.f32.mxu0 0.0
        %2175 = vmatmul.mubr.f32.gmra.mrb[0].mxu0 %v2108
        %v2176 = vpop.f32.mrb[0].mxu0
        %v2177 = vadd.f32 0.0, %v2176
        %v2178 = vpop.f32.mrb[0].mxu0
        %2179 = vdwg.mxu0
        %2180 = vrot.lane.b32.xlu0 %v986, 104
        %v2181 = vpop.permute.xlu0 %2180
        %2182 = vrot.lane.b32.xlu0 %v986, 72
        %v2183 = vpop.permute.xlu0 %2182
        %v2184 = vsel %vm998, %v2181, 0
        %v2186 = vsel %vm998, %v2183, 0
        %2188 = vmatprep.subr.mxu0 0.0
        %2189 = vmatpush1.xpose.msra.mxu0 %v2186
        %2190 = vmatprep.subr.mxu0 0.0
        %2191 = vmatpush1.xpose.msra.mxu0 0.0
        %2192 = vmatprep.subr.mxu0 0.0
        %2193 = vmatpush1.xpose.msra.mxu0 0.0
        %2194 = vmatprep.subr.mxu0 0.0
        %2195 = vmatpush1.xpose.msra.mxu0 0.0
        %2196 = vmatprep.subr.mxu0 0.0
        %2197 = vmatpush1.xpose.msra.mxu0 0.0
        %2198 = vmatprep.subr.mxu0 0.0
        %2199 = vmatpush1.xpose.msra.mxu0 0.0
        %2200 = vmatprep.subr.mxu0 0.0
        %2201 = vmatpush1.xpose.msra.mxu0 0.0
        %2202 = vmatprep.subr.mxu0 0.0
        %2203 = vmatpush1.xpose.msra.mxu0 0.0
        %2204 = vmatprep.subr.mxu0 0.0
        %2205 = vmatpush1.xpose.msra.mxu0 0.0
        %2206 = vmatprep.subr.mxu0 0.0
        %2207 = vmatpush1.xpose.msra.mxu0 0.0
        %2208 = vmatprep.subr.mxu0 0.0
        %2209 = vmatpush1.xpose.msra.mxu0 0.0
        %2210 = vmatprep.subr.mxu0 0.0
        %2211 = vmatpush1.xpose.msra.mxu0 0.0
        %2212 = vmatprep.subr.mxu0 0.0
        %2213 = vmatpush1.xpose.msra.mxu0 0.0
        %2214 = vmatprep.subr.mxu0 0.0
        %2215 = vmatpush1.xpose.msra.mxu0 0.0
        %2216 = vmatprep.subr.mxu0 0.0
        %2217 = vmatpush1.xpose.msra.mxu0 0.0
        %2218 = vmatprep.subr.mxu0 0.0
        %2219 = vmatpush1.xpose.msra.mxu0 0.0
        %2220 = vmatprep.subr.mxu0 0.0
        %2221 = vmatpush1.xpose.msra.mxu0 0.0
        %2222 = vmatprep.subr.mxu0 0.0
        %2223 = vmatpush1.xpose.msra.mxu0 0.0
        %2224 = vmatprep.subr.mxu0 0.0
        %2225 = vmatpush1.xpose.msra.mxu0 0.0
        %2226 = vmatprep.subr.mxu0 0.0
        %2227 = vmatpush1.xpose.msra.mxu0 0.0
        %2228 = vmatprep.subr.mxu0 0.0
        %2229 = vmatpush1.xpose.msra.mxu0 0.0
        %2230 = vmatprep.subr.mxu0 0.0
        %2231 = vmatpush1.xpose.msra.mxu0 0.0
        %2232 = vmatprep.subr.mxu0 0.0
        %2233 = vmatpush1.xpose.msra.mxu0 0.0
        %2234 = vmatprep.subr.mxu0 0.0
        %2235 = vmatpush1.xpose.msra.mxu0 0.0
        %2236 = vmatprep.subr.mxu0 0.0
        %2237 = vmatpush1.xpose.msra.mxu0 0.0
        %2238 = vmatprep.subr.mxu0 0.0
        %2239 = vmatpush1.xpose.msra.mxu0 0.0
        %2240 = vmatprep.subr.mxu0 0.0
        %2241 = vmatpush1.xpose.msra.mxu0 0.0
        %2242 = vmatprep.subr.mxu0 0.0
        %2243 = vmatpush1.xpose.msra.mxu0 0.0
        %2244 = vmatprep.subr.mxu0 0.0
        %2245 = vmatpush1.xpose.msra.mxu0 0.0
        %2246 = vmatprep.subr.mxu0 0.0
        %2247 = vmatpush1.xpose.msra.mxu0 0.0
        %2248 = vmatprep.subr.mxu0 0.0
        %2249 = vmatpush1.xpose.msra.mxu0 0.0
        %2250 = vmatprep.subr.mxu0 0.0
        %2251 = vmatpush1.xpose.msra.mxu0 0.0
        %2252 = vmatprep.mubr.f32.mxu0 0.0
        %2253 = vmatmul.mubr.f32.gmra.mrb[0].mxu0 %v2184
        %v2254 = vpop.f32.mrb[0].mxu0
        %v2255 = vadd.f32 0.0, %v2254
        %v2256 = vpop.f32.mrb[0].mxu0
        %2257 = vdwg.mxu0
        %v2258 = vmul.f32 %v2255, 0.35355338
        %v2259 = vadd.f32 %v2258, %v994
        %v2260 = vsel %vm998, %v2259, -inf
        %2261 = vmax.xlane.f32.xlu0 %v2260
        %v2262 = vpop.xlane.xlu0 %2261
        %v2263 = vsub.f32 %v2259, %v2262
        %v2264 = vmul.f32 %v2263, 1.442695
        %v2265 = vpow.pop %v2264
        %v2266 = vsel %vm998, %v2265, 0.0
        %2267 = vadd.xlane.f32.xlu0 %v2266
        %v2268 = vpop.xlane.xlu0 %2267
        %v2269 = vrcp.pop %v2268
        %v2270 = vmul.f32 %v2265, %v2269
        %2271 = vrot.lane.b32.xlu0 %v986, 40
        %v2272 = vpop.permute.xlu0 %2271
        %v2275 = vsel %vm998, %v2270, 0
        %2277 = vmatprep.subr.mxu0 0.0
        %2278 = vmatpush1.msra.mxu0 %v2272
        %2279 = vmatprep.subr.mxu0 0.0
        %2280 = vmatpush1.msra.mxu0 0.0
        %2281 = vmatprep.subr.mxu0 0.0
        %2282 = vmatpush1.msra.mxu0 0.0
        %2283 = vmatprep.subr.mxu0 0.0
        %2284 = vmatpush1.msra.mxu0 0.0
        %2285 = vmatprep.subr.mxu0 0.0
        %2286 = vmatpush1.msra.mxu0 0.0
        %2287 = vmatprep.subr.mxu0 0.0
        %2288 = vmatpush1.msra.mxu0 0.0
        %2289 = vmatprep.subr.mxu0 0.0
        %2290 = vmatpush1.msra.mxu0 0.0
        %2291 = vmatprep.subr.mxu0 0.0
        %2292 = vmatpush1.msra.mxu0 0.0
        %2293 = vmatprep.subr.mxu0 0.0
        %2294 = vmatpush1.msra.mxu0 0.0
        %2295 = vmatprep.subr.mxu0 0.0
        %2296 = vmatpush1.msra.mxu0 0.0
        %2297 = vmatprep.subr.mxu0 0.0
        %2298 = vmatpush1.msra.mxu0 0.0
        %2299 = vmatprep.subr.mxu0 0.0
        %2300 = vmatpush1.msra.mxu0 0.0
        %2301 = vmatprep.subr.mxu0 0.0
        %2302 = vmatpush1.msra.mxu0 0.0
        %2303 = vmatprep.subr.mxu0 0.0
        %2304 = vmatpush1.msra.mxu0 0.0
        %2305 = vmatprep.subr.mxu0 0.0
        %2306 = vmatpush1.msra.mxu0 0.0
        %2307 = vmatprep.subr.mxu0 0.0
        %2308 = vmatpush1.msra.mxu0 0.0
        %2309 = vmatprep.subr.mxu0 0.0
        %2310 = vmatpush1.msra.mxu0 0.0
        %2311 = vmatprep.subr.mxu0 0.0
        %2312 = vmatpush1.msra.mxu0 0.0
        %2313 = vmatprep.subr.mxu0 0.0
        %2314 = vmatpush1.msra.mxu0 0.0
        %2315 = vmatprep.subr.mxu0 0.0
        %2316 = vmatpush1.msra.mxu0 0.0
        %2317 = vmatprep.subr.mxu0 0.0
        %2318 = vmatpush1.msra.mxu0 0.0
        %2319 = vmatprep.subr.mxu0 0.0
        %2320 = vmatpush1.msra.mxu0 0.0
        %2321 = vmatprep.subr.mxu0 0.0
        %2322 = vmatpush1.msra.mxu0 0.0
        %2323 = vmatprep.subr.mxu0 0.0
        %2324 = vmatpush1.msra.mxu0 0.0
        %2325 = vmatprep.subr.mxu0 0.0
        %2326 = vmatpush1.msra.mxu0 0.0
        %2327 = vmatprep.subr.mxu0 0.0
        %2328 = vmatpush1.msra.mxu0 0.0
        %2329 = vmatprep.subr.mxu0 0.0
        %2330 = vmatpush1.msra.mxu0 0.0
        %2331 = vmatprep.subr.mxu0 0.0
        %2332 = vmatpush1.msra.mxu0 0.0
        %2333 = vmatprep.subr.mxu0 0.0
        %2334 = vmatpush1.msra.mxu0 0.0
        %2335 = vmatprep.subr.mxu0 0.0
        %2336 = vmatpush1.msra.mxu0 0.0
        %2337 = vmatprep.subr.mxu0 0.0
        %2338 = vmatpush1.msra.mxu0 0.0
        %2339 = vmatprep.subr.mxu0 0.0
        %2340 = vmatpush1.msra.mxu0 0.0
        %2341 = vmatprep.mubr.f32.mxu0 0.0
        %2342 = vmatmul.mubr.f32.gmra.mrb[0].mxu0 %v2275
        %v2343 = vpop.f32.mrb[0].mxu0
        %v2344 = vadd.f32 0.0, %v2343
        %v2345 = vpop.f32.mrb[0].mxu0
        %2346 = vdwg.mxu0
        %2348 = vrot.lane.b32.xlu0 %v2010, 8
        %v2349 = vpop.permute.xlu0 %2348
        %2352 = vrot.lane.b32.xlu0 %v2177, 16
        %v2353 = vpop.permute.xlu0 %2352
        %2356 = vrot.lane.b32.xlu0 %v2344, 24
        %v2357 = vpop.permute.xlu0 %2356
        %v2359 = vsel %vm998, %v1843, %v2349
        %v2360 = vsel %vm1676, %v2359, %v2353
        %v2361 = vsel %vm1678, %v2360, %v2357
        %v2362 = vld [vmem:[%s708] sm:$0xff]
        %v2363 = vld [vmem:[%s708 + $0x8] sm:$0xff]
        %v2364 = vld [vmem:[%s708 + $0x10] sm:$0xff]
        %v2365 = vld [vmem:[%s708 + $0x18] sm:$0xff]
        %v2367 = vsel %vm853, %v1679, 0
        %v2370 = vsel %vm853, %v2361, 0
        %2372 = vmatprep.subr.mxu0 0.0
        %2373 = vmatpush1.msra.mxu0 %v2362
        %2374 = vmatprep.subr.mxu0 0.0
        %2375 = vmatpush1.msra.mxu0 %v2363
        %2376 = vmatprep.subr.mxu0 0.0
        %2377 = vmatpush1.msra.mxu0 %v2364
        %2378 = vmatprep.subr.mxu0 0.0
        %2379 = vmatpush1.msra.mxu0 %v2365
        %2380 = vmatprep.subr.mxu0 0.0
        %2381 = vmatpush1.msra.mxu0 0.0
        %2382 = vmatprep.subr.mxu0 0.0
        %2383 = vmatpush1.msra.mxu0 0.0
        %2384 = vmatprep.subr.mxu0 0.0
        %2385 = vmatpush1.msra.mxu0 0.0
        %2386 = vmatprep.subr.mxu0 0.0
        %2387 = vmatpush1.msra.mxu0 0.0
        %2388 = vmatprep.subr.mxu0 0.0
        %2389 = vmatpush1.msra.mxu0 0.0
        %2390 = vmatprep.subr.mxu0 0.0
        %2391 = vmatpush1.msra.mxu0 0.0
        %2392 = vmatprep.subr.mxu0 0.0
        %2393 = vmatpush1.msra.mxu0 0.0
        %2394 = vmatprep.subr.mxu0 0.0
        %2395 = vmatpush1.msra.mxu0 0.0
        %2396 = vmatprep.subr.mxu0 0.0
        %2397 = vmatpush1.msra.mxu0 0.0
        %2398 = vmatprep.subr.mxu0 0.0
        %2399 = vmatpush1.msra.mxu0 0.0
        %2400 = vmatprep.subr.mxu0 0.0
        %2401 = vmatpush1.msra.mxu0 0.0
        %2402 = vmatprep.subr.mxu0 0.0
        %2403 = vmatpush1.msra.mxu0 0.0
        %2404 = vmatprep.subr.mxu0 0.0
        %2405 = vmatpush1.msra.mxu0 0.0
        %2406 = vmatprep.subr.mxu0 0.0
        %2407 = vmatpush1.msra.mxu0 0.0
        %2408 = vmatprep.subr.mxu0 0.0
        %2409 = vmatpush1.msra.mxu0 0.0
        %2410 = vmatprep.subr.mxu0 0.0
        %2411 = vmatpush1.msra.mxu0 0.0
        %2412 = vmatprep.subr.mxu0 0.0
        %2413 = vmatpush1.msra.mxu0 0.0
        %2414 = vmatprep.subr.mxu0 0.0
        %2415 = vmatpush1.msra.mxu0 0.0
        %2416 = vmatprep.subr.mxu0 0.0
        %2417 = vmatpush1.msra.mxu0 0.0
        %2418 = vmatprep.subr.mxu0 0.0
        %2419 = vmatpush1.msra.mxu0 0.0
        %2420 = vmatprep.subr.mxu0 0.0
        %2421 = vmatpush1.msra.mxu0 0.0
        %2422 = vmatprep.subr.mxu0 0.0
        %2423 = vmatpush1.msra.mxu0 0.0
        %2424 = vmatprep.subr.mxu0 0.0
        %2425 = vmatpush1.msra.mxu0 0.0
        %2426 = vmatprep.subr.mxu0 0.0
        %2427 = vmatpush1.msra.mxu0 0.0
        %2428 = vmatprep.subr.mxu0 0.0
        %2429 = vmatpush1.msra.mxu0 0.0
        %2430 = vmatprep.subr.mxu0 0.0
        %2431 = vmatpush1.msra.mxu0 0.0
        %2432 = vmatprep.subr.mxu0 0.0
        %2433 = vmatpush1.msra.mxu0 0.0
        %2434 = vmatprep.subr.mxu0 0.0
        %2435 = vmatpush1.msra.mxu0 0.0
        %2436 = vmatprep.mubr.f32.mxu0 0.0
        %2437 = vmatmul.mubr.f32.gmra.mrb[0].mxu0 %v2367
        %v2438 = vpop.f32.mrb[0].mxu0
        %v2439 = vadd.f32 0.0, %v2438
        %v2440 = vpop.f32.mrb[0].mxu0
        %2441 = vmatprep.mubr.f32.mxu0 0.0
        %2442 = vmatmul.mubr.f32.gmra.mrb[0].mxu0 %v2370
        %v2443 = vpop.f32.mrb[0].mxu0
        %v2444 = vadd.f32 0.0, %v2443
        %v2445 = vpop.f32.mrb[0].mxu0
        %2446 = vdwg.mxu0
        %v2447 = vadd.f32 %v849, %v2439
        %v2448 = vadd.f32 %v850, %v2444
        %v2449 = vld [vmem:[%s711] sm:$0x1]
        %v2451 = vlaneseq
        %v2452 = vshrl.u32 %v2451, 7
        %v2453 = vsub.s32 0, %v2452
        %v2454 = vrot.slane %v2449, %v2453
        %v2456 = vadd.f32 %v2447, %v2454
        %v2457 = vadd.f32 %v2448, %v2454
        %v2458 = vld [vmem:[%s714] sm:$0x1]
        %v2459 = vld [vmem:[%s717] sm:$0x1]
        %v2460 = vsel %vm853, %v2456, 0.0
        %2461 = vadd.xlane.f32.xlu0 %v2460
        %v2462 = vpop.xlane.xlu0 %2461
        %v2463 = vsel %vm853, %v2457, 0.0
        %2464 = vadd.xlane.f32.xlu0 %v2463
        %v2465 = vpop.xlane.xlu0 %2464
        %v2466 = vmul.f32 %v2462, %v860
        %v2467 = vmul.f32 %v2465, %v860
        %v2468 = vsub.f32 %v2456, %v2466
        %v2469 = vsub.f32 %v2457, %v2467
        %v2470 = vmul.f32 %v2468, %v2468
        %v2471 = vmul.f32 %v2469, %v2469
        %v2472 = vsel %vm853, %v2470, 0.0
        %2473 = vadd.xlane.f32.xlu0 %v2472
        %v2474 = vpop.xlane.xlu0 %2473
        %v2475 = vsel %vm853, %v2471, 0.0
        %2476 = vadd.xlane.f32.xlu0 %v2475
        %v2477 = vpop.xlane.xlu0 %2476
        %v2478 = vmul.f32 %v2474, %v860
        %v2479 = vmul.f32 %v2477, %v860
        %v2480 = vadd.f32 %v2478, 1e-05
        %v2481 = vadd.f32 %v2479, 1e-05
        %v2482 = vrsqrt.pop %v2480
        %v2483 = vrsqrt.pop %v2481
        %v2484 = vmul.f32 %v2468, %v2482
        %v2485 = vmul.f32 %v2469, %v2483
        %v2487 = vlaneseq
        %v2488 = vshrl.u32 %v2487, 7
        %v2489 = vsub.s32 0, %v2488
        %v2490 = vrot.slane %v2458, %v2489
        %v2492 = vmul.f32 %v2484, %v2490
        %v2493 = vmul.f32 %v2485, %v2490
        %v2495 = vlaneseq
        %v2496 = vshrl.u32 %v2495, 7
        %v2497 = vsub.s32 0, %v2496
        %v2498 = vrot.slane %v2459, %v2497
        %v2500 = vadd.f32 %v2492, %v2498
        %v2501 = vadd.f32 %v2493, %v2498
        %v2502 = vld [vmem:[%s722] sm:$0xff]
        %v2503 = vld [vmem:[%s722 + $0x8] sm:$0xff]
        %v2504 = vld [vmem:[%s722 + $0x10] sm:$0xff]
        %v2505 = vld [vmem:[%s722 + $0x18] sm:$0xff]
        %v2506 = vld [vmem:[%s725] sm:$0x1]
        %v2508 = vlaneseq
        %v2509 = vshrl.u32 %v2508, 7
        %v2510 = vsub.s32 0, %v2509
        %v2511 = vrot.slane %v2506, %v2510
        %v2514 = vsel %vm853, %v2500, 0
        %v2517 = vsel %vm853, %v2501, 0
        %2519 = vmatprep.subr.mxu0 0.0
        %2520 = vmatpush1.msra.mxu0 %v2502
        %2521 = vmatprep.subr.mxu0 0.0
        %2522 = vmatpush1.msra.mxu0 %v2503
        %2523 = vmatprep.subr.mxu0 0.0
        %2524 = vmatpush1.msra.mxu0 %v2504
        %2525 = vmatprep.subr.mxu0 0.0
        %2526 = vmatpush1.msra.mxu0 %v2505
        %2527 = vmatprep.subr.mxu0 0.0
        %2528 = vmatpush1.msra.mxu0 0.0
        %2529 = vmatprep.subr.mxu0 0.0
        %2530 = vmatpush1.msra.mxu0 0.0
        %2531 = vmatprep.subr.mxu0 0.0
        %2532 = vmatpush1.msra.mxu0 0.0
        %2533 = vmatprep.subr.mxu0 0.0
        %2534 = vmatpush1.msra.mxu0 0.0
        %2535 = vmatprep.subr.mxu0 0.0
        %2536 = vmatpush1.msra.mxu0 0.0
        %2537 = vmatprep.subr.mxu0 0.0
        %2538 = vmatpush1.msra.mxu0 0.0
        %2539 = vmatprep.subr.mxu0 0.0
        %2540 = vmatpush1.msra.mxu0 0.0
        %2541 = vmatprep.subr.mxu0 0.0
        %2542 = vmatpush1.msra.mxu0 0.0
        %2543 = vmatprep.subr.mxu0 0.0
        %2544 = vmatpush1.msra.mxu0 0.0
        %2545 = vmatprep.subr.mxu0 0.0
        %2546 = vmatpush1.msra.mxu0 0.0
        %2547 = vmatprep.subr.mxu0 0.0
        %2548 = vmatpush1.msra.mxu0 0.0
        %2549 = vmatprep.subr.mxu0 0.0
        %2550 = vmatpush1.msra.mxu0 0.0
        %2551 = vmatprep.subr.mxu0 0.0
        %2552 = vmatpush1.msra.mxu0 0.0
        %2553 = vmatprep.subr.mxu0 0.0
        %2554 = vmatpush1.msra.mxu0 0.0
        %2555 = vmatprep.subr.mxu0 0.0
        %2556 = vmatpush1.msra.mxu0 0.0
        %2557 = vmatprep.subr.mxu0 0.0
        %2558 = vmatpush1.msra.mxu0 0.0
        %2559 = vmatprep.subr.mxu0 0.0
        %2560 = vmatpush1.msra.mxu0 0.0
        %2561 = vmatprep.subr.mxu0 0.0
        %2562 = vmatpush1.msra.mxu0 0.0
        %2563 = vmatprep.subr.mxu0 0.0
        %2564 = vmatpush1.msra.mxu0 0.0
        %2565 = vmatprep.subr.mxu0 0.0
        %2566 = vmatpush1.msra.mxu0 0.0
        %2567 = vmatprep.subr.mxu0 0.0
        %2568 = vmatpush1.msra.mxu0 0.0
        %2569 = vmatprep.subr.mxu0 0.0
        %2570 = vmatpush1.msra.mxu0 0.0
        %2571 = vmatprep.subr.mxu0 0.0
        %2572 = vmatpush1.msra.mxu0 0.0
        %2573 = vmatprep.subr.mxu0 0.0
        %2574 = vmatpush1.msra.mxu0 0.0
        %2575 = vmatprep.subr.mxu0 0.0
        %2576 = vmatpush1.msra.mxu0 0.0
        %2577 = vmatprep.subr.mxu0 0.0
        %2578 = vmatpush1.msra.mxu0 0.0
        %2579 = vmatprep.subr.mxu0 0.0
        %2580 = vmatpush1.msra.mxu0 0.0
        %2581 = vmatprep.subr.mxu0 0.0
        %2582 = vmatpush1.msra.mxu0 0.0
        %2583 = vmatprep.mubr.f32.mxu0 0.0
        %2584 = vmatmul.mubr.f32.gmra.mrb[0].mxu0 %v2514
        %v2585 = vpop.f32.mrb[0].mxu0
        %v2586 = vadd.f32 %v2511, %v2585
        %v2587 = vpop.f32.mrb[0].mxu0
        %2588 = vmatprep.mubr.f32.mxu0 0.0
        %2589 = vmatmul.mubr.f32.gmra.mrb[0].mxu0 %v2517
        %v2590 = vpop.f32.mrb[0].mxu0
        %v2591 = vadd.f32 %v2511, %v2590
        %v2592 = vpop.f32.mrb[0].mxu0
        %2593 = vdwg.mxu0
        %v2594 = vmul.f32 %v2586, 0.5
        %v2595 = vmul.f32 %v2591, 0.5
        %v2596 = vmul.f32 %v2586, 0.044715
        %v2597 = vmul.f32 %v2591, 0.044715
        %v2598 = vmul.f32 %v2596, %v2586
        %v2599 = vmul.f32 %v2597, %v2591
        %v2600 = vmul.f32 %v2598, %v2586
        %v2601 = vmul.f32 %v2599, %v2591
        %v2602 = vadd.f32 %v2586, %v2600
        %v2603 = vadd.f32 %v2591, %v2601
        %v2604 = vmul.f32 %v2602, 0.7978846
        %v2605 = vmul.f32 %v2603, 0.7978846
        %v2606 = vtanh.pop %v2604
        %v2607 = vtanh.pop %v2605
        %v2608 = vadd.f32 %v2606, 1.0
        %v2609 = vadd.f32 %v2607, 1.0
        %v2610 = vmul.f32 %v2594, %v2608
        %v2611 = vmul.f32 %v2595, %v2609
        %v2612 = vld [vmem:[%s730] sm:$0xff]
        %v2613 = vld [vmem:[%s730 + $0x8] sm:$0xff]
        %v2614 = vld [vmem:[%s730 + $0x10] sm:$0xff]
        %v2615 = vld [vmem:[%s730 + $0x18] sm:$0xff]
        %v2616 = vld [vmem:[%s730 + $0x20] sm:$0xff]
        %v2617 = vld [vmem:[%s730 + $0x28] sm:$0xff]
        %v2618 = vld [vmem:[%s730 + $0x30] sm:$0xff]
        %v2619 = vld [vmem:[%s730 + $0x38] sm:$0xff]
        %v2620 = vld [vmem:[%s730 + $0x40] sm:$0xff]
        %v2621 = vld [vmem:[%s730 + $0x48] sm:$0xff]
        %v2622 = vld [vmem:[%s730 + $0x50] sm:$0xff]
        %v2623 = vld [vmem:[%s730 + $0x58] sm:$0xff]
        %v2624 = vld [vmem:[%s730 + $0x60] sm:$0xff]
        %v2625 = vld [vmem:[%s730 + $0x68] sm:$0xff]
        %v2626 = vld [vmem:[%s730 + $0x70] sm:$0xff]
        %v2627 = vld [vmem:[%s730 + $0x78] sm:$0xff]
        %2628 = vmatprep.subr.mxu0 0.0
        %2629 = vmatpush1.msra.mxu0 %v2612
        %2630 = vmatprep.subr.mxu0 0.0
        %2631 = vmatpush1.msra.mxu0 %v2613
        %2632 = vmatprep.subr.mxu0 0.0
        %2633 = vmatpush1.msra.mxu0 %v2614
        %2634 = vmatprep.subr.mxu0 0.0
        %2635 = vmatpush1.msra.mxu0 %v2615
        %2636 = vmatprep.subr.mxu0 0.0
        %2637 = vmatpush1.msra.mxu0 %v2616
        %2638 = vmatprep.subr.mxu0 0.0
        %2639 = vmatpush1.msra.mxu0 %v2617
        %2640 = vmatprep.subr.mxu0 0.0
        %2641 = vmatpush1.msra.mxu0 %v2618
        %2642 = vmatprep.subr.mxu0 0.0
        %2643 = vmatpush1.msra.mxu0 %v2619
        %2644 = vmatprep.subr.mxu0 0.0
        %2645 = vmatpush1.msra.mxu0 %v2620
        %2646 = vmatprep.subr.mxu0 0.0
        %2647 = vmatpush1.msra.mxu0 %v2621
        %2648 = vmatprep.subr.mxu0 0.0
        %2649 = vmatpush1.msra.mxu0 %v2622
        %2650 = vmatprep.subr.mxu0 0.0
        %2651 = vmatpush1.msra.mxu0 %v2623
        %2652 = vmatprep.subr.mxu0 0.0
        %2653 = vmatpush1.msra.mxu0 %v2624
        %2654 = vmatprep.subr.mxu0 0.0
        %2655 = vmatpush1.msra.mxu0 %v2625
        %2656 = vmatprep.subr.mxu0 0.0
        %2657 = vmatpush1.msra.mxu0 %v2626
        %2658 = vmatprep.subr.mxu0 0.0
        %2659 = vmatpush1.msra.mxu0 %v2627
        %2660 = vmatprep.subr.mxu0 0.0
        %2661 = vmatpush1.msra.mxu0 0.0
        %2662 = vmatprep.subr.mxu0 0.0
        %2663 = vmatpush1.msra.mxu0 0.0
        %2664 = vmatprep.subr.mxu0 0.0
        %2665 = vmatpush1.msra.mxu0 0.0
        %2666 = vmatprep.subr.mxu0 0.0
        %2667 = vmatpush1.msra.mxu0 0.0
        %2668 = vmatprep.subr.mxu0 0.0
        %2669 = vmatpush1.msra.mxu0 0.0
        %2670 = vmatprep.subr.mxu0 0.0
        %2671 = vmatpush1.msra.mxu0 0.0
        %2672 = vmatprep.subr.mxu0 0.0
        %2673 = vmatpush1.msra.mxu0 0.0
        %2674 = vmatprep.subr.mxu0 0.0
        %2675 = vmatpush1.msra.mxu0 0.0
        %2676 = vmatprep.subr.mxu0 0.0
        %2677 = vmatpush1.msra.mxu0 0.0
        %2678 = vmatprep.subr.mxu0 0.0
        %2679 = vmatpush1.msra.mxu0 0.0
        %2680 = vmatprep.subr.mxu0 0.0
        %2681 = vmatpush1.msra.mxu0 0.0
        %2682 = vmatprep.subr.mxu0 0.0
        %2683 = vmatpush1.msra.mxu0 0.0
        %2684 = vmatprep.subr.mxu0 0.0
        %2685 = vmatpush1.msra.mxu0 0.0
        %2686 = vmatprep.subr.mxu0 0.0
        %2687 = vmatpush1.msra.mxu0 0.0
        %2688 = vmatprep.subr.mxu0 0.0
        %2689 = vmatpush1.msra.mxu0 0.0
        %2690 = vmatprep.subr.mxu0 0.0
        %2691 = vmatpush1.msra.mxu0 0.0
        %2692 = vmatprep.mubr.f32.mxu0 0.0
        %2693 = vmatmul.mubr.f32.gmra.mrb[0].mxu0 %v2610
        %v2694 = vpop.f32.mrb[0].mxu0
        %v2695 = vadd.f32 0.0, %v2694
        %v2696 = vpop.f32.mrb[0].mxu0
        %2697 = vmatprep.mubr.f32.mxu0 0.0
        %2698 = vmatmul.mubr.f32.gmra.mrb[0].mxu0 %v2611
        %v2699 = vpop.f32.mrb[0].mxu0
        %v2700 = vadd.f32 0.0, %v2699
        %v2701 = vpop.f32.mrb[0].mxu0
        %2702 = vdwg.mxu0
        %v2703 = vadd.f32 %v2456, %v2695
        %v2704 = vadd.f32 %v2457, %v2700
        %v2705 = vld [vmem:[%s733] sm:$0x1]
        %v2707 = vlaneseq
        %v2708 = vshrl.u32 %v2707, 7
        %v2709 = vsub.s32 0, %v2708
        %v2710 = vrot.slane %v2705, %v2709
        %v2712 = vadd.f32 %v2703, %v2710
        %v2713 = vadd.f32 %v2704, %v2710
        %2714 = vst.msk [vmem:[#allocation2] sm:$0xff] %vm853, %v2712
        %2715 = vst.msk [vmem:[#allocation2 + $0x8] sm:$0xff] %vm853, %v2713
        %p2716 = scmp.eq.s32.totalorder %s30, 1
        // Predicated region
        $region97: #{gpt_forward.1} parent=91 // pred_check
          %p2717 = pneg %p2716
        $region98: #{gpt_forward.1} parent=91 // pred_check_branch
          %2719 = sbr.rel (%p2717) target = $region100
        $region99: #{gpt_forward.1} parent=91 // pred_region
          %v2720 = vld [vmem:[%s15] sm:$0x1]
          %v2721 = vld [vmem:[%s16] sm:$0x1]
          %v2722 = vsel %vm853, %v2712, 0.0
          %2723 = vadd.xlane.f32.xlu0 %v2722
          %v2724 = vpop.xlane.xlu0 %2723
          %v2725 = vsel %vm853, %v2713, 0.0
          %2726 = vadd.xlane.f32.xlu0 %v2725
          %v2727 = vpop.xlane.xlu0 %2726
          %v2728 = vmul.f32 %v2724, %v860
          %v2729 = vmul.f32 %v2727, %v860
          %v2730 = vsub.f32 %v2712, %v2728
          %v2731 = vsub.f32 %v2713, %v2729
          %v2732 = vmul.f32 %v2730, %v2730
          %v2733 = vmul.f32 %v2731, %v2731
          %v2734 = vsel %vm853, %v2732, 0.0
          %2735 = vadd.xlane.f32.xlu0 %v2734
          %v2736 = vpop.xlane.xlu0 %2735
          %v2737 = vsel %vm853, %v2733, 0.0
          %2738 = vadd.xlane.f32.xlu0 %v2737
          %v2739 = vpop.xlane.xlu0 %2738
          %v2740 = vmul.f32 %v2736, %v860
          %v2741 = vmul.f32 %v2739, %v860
          %v2742 = vadd.f32 %v2740, 1e-05
          %v2743 = vadd.f32 %v2741, 1e-05
          %v2744 = vrsqrt.pop %v2742
          %v2745 = vrsqrt.pop %v2743
          %v2746 = vmul.f32 %v2730, %v2744
          %v2747 = vmul.f32 %v2731, %v2745
          %v2749 = vlaneseq
          %v2750 = vshrl.u32 %v2749, 7
          %v2751 = vsub.s32 0, %v2750
          %v2752 = vrot.slane %v2720, %v2751
          %v2754 = vmul.f32 %v2746, %v2752
          %v2755 = vmul.f32 %v2747, %v2752
          %v2757 = vlaneseq
          %v2758 = vshrl.u32 %v2757, 7
          %v2759 = vsub.s32 0, %v2758
          %v2760 = vrot.slane %v2721, %v2759
          %v2762 = vadd.f32 %v2754, %v2760
          %v2763 = vadd.f32 %v2755, %v2760
          %v2764 = vld [vmem:[%s17] sm:$0xff]
          %v2765 = vld [vmem:[%s17 + $0x8] sm:$0xff]
          %v2766 = vld [vmem:[%s17 + $0x10] sm:$0xff]
          %v2767 = vld [vmem:[%s17 + $0x18] sm:$0xff]
          %v2769 = vsel %vm853, %v2762, 0
          %v2772 = vsel %vm853, %v2763, 0
          %2774 = vmatprep.subr.mxu0 0.0
          %2775 = vmatpush1.msra.mxu0 %v2764
          %2776 = vmatprep.subr.mxu0 0.0
          %2777 = vmatpush1.msra.mxu0 %v2765
          %2778 = vmatprep.subr.mxu0 0.0
          %2779 = vmatpush1.msra.mxu0 %v2766
          %2780 = vmatprep.subr.mxu0 0.0
          %2781 = vmatpush1.msra.mxu0 %v2767
          %2782 = vmatprep.subr.mxu0 0.0
          %2783 = vmatpush1.msra.mxu0 0.0
          %2784 = vmatprep.subr.mxu0 0.0
          %2785 = vmatpush1.msra.mxu0 0.0
          %2786 = vmatprep.subr.mxu0 0.0
          %2787 = vmatpush1.msra.mxu0 0.0
          %2788 = vmatprep.subr.mxu0 0.0
          %2789 = vmatpush1.msra.mxu0 0.0
          %2790 = vmatprep.subr.mxu0 0.0
          %2791 = vmatpush1.msra.mxu0 0.0
          %2792 = vmatprep.subr.mxu0 0.0
          %2793 = vmatpush1.msra.mxu0 0.0
          %2794 = vmatprep.subr.mxu0 0.0
          %2795 = vmatpush1.msra.mxu0 0.0
          %2796 = vmatprep.subr.mxu0 0.0
          %2797 = vmatpush1.msra.mxu0 0.0
          %2798 = vmatprep.subr.mxu0 0.0
          %2799 = vmatpush1.msra.mxu0 0.0
          %2800 = vmatprep.subr.mxu0 0.0
          %2801 = vmatpush1.msra.mxu0 0.0
          %2802 = vmatprep.subr.mxu0 0.0
          %2803 = vmatpush1.msra.mxu0 0.0
          %2804 = vmatprep.subr.mxu0 0.0
          %2805 = vmatpush1.msra.mxu0 0.0
          %2806 = vmatprep.subr.mxu0 0.0
          %2807 = vmatpush1.msra.mxu0 0.0
          %2808 = vmatprep.subr.mxu0 0.0
          %2809 = vmatpush1.msra.mxu0 0.0
          %2810 = vmatprep.subr.mxu0 0.0
          %2811 = vmatpush1.msra.mxu0 0.0
          %2812 = vmatprep.subr.mxu0 0.0
          %2813 = vmatpush1.msra.mxu0 0.0
          %2814 = vmatprep.subr.mxu0 0.0
          %2815 = vmatpush1.msra.mxu0 0.0
          %2816 = vmatprep.subr.mxu0 0.0
          %2817 = vmatpush1.msra.mxu0 0.0
          %2818 = vmatprep.subr.mxu0 0.0
          %2819 = vmatpush1.msra.mxu0 0.0
          %2820 = vmatprep.subr.mxu0 0.0
          %2821 = vmatpush1.msra.mxu0 0.0
          %2822 = vmatprep.subr.mxu0 0.0
          %2823 = vmatpush1.msra.mxu0 0.0
          %2824 = vmatprep.subr.mxu0 0.0
          %2825 = vmatpush1.msra.mxu0 0.0
          %2826 = vmatprep.subr.mxu0 0.0
          %2827 = vmatpush1.msra.mxu0 0.0
          %2828 = vmatprep.subr.mxu0 0.0
          %2829 = vmatpush1.msra.mxu0 0.0
          %2830 = vmatprep.subr.mxu0 0.0
          %2831 = vmatpush1.msra.mxu0 0.0
          %2832 = vmatprep.subr.mxu0 0.0
          %2833 = vmatpush1.msra.mxu0 0.0
          %2834 = vmatprep.subr.mxu0 0.0
          %2835 = vmatpush1.msra.mxu0 0.0
          %2836 = vmatprep.subr.mxu0 0.0
          %2837 = vmatpush1.msra.mxu0 0.0
          %2838 = vmatprep.mubr.f32.mxu0 0.0
          %2839 = vmatmul.mubr.f32.gmra.mrb[0].mxu0 %v2769
          %v2840 = vpop.f32.mrb[0].mxu0
          %v2841 = vadd.f32 0.0, %v2840
          %v2842 = vpop.f32.mrb[0].mxu0
          %2843 = vmatprep.mubr.f32.mxu0 0.0
          %2844 = vmatmul.mubr.f32.gmra.mrb[0].mxu0 %v2772
          %v2845 = vpop.f32.mrb[0].mxu0
          %v2846 = vadd.f32 0.0, %v2845
          %v2847 = vpop.f32.mrb[0].mxu0
          %2848 = vdwg.mxu0
          %2849 = vst [vmem:[#allocation3] sm:$0xff] %v2841
          %2850 = vst [vmem:[#allocation3 + $0x8] sm:$0xff] %v2846
        $region100: #{gpt_forward.1} parent=91 // pred_fallthru
          _
        // Predicated region
        $region101: #{gpt_forward.1} parent=91 // pred_check
          %p2851 = pneg %p481
        $region102: #{gpt_forward.1} parent=91 // pred_check_branch
          %2853 = sbr.rel (%p2851) target = $region104
        $region103: #{gpt_forward.1} parent=91 // pred_region
          %s2855 = ssub.s32 256, 256
          %2856 = vsyncadd [#allocation4], %s2855
          %s2857 = sshll.u32 [#allocation3], 4
          %s2858 = int_to_ptr.vmem [resolvable:$true] %s2857
          %2863 = dma.vmem_to_hbm [thread:$0]  %s2858, 256, %s18, [#allocation4], 128, 128, 8
        $region104: #{gpt_forward.1} parent=91 // pred_fallthru
          _
        // Predicated region
        $region105: #{gpt_forward.1} parent=91 // pred_check
          %p2864 = pneg %p481
        $region106: #{gpt_forward.1} parent=91 // pred_check_branch
          %2866 = sbr.rel (%p2864) target = $region108
        $region107: #{gpt_forward.1} parent=91 // pred_region
          %2867 = dma.done [#allocation4], 256
        $region108: #{gpt_forward.1} parent=91 // pred_fallthru
          _
      $region92: #{gpt_forward.1} parent=5 // pred_fallthru
        _
      %p2868 = scmp.le.s32.totalorder 2, %s25
      // Predicated region
      $region109: #{gpt_forward.1} parent=5 // pred_check
        %p2869 = pneg %p2868
      $region110: #{gpt_forward.1} parent=5 // pred_check_branch
        %2871 = sbr.rel (%p2869) target = $region112
      $region111: #{gpt_forward.1} parent=5 // pred_region
        %s2872 = ssub.s32 %s25, 2
      $region112: #{gpt_forward.1} parent=5 // pred_fallthru
        _
    $region6: #{gpt_forward.1} parent=1 // loop_footer
      %s29 = sadd.s32 1, %s25
    $region7: #{gpt_forward.1} parent=1 // loop_footer_branch
      %24 = sbr.rel target = $region3
    $region8: #{gpt_forward.1} parent=1 // loop_exit
      _
    %2873 = vsyncpa [#allocation4], 1
    %s2874 = scalar_lea.sflag [#allocation4], 1
    %2875 = vsyncpa %s2874, 1

</llo_original>
